<compile_context>
chip_gen: v6e
topology: v6e:2x2x1
jax: 0.10.0
libtpu: 0.0.40
codegen_flags: <defaults>
</compile_context>

<pallas_src>
import math
from functools import partial

import jax
import jax.numpy as jnp
import numpy as np
from jax import lax
from jax.experimental import pallas as pl
from jax.experimental.pallas import tpu as pltpu

D_MODEL = 128
D_FF = 512
ACTIVATION = "gelu"   # 'relu' or 'gelu'

_SQRT_2_OVER_PI = math.sqrt(2.0 / math.pi)


def _act(h, activation):
    if activation == "relu":
        return jnp.maximum(h, 0.0)
    # tanh-approximate GELU (EUP tanh has its own bundle slot -> effectively free next to MXU)
    return 0.5 * h * (1.0 + jnp.tanh(_SQRT_2_OVER_PI * (h + 0.044715 * h * h * h)))


def _ffn_kernel(x_ref, w1_ref, b1_ref, w2_ref, b2_ref, o_ref, *, activation, ff_chunk):
    # x_ref: (TM, D) input dtype | w1_ref: (D, F) bf16 | b1_ref: (1, F) f32
    # w2_ref: (F, D) bf16        | b2_ref: (1, D) f32  | o_ref: (TM, D) input dtype
    tm = x_ref.shape[0]
    d_ff = w1_ref.shape[1]
    d_model = w2_ref.shape[1]
    n_chunks = d_ff // ff_chunk

    # MXU operands in the (bf16) weight dtype; bias / activation / accumulation stay f32.
    x = x_ref[...].astype(w1_ref.dtype)

    acc = jnp.zeros((tm, d_model), jnp.float32)
    # Static 2-iteration slab loop over d_ff (static slices -> clean (8,128)-aligned views,
    # keeps the live intermediate at (TM, ff_chunk) instead of (TM, d_ff)).
    for c in range(n_chunks):
        sl = slice(c * ff_chunk, (c + 1) * ff_chunk)
        h = jnp.dot(x, w1_ref[:, sl], preferred_element_type=jnp.float32) + b1_ref[:, sl]
        h = _act(h, activation)
        acc = acc + jnp.dot(h.astype(w2_ref.dtype), w2_ref[sl, :],
                            preferred_element_type=jnp.float32)

    o_ref[...] = (acc + b2_ref[...]).astype(o_ref.dtype)


def _choose_tm(n_tokens, block_tokens):
    """Token-tile size: as large as possible (amortize per-step overhead), >= 2 grid steps
    when there's enough work (v7x megacore), multiple of 128 (else 8), prefer a divisor of
    n_tokens so no pad/slice HBM passes are needed."""
    tm = max(8, min(block_tokens, n_tokens))
    if n_tokens >= 256:                      # enough work to feed two TensorCores
        tm = min(tm, n_tokens // 2)
    step = 128 if tm >= 128 else 8
    tm = max(step, (tm // step) * step)
    cand = tm
    while cand >= step:                      # look for an exact divisor (skip padding)
        if n_tokens % cand == 0:
            return cand
        cand -= step
    return tm


def feed_forward(x, params, *, activation=ACTIVATION, block_tokens=1024):
    """x: (..., d_model); params = (W1, b1, W2, b2) in torch.nn.Linear layout."""
    W1, b1, W2, b2 = params
    d_ff, d_model = W1.shape
    assert x.shape[-1] == d_model

    lead_shape = x.shape[:-1]
    n_tokens = int(np.prod(lead_shape)) if lead_shape else 1
    x2 = x.reshape(n_tokens, d_model)

    tm = _choose_tm(n_tokens, block_tokens)
    n_pad = pl.cdiv(n_tokens, tm) * tm
    if n_pad != n_tokens:                    # only for ragged token counts
        x2 = jnp.pad(x2, ((0, n_pad - n_tokens), (0, 0)))

    # Pre-transpose + pre-cast weights (one-off): kernel issues plain row-major bf16 x @ W dots
    # with f32 accumulation; biases stay f32 so the elementwise path is f32 on every chip.
    W1t = W1.T.astype(jnp.bfloat16)          # (d_model, d_ff)
    W2t = W2.T.astype(jnp.bfloat16)          # (d_ff, d_model)
    b1r = b1.reshape(1, d_ff).astype(jnp.float32)
    b2r = b2.reshape(1, d_model).astype(jnp.float32)

    ff_chunk = 256 if d_ff % 256 == 0 else d_ff

    itemsize = jnp.dtype(x2.dtype).itemsize
    cost = pl.CostEstimate(
        flops=4 * n_pad * d_model * d_ff,                           # two matmuls
        transcendentals=(n_pad * d_ff) if activation == "gelu" else 0,
        bytes_accessed=(2 * n_pad * d_model * itemsize              # x in + out
                        + 2 * 2 * d_model * d_ff                    # bf16 weights
                        + 4 * (d_ff + d_model)),                    # f32 biases
    )

    rep = lambda i: (0, 0)
    out = pl.pallas_call(
        partial(_ffn_kernel, activation=activation, ff_chunk=ff_chunk),
        out_shape=jax.ShapeDtypeStruct((n_pad, d_model), x.dtype),
        grid=(n_pad // tm,),
        in_specs=[
            pl.BlockSpec((tm, d_model), lambda i: (i, 0)),
            pl.BlockSpec((d_model, d_ff), rep),   # grid-invariant -> stays resident in VMEM
            pl.BlockSpec((1, d_ff), rep),
            pl.BlockSpec((d_ff, d_model), rep),
            pl.BlockSpec((1, d_model), rep),
        ],
        out_specs=pl.BlockSpec((tm, d_model), lambda i: (i, 0)),
        compiler_params=pltpu.CompilerParams(
            dimension_semantics=("parallel",)),   # token axis shards across v7x's two TCs
        cost_estimate=cost,
    )(x2, W1t, b1r, W2t, b2r)

    if n_pad != n_tokens:
        out = out[:n_tokens]
    return out.reshape(*lead_shape, d_model)


def reference_forward(x, params, *, activation=ACTIVATION):
    """Pure-JAX f32 transcription of the PyTorch forward (dropout = identity at inference)."""
    W1, b1, W2, b2 = params
    h = jnp.matmul(x, W1.T, precision=lax.Precision.HIGHEST) + b1
    h = _act(h, activation)
    return jnp.matmul(h, W2.T, precision=lax.Precision.HIGHEST) + b2


if __name__ == "__main__":
    key = jax.random.PRNGKey(0)
    B, S, D, F = 2, 512, D_MODEL, D_FF          # 1024 tokens -> tm=512, 2-step parallel grid
    ks = jax.random.split(key, 5)

    x = jax.random.normal(ks[0], (B, S, D), jnp.float32)

    # torch.nn.Linear init layout: W (out, in) ~ U(+-1/sqrt(in)), b (out,) ~ U(+-1/sqrt(in))
    bound1 = 1.0 / math.sqrt(D)
    bound2 = 1.0 / math.sqrt(F)
    W1 = jax.random.uniform(ks[1], (F, D), jnp.float32, -bound1, bound1)
    b1 = jax.random.uniform(ks[2], (F,), jnp.float32, -bound1, bound1)
    W2 = jax.random.uniform(ks[3], (D, F), jnp.float32, -bound2, bound2)
    b2 = jax.random.uniform(ks[4], (D,), jnp.float32, -bound2, bound2)
    params = (W1, b1, W2, b2)

    y = jax.jit(feed_forward)(x, params)
    y = jax.block_until_ready(y)

    assert y.shape == x.shape, (y.shape, x.shape)

    y_ref = reference_forward(x, params)
    np.testing.assert_allclose(np.asarray(y), np.asarray(y_ref), rtol=2e-2, atol=2e-2)

    print("KERNEL_OK")
</pallas_src>

<mosaic_0001>
module attributes {stable_mosaic.version = 11 : i64} {
  func.func @_ffn_kernel(%arg0: i32, %arg1: memref<512x128xf32, #tpu.memory_space<vmem>>, %arg2: memref<128x512xbf16, #tpu.memory_space<vmem>>, %arg3: memref<1x512xf32, #tpu.memory_space<vmem>>, %arg4: memref<512x128xbf16, #tpu.memory_space<vmem>>, %arg5: memref<1x128xf32, #tpu.memory_space<vmem>>, %arg6: memref<512x128xf32, #tpu.memory_space<vmem>>) attributes {dimension_semantics = [#tpu.dimension_semantics<parallel>], iteration_bounds = array<i64: 2>, scalar_prefetch = 0 : i64, scratch_operands = 0 : i64, tpu.core_type = #tpu.core_type<tc>, window_params = [{transform_indices = @transform_0, window_bounds = array<i64: 512, 128>}, {pipeline_mode = #tpu.pipeline_mode<synchronous>, transform_indices = @transform_1, window_bounds = array<i64: 128, 512>}, {pipeline_mode = #tpu.pipeline_mode<synchronous>, transform_indices = @transform_2, window_bounds = array<i64: 1, 512>}, {pipeline_mode = #tpu.pipeline_mode<synchronous>, transform_indices = @transform_3, window_bounds = array<i64: 512, 128>}, {pipeline_mode = #tpu.pipeline_mode<synchronous>, transform_indices = @transform_4, window_bounds = array<i64: 1, 128>}, {transform_indices = @transform_5, window_bounds = array<i64: 512, 128>}]} {
    %c0 = arith.constant 0 : index
    %c0_0 = arith.constant 0 : index
    %0 = vector.load %arg1[%c0, %c0_0] : memref<512x128xf32, #tpu.memory_space<vmem>>, vector<512x128xf32>
    %1 = arith.truncf %0 : vector<512x128xf32> to vector<512x128xbf16>
    %cst = arith.constant 0.000000e+00 : f32
    %2 = vector.broadcast %cst : f32 to vector<512x128xf32>
    %c0_1 = arith.constant 0 : index
    %c0_2 = arith.constant 0 : index
    %3 = vector.load %arg2[%c0_1, %c0_2] : memref<128x512xbf16, #tpu.memory_space<vmem>>, vector<128x256xbf16>
    %cst_3 = arith.constant dense<0.000000e+00> : vector<512x256xf32>
    %4 = tpu.matmul %1, %3, %cst_3 {dimension_numbers = #tpu.dot_dimension_numbers<[1], [0], [0], [1], [0, 0, 1, 1], [], []>} : vector<512x128xbf16>, vector<128x256xbf16>, vector<512x256xf32> -> vector<512x256xf32>
    %c0_4 = arith.constant 0 : index
    %c0_5 = arith.constant 0 : index
    %5 = vector.load %arg3[%c0_4, %c0_5] : memref<1x512xf32, #tpu.memory_space<vmem>>, vector<1x256xf32>
    %6 = vector.broadcast %5 : vector<1x256xf32> to vector<512x256xf32>
    %7 = arith.addf %4, %6 : vector<512x256xf32>
    %cst_6 = arith.constant 5.000000e-01 : f32
    %8 = vector.broadcast %cst_6 : f32 to vector<512x256xf32>
    %9 = arith.mulf %8, %7 : vector<512x256xf32>
    %cst_7 = arith.constant 4.471500e-02 : f32
    %10 = vector.broadcast %cst_7 : f32 to vector<512x256xf32>
    %11 = arith.mulf %10, %7 : vector<512x256xf32>
    %12 = arith.mulf %11, %7 : vector<512x256xf32>
    %13 = arith.mulf %12, %7 : vector<512x256xf32>
    %14 = arith.addf %7, %13 : vector<512x256xf32>
    %cst_8 = arith.constant 0.797884583 : f32
    %15 = vector.broadcast %cst_8 : f32 to vector<512x256xf32>
    %16 = arith.mulf %15, %14 : vector<512x256xf32>
    %17 = math.tanh %16 : vector<512x256xf32>
    %cst_9 = arith.constant 1.000000e+00 : f32
    %18 = vector.broadcast %cst_9 : f32 to vector<512x256xf32>
    %19 = arith.addf %18, %17 : vector<512x256xf32>
    %20 = arith.mulf %9, %19 : vector<512x256xf32>
    %21 = arith.truncf %20 : vector<512x256xf32> to vector<512x256xbf16>
    %c0_10 = arith.constant 0 : index
    %c0_11 = arith.constant 0 : index
    %22 = vector.load %arg4[%c0_10, %c0_11] : memref<512x128xbf16, #tpu.memory_space<vmem>>, vector<256x128xbf16>
    %cst_12 = arith.constant dense<0.000000e+00> : vector<512x128xf32>
    %23 = tpu.matmul %21, %22, %cst_12 {dimension_numbers = #tpu.dot_dimension_numbers<[1], [0], [0], [1], [0, 0, 1, 1], [], []>} : vector<512x256xbf16>, vector<256x128xbf16>, vector<512x128xf32> -> vector<512x128xf32>
    %24 = arith.addf %2, %23 : vector<512x128xf32>
    %c0_13 = arith.constant 0 : index
    %c256 = arith.constant 256 : index
    %25 = vector.load %arg2[%c0_13, %c256] : memref<128x512xbf16, #tpu.memory_space<vmem>>, vector<128x256xbf16>
    %cst_14 = arith.constant dense<0.000000e+00> : vector<512x256xf32>
    %26 = tpu.matmul %1, %25, %cst_14 {dimension_numbers = #tpu.dot_dimension_numbers<[1], [0], [0], [1], [0, 0, 1, 1], [], []>} : vector<512x128xbf16>, vector<128x256xbf16>, vector<512x256xf32> -> vector<512x256xf32>
    %c0_15 = arith.constant 0 : index
    %c256_16 = arith.constant 256 : index
    %27 = vector.load %arg3[%c0_15, %c256_16] : memref<1x512xf32, #tpu.memory_space<vmem>>, vector<1x256xf32>
    %28 = vector.broadcast %27 : vector<1x256xf32> to vector<512x256xf32>
    %29 = arith.addf %26, %28 : vector<512x256xf32>
    %cst_17 = arith.constant 5.000000e-01 : f32
    %30 = vector.broadcast %cst_17 : f32 to vector<512x256xf32>
    %31 = arith.mulf %30, %29 : vector<512x256xf32>
    %cst_18 = arith.constant 4.471500e-02 : f32
    %32 = vector.broadcast %cst_18 : f32 to vector<512x256xf32>
    %33 = arith.mulf %32, %29 : vector<512x256xf32>
    %34 = arith.mulf %33, %29 : vector<512x256xf32>
    %35 = arith.mulf %34, %29 : vector<512x256xf32>
    %36 = arith.addf %29, %35 : vector<512x256xf32>
    %cst_19 = arith.constant 0.797884583 : f32
    %37 = vector.broadcast %cst_19 : f32 to vector<512x256xf32>
    %38 = arith.mulf %37, %36 : vector<512x256xf32>
    %39 = math.tanh %38 : vector<512x256xf32>
    %cst_20 = arith.constant 1.000000e+00 : f32
    %40 = vector.broadcast %cst_20 : f32 to vector<512x256xf32>
    %41 = arith.addf %40, %39 : vector<512x256xf32>
    %42 = arith.mulf %31, %41 : vector<512x256xf32>
    %43 = arith.truncf %42 : vector<512x256xf32> to vector<512x256xbf16>
    %c256_21 = arith.constant 256 : index
    %c0_22 = arith.constant 0 : index
    %44 = vector.load %arg4[%c256_21, %c0_22] : memref<512x128xbf16, #tpu.memory_space<vmem>>, vector<256x128xbf16>
    %cst_23 = arith.constant dense<0.000000e+00> : vector<512x128xf32>
    %45 = tpu.matmul %43, %44, %cst_23 {dimension_numbers = #tpu.dot_dimension_numbers<[1], [0], [0], [1], [0, 0, 1, 1], [], []>} : vector<512x256xbf16>, vector<256x128xbf16>, vector<512x128xf32> -> vector<512x128xf32>
    %46 = arith.addf %24, %45 : vector<512x128xf32>
    %c0_24 = arith.constant 0 : index
    %c0_25 = arith.constant 0 : index
    %47 = vector.load %arg5[%c0_24, %c0_25] : memref<1x128xf32, #tpu.memory_space<vmem>>, vector<1x128xf32>
    %48 = vector.broadcast %47 : vector<1x128xf32> to vector<512x128xf32>
    %49 = arith.addf %46, %48 : vector<512x128xf32>
    %c0_26 = arith.constant 0 : index
    %c0_27 = arith.constant 0 : index
    %50 = vector.load %arg6[%c0_26, %c0_27] : memref<512x128xf32, #tpu.memory_space<vmem>>, vector<512x128xf32>
    tpu.vector_store %arg6[%c0_26, %c0_27], %49 {strides = array<i32>} : memref<512x128xf32, #tpu.memory_space<vmem>>, vector<512x128xf32>,
    return
  }
  func.func @transform_0(%arg0: i32) -> (i32, i32) {
    %c0_i32 = arith.constant 0 : i32
    %c0_i32_0 = arith.constant 0 : i32
    return %arg0, %c0_i32 : i32, i32
  }
  func.func @transform_1(%arg0: i32) -> (i32, i32) {
    %c0_i32 = arith.constant 0 : i32
    %c0_i32_0 = arith.constant 0 : i32
    %c0_i32_1 = arith.constant 0 : i32
    return %c0_i32, %c0_i32_0 : i32, i32
  }
  func.func @transform_2(%arg0: i32) -> (i32, i32) {
    %c0_i32 = arith.constant 0 : i32
    %c0_i32_0 = arith.constant 0 : i32
    %c0_i32_1 = arith.constant 0 : i32
    return %c0_i32, %c0_i32_0 : i32, i32
  }
  func.func @transform_3(%arg0: i32) -> (i32, i32) {
    %c0_i32 = arith.constant 0 : i32
    %c0_i32_0 = arith.constant 0 : i32
    %c0_i32_1 = arith.constant 0 : i32
    return %c0_i32, %c0_i32_0 : i32, i32
  }
  func.func @transform_4(%arg0: i32) -> (i32, i32) {
    %c0_i32 = arith.constant 0 : i32
    %c0_i32_0 = arith.constant 0 : i32
    %c0_i32_1 = arith.constant 0 : i32
    return %c0_i32, %c0_i32_0 : i32, i32
  }
  func.func @transform_5(%arg0: i32) -> (i32, i32) {
    %c0_i32 = arith.constant 0 : i32
    %c0_i32_0 = arith.constant 0 : i32
    return %arg0, %c0_i32 : i32, i32
  }
}

</mosaic_0001>

<llo_original>
// kernel: feed_forward.1
$region0: #{feed_forward.1}
  #allocation0 [shape = 'u32[]', space=smem, size = 0x4, offset = 0x4, fixed_abs, tag = 'smem constant byte address 0x4 - core index']
  #allocation1 [shape = 'u32[144,128]{1,0:T(1,128)}', space=vmem, size = 0x12000, scoped, tag = 'internal scratch']
  %s0 = inlined_call_operand.vmem [shape: f32[1024,128], index: 0, kind: input, shape index: {}]
  %s1 = inlined_call_operand.vmem [shape: bf16[128,512], index: 1, kind: input, shape index: {}]
  %s2 = inlined_call_operand.vmem [shape: f32[1,512], index: 2, kind: input, shape index: {}]
  %s3 = inlined_call_operand.vmem [shape: bf16[512,128], index: 3, kind: input, shape index: {}]
  %s4 = inlined_call_operand.vmem [shape: f32[1,128], index: 4, kind: input, shape index: {}]
  %s5 = inlined_call_operand.hbm [shape: f32[1024,128], index: 5, kind: output, shape index: {}]
  %s6 = sld [smem:[#allocation0]]
  $region53: #{feed_forward.1} parent=0
    _
  %s8 = ssub.s32 1, %s6
  %s9 = scalar_select 0, %s8, %s6
  $region1: #{feed_forward.1} parent=0
    #allocation2 [shape = 'u8[524288]{0}', space=vmem, size = 0x80000, scoped, tag = 'output window, operand 0']
    #allocation3 [shape = 's32[2]{0}', space=sflag, size = 0x8, scoped, tag = 'scoped memory for feed_forward.1']
    %10 = vsyncpa [#allocation3], 0
    %s11 = scalar_lea.sflag [#allocation3], 1
    %12 = vsyncpa %s11, 0
    loop: start=0, step=1, limit=4
    $region2: #{feed_forward.1} parent=1 // loop_pre_header
      _
    $region3: #{feed_forward.1} parent=1 // loop_header
      %s14 = sphi 0, %s18
      %p15 = scmp.ge.s32.totalorder %s14, 4
      %s24 = sphi 0, %s26
      %s27 = sphi 0, %s24
      %s28 = sphi 0, %s27
      %s44 = sphi 0, %s28
      %s48 = sphi 0, %s48
      %s50 = sphi 0, %s48
      %s51 = sphi 0, %s50
      %s65 = sphi 0, %s51
      %s69 = sphi 0, %s69
      %s71 = sphi 0, %s69
      %s72 = sphi 0, %s71
      %s86 = sphi 0, %s72
      %s90 = sphi 0, %s90
      %s92 = sphi 0, %s90
      %s93 = sphi 0, %s92
      %s107 = sphi 0, %s93
      %s111 = sphi 0, %s111
      %s113 = sphi 0, %s111
      %s114 = sphi 0, %s113
      %s128 = sphi 0, %s114
      %s134 = sphi 0, %s136
      %s137 = sphi 0, %s134
      %s138 = sphi 0, %s137
      %s154 = sphi 0, %s138
    $region4: #{feed_forward.1} parent=1 // loop_header_branch
      %17 = sbr.rel (%p15) target = $region8
    $region5: #{feed_forward.1} parent=1 // loop_body
      %s19 = ssub.s32 %s14, 1
      %s20 = ssub.s32 %s14, 2
      %s21 = sadd.s32 %s14, 1
      %s22 = ssub.s32 %s14, %s21
      %p23 = scmp.eq.s32.totalorder %s22, 0
      %s25 = sadd.s32 %s24, 1
      %s26 = scalar_select %p23, %s24, %s25
      %p29 = pneg %p23
      %p30 = scmp.eq.s32.totalorder %s14, 1
      %p31 = por %p29, %p30
      %p32 = scmp.ne.s32.totalorder %s24, %s27
      %p33 = scmp.eq.s32.totalorder %s14, 0
      %p34 = por %p32, %p33
      %p35 = scmp.ne.s32.totalorder %s24, %s27
      %p36 = scmp.eq.s32.totalorder %s19, 1
      %p37 = por %p35, %p36
      %p38 = scmp.ne.s32.totalorder %s27, %s28
      %p39 = scmp.eq.s32.totalorder %s19, 0
      %p40 = por %p38, %p39
      %p41 = scmp.ne.s32.totalorder %s27, %s28
      %p42 = scmp.eq.s32.totalorder %s20, 1
      %p43 = por %p41, %p42
      %p45 = scmp.ne.s32.totalorder %s28, %s44
      %p46 = scmp.eq.s32.totalorder %s20, 0
      %p47 = por %p45, %p46
      %s49 = sadd.s32 %s48, 1
      %p52 = scmp.eq.s32.totalorder %s14, 1
      %p53 = scmp.ne.s32.totalorder %s48, %s50
      %p54 = scmp.eq.s32.totalorder %s14, 0
      %p55 = por %p53, %p54
      %p56 = scmp.ne.s32.totalorder %s48, %s50
      %p57 = scmp.eq.s32.totalorder %s19, 1
      %p58 = por %p56, %p57
      %p59 = scmp.ne.s32.totalorder %s50, %s51
      %p60 = scmp.eq.s32.totalorder %s19, 0
      %p61 = por %p59, %p60
      %p62 = scmp.ne.s32.totalorder %s50, %s51
      %p63 = scmp.eq.s32.totalorder %s20, 1
      %p64 = por %p62, %p63
      %p66 = scmp.ne.s32.totalorder %s51, %s65
      %p67 = scmp.eq.s32.totalorder %s20, 0
      %p68 = por %p66, %p67
      %s70 = sadd.s32 %s69, 1
      %p73 = scmp.eq.s32.totalorder %s14, 1
      %p74 = scmp.ne.s32.totalorder %s69, %s71
      %p75 = scmp.eq.s32.totalorder %s14, 0
      %p76 = por %p74, %p75
      %p77 = scmp.ne.s32.totalorder %s69, %s71
      %p78 = scmp.eq.s32.totalorder %s19, 1
      %p79 = por %p77, %p78
      %p80 = scmp.ne.s32.totalorder %s71, %s72
      %p81 = scmp.eq.s32.totalorder %s19, 0
      %p82 = por %p80, %p81
      %p83 = scmp.ne.s32.totalorder %s71, %s72
      %p84 = scmp.eq.s32.totalorder %s20, 1
      %p85 = por %p83, %p84
      %p87 = scmp.ne.s32.totalorder %s72, %s86
      %p88 = scmp.eq.s32.totalorder %s20, 0
      %p89 = por %p87, %p88
      %s91 = sadd.s32 %s90, 1
      %p94 = scmp.eq.s32.totalorder %s14, 1
      %p95 = scmp.ne.s32.totalorder %s90, %s92
      %p96 = scmp.eq.s32.totalorder %s14, 0
      %p97 = por %p95, %p96
      %p98 = scmp.ne.s32.totalorder %s90, %s92
      %p99 = scmp.eq.s32.totalorder %s19, 1
      %p100 = por %p98, %p99
      %p101 = scmp.ne.s32.totalorder %s92, %s93
      %p102 = scmp.eq.s32.totalorder %s19, 0
      %p103 = por %p101, %p102
      %p104 = scmp.ne.s32.totalorder %s92, %s93
      %p105 = scmp.eq.s32.totalorder %s20, 1
      %p106 = por %p104, %p105
      %p108 = scmp.ne.s32.totalorder %s93, %s107
      %p109 = scmp.eq.s32.totalorder %s20, 0
      %p110 = por %p108, %p109
      %s112 = sadd.s32 %s111, 1
      %p115 = scmp.eq.s32.totalorder %s14, 1
      %p116 = scmp.ne.s32.totalorder %s111, %s113
      %p117 = scmp.eq.s32.totalorder %s14, 0
      %p118 = por %p116, %p117
      %p119 = scmp.ne.s32.totalorder %s111, %s113
      %p120 = scmp.eq.s32.totalorder %s19, 1
      %p121 = por %p119, %p120
      %p122 = scmp.ne.s32.totalorder %s113, %s114
      %p123 = scmp.eq.s32.totalorder %s19, 0
      %p124 = por %p122, %p123
      %p125 = scmp.ne.s32.totalorder %s113, %s114
      %p126 = scmp.eq.s32.totalorder %s20, 1
      %p127 = por %p125, %p126
      %p129 = scmp.ne.s32.totalorder %s114, %s128
      %p130 = scmp.eq.s32.totalorder %s20, 0
      %p131 = por %p129, %p130
      %s132 = ssub.s32 %s14, %s21
      %p133 = scmp.eq.s32.totalorder %s132, 0
      %s135 = sadd.s32 %s134, 1
      %s136 = scalar_select %p133, %s134, %s135
      %p139 = pneg %p133
      %p140 = scmp.eq.s32.totalorder %s14, 1
      %p141 = por %p139, %p140
      %p142 = scmp.ne.s32.totalorder %s134, %s137
      %p143 = scmp.eq.s32.totalorder %s14, 0
      %p144 = por %p142, %p143
      %p145 = scmp.ne.s32.totalorder %s134, %s137
      %p146 = scmp.eq.s32.totalorder %s19, 1
      %p147 = por %p145, %p146
      %p148 = scmp.ne.s32.totalorder %s137, %s138
      %p149 = scmp.eq.s32.totalorder %s19, 0
      %p150 = por %p148, %p149
      %p151 = scmp.ne.s32.totalorder %s137, %s138
      %p152 = scmp.eq.s32.totalorder %s20, 1
      %p153 = por %p151, %p152
      %p155 = scmp.ne.s32.totalorder %s138, %s154
      %p156 = scmp.eq.s32.totalorder %s20, 0
      %p157 = por %p155, %p156
      %p158 = scmp.le.s32.totalorder 1, %s14
      %p159 = scmp.lt.s32.totalorder %s14, 3
      %p160 = pnand %p158, %p159
      %p161 = pneg %p160
      // Predicated region
      $region9: #{feed_forward.1} parent=5 // pred_check
        _
      $region10: #{feed_forward.1} parent=5 // pred_check_branch
        %163 = sbr.rel (%p160) target = $region12
      $region11: #{feed_forward.1} parent=5 // pred_region
        %s164 = ssub.s32 %s14, 1
        // Predicated region
        $region13: #{feed_forward.1} parent=11 // pred_check
          %p165 = pneg %p61
        $region14: #{feed_forward.1} parent=11 // pred_check_branch
          %167 = sbr.rel (%p165) target = $region16
        $region15: #{feed_forward.1} parent=11 // pred_region
          _
        $region16: #{feed_forward.1} parent=11 // pred_fallthru
          _
        // Predicated region
        $region17: #{feed_forward.1} parent=11 // pred_check
          %p168 = pneg %p82
        $region18: #{feed_forward.1} parent=11 // pred_check_branch
          %170 = sbr.rel (%p168) target = $region20
        $region19: #{feed_forward.1} parent=11 // pred_region
          _
        $region20: #{feed_forward.1} parent=11 // pred_fallthru
          _
        // Predicated region
        $region21: #{feed_forward.1} parent=11 // pred_check
          %p171 = pneg %p103
        $region22: #{feed_forward.1} parent=11 // pred_check_branch
          %173 = sbr.rel (%p171) target = $region24
        $region23: #{feed_forward.1} parent=11 // pred_region
          _
        $region24: #{feed_forward.1} parent=11 // pred_fallthru
          _
        // Predicated region
        $region25: #{feed_forward.1} parent=11 // pred_check
          %p174 = pneg %p124
        $region26: #{feed_forward.1} parent=11 // pred_check_branch
          %176 = sbr.rel (%p174) target = $region28
        $region27: #{feed_forward.1} parent=11 // pred_region
          _
        $region28: #{feed_forward.1} parent=11 // pred_fallthru
          _
      $region12: #{feed_forward.1} parent=5 // pred_fallthru
        _
      %p177 = scmp.lt.s32.totalorder %s14, 2
      // Predicated region
      $region29: #{feed_forward.1} parent=5 // pred_check
        %p178 = pneg %p177
      $region30: #{feed_forward.1} parent=5 // pred_check_branch
        %180 = sbr.rel (%p178) target = $region32
      $region31: #{feed_forward.1} parent=5 // pred_region
        // Predicated region
        $region33: #{feed_forward.1} parent=31 // pred_check
          %p181 = pneg %p34
        $region34: #{feed_forward.1} parent=31 // pred_check_branch
          %183 = sbr.rel (%p181) target = $region36
        $region35: #{feed_forward.1} parent=31 // pred_region
          %s184 = smul.u32 64, %s14
          %p185 = scmp.lt.s32.totalorder %s184, 127
          %s186 = scalar_select %p185, %s184, 127
          %s187 = smul.addr %s186, 8
          %s188 = scalar_lea.vmem %s0, %s187
          %s189 = smul.u32 64, %s14
        $region36: #{feed_forward.1} parent=31 // pred_fallthru
          _
      $region32: #{feed_forward.1} parent=5 // pred_fallthru
        _
      %p190 = scmp.le.s32.totalorder 1, %s14
      %p191 = scmp.lt.s32.totalorder %s14, 3
      %p192 = pnand %p190, %p191
      %p193 = pneg %p192
      // Predicated region
      $region37: #{feed_forward.1} parent=5 // pred_check
        _
      $region38: #{feed_forward.1} parent=5 // pred_check_branch
        %195 = sbr.rel (%p192) target = $region40
      $region39: #{feed_forward.1} parent=5 // pred_region
        %s196 = ssub.s32 %s14, 1
        %s197 = smul.u32 64, %s19
        %p198 = scmp.lt.s32.totalorder %s197, 127
        %s199 = scalar_select %p198, %s197, 127
        %s200 = smul.addr %s199, 8
        %s201 = scalar_lea.vmem %s0, %s200
        %p202 = pneg %p40
        %p203 = pneg %p37
        %p204 = pneg %p61
        %p205 = pneg %p58
        %p206 = pneg %p82
        %p207 = pneg %p79
        %p208 = pneg %p103
        %p209 = pneg %p100
        %p210 = pneg %p124
        %p211 = pneg %p121
        %p212 = pneg %p150
        %p213 = pneg %p147
        %s214 = sand.u32 %s137, 1
        %s215 = scalar_lea.sflag [#allocation3], %s214
        %s216 = sand.u32 %s137, 1
        %s217 = smul.addr %s216, 512
        %s218 = scalar_lea.vmem [#allocation2], %s217
        %s219 = smul.u32 64, %s19
        %p220 = scmp.lt.s32.totalorder %s219, 127
        %s221 = scalar_select %p220, %s219, 127
        %s222 = smul.addr %s221, 8
        %s223 = scalar_lea.vmem %s0, %s222
        %s224 = smul.u32 64, %s19
        %s225 = smul.u32 64, %s19
        %v227 = vld [vmem:[%s223] sm:$0xff]
        %v228 = vld [vmem:[%s223 + $0x8] sm:$0xff]
        %v229 = vld [vmem:[%s223 + $0x10] sm:$0xff]
        %v230 = vld [vmem:[%s223 + $0x18] sm:$0xff]
        %v231 = vld [vmem:[%s223 + $0x20] sm:$0xff]
        %v232 = vld [vmem:[%s223 + $0x28] sm:$0xff]
        %v233 = vld [vmem:[%s223 + $0x30] sm:$0xff]
        %v234 = vld [vmem:[%s223 + $0x38] sm:$0xff]
        %v235 = vld [vmem:[%s223 + $0x40] sm:$0xff]
        %v236 = vld [vmem:[%s223 + $0x48] sm:$0xff]
        %v237 = vld [vmem:[%s223 + $0x50] sm:$0xff]
        %v238 = vld [vmem:[%s223 + $0x58] sm:$0xff]
        %v239 = vld [vmem:[%s223 + $0x60] sm:$0xff]
        %v240 = vld [vmem:[%s223 + $0x68] sm:$0xff]
        %v241 = vld [vmem:[%s223 + $0x70] sm:$0xff]
        %v242 = vld [vmem:[%s223 + $0x78] sm:$0xff]
        %v243 = vld [vmem:[%s223 + $0x80] sm:$0xff]
        %v244 = vld [vmem:[%s223 + $0x88] sm:$0xff]
        %v245 = vld [vmem:[%s223 + $0x90] sm:$0xff]
        %v246 = vld [vmem:[%s223 + $0x98] sm:$0xff]
        %v247 = vld [vmem:[%s223 + $0xa0] sm:$0xff]
        %v248 = vld [vmem:[%s223 + $0xa8] sm:$0xff]
        %v249 = vld [vmem:[%s223 + $0xb0] sm:$0xff]
        %v250 = vld [vmem:[%s223 + $0xb8] sm:$0xff]
        %v251 = vld [vmem:[%s223 + $0xc0] sm:$0xff]
        %v252 = vld [vmem:[%s223 + $0xc8] sm:$0xff]
        %v253 = vld [vmem:[%s223 + $0xd0] sm:$0xff]
        %v254 = vld [vmem:[%s223 + $0xd8] sm:$0xff]
        %v255 = vld [vmem:[%s223 + $0xe0] sm:$0xff]
        %v256 = vld [vmem:[%s223 + $0xe8] sm:$0xff]
        %v257 = vld [vmem:[%s223 + $0xf0] sm:$0xff]
        %v258 = vld [vmem:[%s223 + $0xf8] sm:$0xff]
        %v259 = vld [vmem:[%s223 + $0x100] sm:$0xff]
        %v260 = vld [vmem:[%s223 + $0x108] sm:$0xff]
        %v261 = vld [vmem:[%s223 + $0x110] sm:$0xff]
        %v262 = vld [vmem:[%s223 + $0x118] sm:$0xff]
        %v263 = vld [vmem:[%s223 + $0x120] sm:$0xff]
        %v264 = vld [vmem:[%s223 + $0x128] sm:$0xff]
        %v265 = vld [vmem:[%s223 + $0x130] sm:$0xff]
        %v266 = vld [vmem:[%s223 + $0x138] sm:$0xff]
        %v267 = vld [vmem:[%s223 + $0x140] sm:$0xff]
        %v268 = vld [vmem:[%s223 + $0x148] sm:$0xff]
        %v269 = vld [vmem:[%s223 + $0x150] sm:$0xff]
        %v270 = vld [vmem:[%s223 + $0x158] sm:$0xff]
        %v271 = vld [vmem:[%s223 + $0x160] sm:$0xff]
        %v272 = vld [vmem:[%s223 + $0x168] sm:$0xff]
        %v273 = vld [vmem:[%s223 + $0x170] sm:$0xff]
        %v274 = vld [vmem:[%s223 + $0x178] sm:$0xff]
        %v275 = vld [vmem:[%s223 + $0x180] sm:$0xff]
        %v276 = vld [vmem:[%s223 + $0x188] sm:$0xff]
        %v277 = vld [vmem:[%s223 + $0x190] sm:$0xff]
        %v278 = vld [vmem:[%s223 + $0x198] sm:$0xff]
        %v279 = vld [vmem:[%s223 + $0x1a0] sm:$0xff]
        %v280 = vld [vmem:[%s223 + $0x1a8] sm:$0xff]
        %v281 = vld [vmem:[%s223 + $0x1b0] sm:$0xff]
        %v282 = vld [vmem:[%s223 + $0x1b8] sm:$0xff]
        %v283 = vld [vmem:[%s223 + $0x1c0] sm:$0xff]
        %v284 = vld [vmem:[%s223 + $0x1c8] sm:$0xff]
        %v285 = vld [vmem:[%s223 + $0x1d0] sm:$0xff]
        %v286 = vld [vmem:[%s223 + $0x1d8] sm:$0xff]
        %v287 = vld [vmem:[%s223 + $0x1e0] sm:$0xff]
        %v288 = vld [vmem:[%s223 + $0x1e8] sm:$0xff]
        %v289 = vld [vmem:[%s223 + $0x1f0] sm:$0xff]
        %v290 = vld [vmem:[%s223 + $0x1f8] sm:$0xff]
        %v291 = vpack.c.bf16 %v228, %v227
        %v292 = vpack.c.bf16 %v230, %v229
        %v293 = vpack.c.bf16 %v232, %v231
        %v294 = vpack.c.bf16 %v234, %v233
        %v295 = vpack.c.bf16 %v236, %v235
        %v296 = vpack.c.bf16 %v238, %v237
        %v297 = vpack.c.bf16 %v240, %v239
        %v298 = vpack.c.bf16 %v242, %v241
        %v299 = vpack.c.bf16 %v244, %v243
        %v300 = vpack.c.bf16 %v246, %v245
        %v301 = vpack.c.bf16 %v248, %v247
        %v302 = vpack.c.bf16 %v250, %v249
        %v303 = vpack.c.bf16 %v252, %v251
        %v304 = vpack.c.bf16 %v254, %v253
        %v305 = vpack.c.bf16 %v256, %v255
        %v306 = vpack.c.bf16 %v258, %v257
        %v307 = vpack.c.bf16 %v260, %v259
        %v308 = vpack.c.bf16 %v262, %v261
        %v309 = vpack.c.bf16 %v264, %v263
        %v310 = vpack.c.bf16 %v266, %v265
        %v311 = vpack.c.bf16 %v268, %v267
        %v312 = vpack.c.bf16 %v270, %v269
        %v313 = vpack.c.bf16 %v272, %v271
        %v314 = vpack.c.bf16 %v274, %v273
        %v315 = vpack.c.bf16 %v276, %v275
        %v316 = vpack.c.bf16 %v278, %v277
        %v317 = vpack.c.bf16 %v280, %v279
        %v318 = vpack.c.bf16 %v282, %v281
        %v319 = vpack.c.bf16 %v284, %v283
        %v320 = vpack.c.bf16 %v286, %v285
        %v321 = vpack.c.bf16 %v288, %v287
        %v322 = vpack.c.bf16 %v290, %v289
        %v323 = vld [vmem:[%s1] sm:$0xff]
        %v324 = vld [vmem:[%s1 + $0x10] sm:$0xff]
        %v325 = vld [vmem:[%s1 + $0x20] sm:$0xff]
        %v326 = vld [vmem:[%s1 + $0x30] sm:$0xff]
        %v327 = vld [vmem:[%s1 + $0x40] sm:$0xff]
        %v328 = vld [vmem:[%s1 + $0x50] sm:$0xff]
        %v329 = vld [vmem:[%s1 + $0x60] sm:$0xff]
        %v330 = vld [vmem:[%s1 + $0x70] sm:$0xff]
        %v331 = vld [vmem:[%s1 + $0x80] sm:$0xff]
        %v332 = vld [vmem:[%s1 + $0x90] sm:$0xff]
        %v333 = vld [vmem:[%s1 + $0xa0] sm:$0xff]
        %v334 = vld [vmem:[%s1 + $0xb0] sm:$0xff]
        %v335 = vld [vmem:[%s1 + $0xc0] sm:$0xff]
        %v336 = vld [vmem:[%s1 + $0xd0] sm:$0xff]
        %v337 = vld [vmem:[%s1 + $0xe0] sm:$0xff]
        %v338 = vld [vmem:[%s1 + $0xf0] sm:$0xff]
        %v339 = vld [vmem:[%s2] sm:$0x3]
        %v341 = vlaneseq
        %v342 = vshrl.u32 %v341, 7
        %v343 = vsub.s32 0, %v342
        %v344 = vrot.slane %v339, %v343
        %v345 = vlaneseq
        %v346 = vshrl.u32 %v345, 7
        %v347 = vsub.s32 1, %v346
        %v348 = vrot.slane %v339, %v347
        %v367 = vunpack.c.l.b16 %v323
        %v368 = vunpack.c.h.b16 %v323
        %v369 = vunpack.c.l.b16 %v324
        %v370 = vunpack.c.h.b16 %v324
        %v371 = vunpack.c.l.b16 %v325
        %v372 = vunpack.c.h.b16 %v325
        %v373 = vunpack.c.l.b16 %v326
        %v374 = vunpack.c.h.b16 %v326
        %v375 = vunpack.c.l.b16 %v327
        %v376 = vunpack.c.h.b16 %v327
        %v377 = vunpack.c.l.b16 %v328
        %v378 = vunpack.c.h.b16 %v328
        %v379 = vunpack.c.l.b16 %v329
        %v380 = vunpack.c.h.b16 %v329
        %v381 = vunpack.c.l.b16 %v330
        %v382 = vunpack.c.h.b16 %v330
        %v383 = vunpack.c.l.b16 %v331
        %v384 = vunpack.c.h.b16 %v331
        %v385 = vunpack.c.l.b16 %v332
        %v386 = vunpack.c.h.b16 %v332
        %v387 = vunpack.c.l.b16 %v333
        %v388 = vunpack.c.h.b16 %v333
        %v389 = vunpack.c.l.b16 %v334
        %v390 = vunpack.c.h.b16 %v334
        %v391 = vunpack.c.l.b16 %v335
        %v392 = vunpack.c.h.b16 %v335
        %v393 = vunpack.c.l.b16 %v336
        %v394 = vunpack.c.h.b16 %v336
        %v395 = vunpack.c.l.b16 %v337
        %v396 = vunpack.c.h.b16 %v337
        %v397 = vunpack.c.l.b16 %v338
        %v398 = vunpack.c.h.b16 %v338
        %v399 = vpack.c.b16 %v369, %v367
        %v400 = vpack.c.b16 %v370, %v368
        %v401 = vpack.c.b16 %v373, %v371
        %v402 = vpack.c.b16 %v374, %v372
        %v403 = vpack.c.b16 %v377, %v375
        %v404 = vpack.c.b16 %v378, %v376
        %v405 = vpack.c.b16 %v381, %v379
        %v406 = vpack.c.b16 %v382, %v380
        %v407 = vpack.c.b16 %v385, %v383
        %v408 = vpack.c.b16 %v386, %v384
        %v409 = vpack.c.b16 %v389, %v387
        %v410 = vpack.c.b16 %v390, %v388
        %v411 = vpack.c.b16 %v393, %v391
        %v412 = vpack.c.b16 %v394, %v392
        %v413 = vpack.c.b16 %v397, %v395
        %v414 = vpack.c.b16 %v398, %v396
        %431 = vmatprep.subr.bf16.mxu0 %v414
        %432 = vmatpush1.bf16.msra.mxu0 %v413
        %433 = vmatprep.subr.bf16.mxu0 %v412
        %434 = vmatpush1.bf16.msra.mxu0 %v411
        %435 = vmatprep.subr.bf16.mxu0 %v410
        %436 = vmatpush1.bf16.msra.mxu0 %v409
        %437 = vmatprep.subr.bf16.mxu0 %v408
        %438 = vmatpush1.bf16.msra.mxu0 %v407
        %439 = vmatprep.subr.bf16.mxu0 %v406
        %440 = vmatpush1.bf16.msra.mxu0 %v405
        %441 = vmatprep.subr.bf16.mxu0 %v404
        %442 = vmatpush1.bf16.msra.mxu0 %v403
        %443 = vmatprep.subr.bf16.mxu0 %v402
        %444 = vmatpush1.bf16.msra.mxu0 %v401
        %445 = vmatprep.subr.bf16.mxu0 %v400
        %446 = vmatpush1.bf16.msra.mxu0 %v399
        %447 = vmatprep.subr.bf16.mxu0 0
        %448 = vmatpush2.bf16.msra.mxu0 0
        %449 = vmatprep.subr.bf16.mxu0 0
        %450 = vmatpush2.bf16.msra.mxu0 0
        %451 = vmatprep.subr.bf16.mxu0 0
        %452 = vmatpush2.bf16.msra.mxu0 0
        %453 = vmatprep.subr.bf16.mxu0 0
        %454 = vmatpush2.bf16.msra.mxu0 0
        %455 = vmatprep.subr.bf16.mxu0 0
        %456 = vmatpush2.bf16.msra.mxu0 0
        %457 = vmatprep.subr.bf16.mxu0 0
        %458 = vmatpush2.bf16.msra.mxu0 0
        %459 = vmatprep.subr.bf16.mxu0 0
        %460 = vmatpush2.bf16.msra.mxu0 0
        %461 = vmatprep.subr.bf16.mxu0 0
        %462 = vmatpush2.bf16.msra.mxu0 0
        %463 = vmatprep.mubr.bf16.mxu0 0
        %464 = vmatmul.mubr.bf16.gmra.mxu0 %v291
        %v465 = vpop.f32.mrf.mxu0
        %v466 = vadd.f32 %v344, %v465
        %v467 = vpop.f32.mrf.mxu0
        %v468 = vadd.f32 %v348, %v467
        %v469 = vpop.f32.mrf.mxu0
        %v470 = vadd.f32 %v344, %v469
        %v471 = vpop.f32.mrf.mxu0
        %v472 = vadd.f32 %v348, %v471
        %473 = vmatprep.mubr.bf16.mxu0 0
        %474 = vmatmul.mubr.bf16.gmra.mxu0 %v292
        %v475 = vpop.f32.mrf.mxu0
        %v476 = vadd.f32 %v344, %v475
        %v477 = vpop.f32.mrf.mxu0
        %v478 = vadd.f32 %v348, %v477
        %v479 = vpop.f32.mrf.mxu0
        %v480 = vadd.f32 %v344, %v479
        %v481 = vpop.f32.mrf.mxu0
        %v482 = vadd.f32 %v348, %v481
        %483 = vmatprep.mubr.bf16.mxu0 0
        %484 = vmatmul.mubr.bf16.gmra.mxu0 %v293
        %v485 = vpop.f32.mrf.mxu0
        %v486 = vadd.f32 %v344, %v485
        %v487 = vpop.f32.mrf.mxu0
        %v488 = vadd.f32 %v348, %v487
        %v489 = vpop.f32.mrf.mxu0
        %v490 = vadd.f32 %v344, %v489
        %v491 = vpop.f32.mrf.mxu0
        %v492 = vadd.f32 %v348, %v491
        %493 = vmatprep.mubr.bf16.mxu0 0
        %494 = vmatmul.mubr.bf16.gmra.mxu0 %v294
        %v495 = vpop.f32.mrf.mxu0
        %v496 = vadd.f32 %v344, %v495
        %v497 = vpop.f32.mrf.mxu0
        %v498 = vadd.f32 %v348, %v497
        %v499 = vpop.f32.mrf.mxu0
        %v500 = vadd.f32 %v344, %v499
        %v501 = vpop.f32.mrf.mxu0
        %v502 = vadd.f32 %v348, %v501
        %503 = vmatprep.mubr.bf16.mxu0 0
        %504 = vmatmul.mubr.bf16.gmra.mxu0 %v295
        %v505 = vpop.f32.mrf.mxu0
        %v506 = vadd.f32 %v344, %v505
        %v507 = vpop.f32.mrf.mxu0
        %v508 = vadd.f32 %v348, %v507
        %v509 = vpop.f32.mrf.mxu0
        %v510 = vadd.f32 %v344, %v509
        %v511 = vpop.f32.mrf.mxu0
        %v512 = vadd.f32 %v348, %v511
        %513 = vmatprep.mubr.bf16.mxu0 0
        %514 = vmatmul.mubr.bf16.gmra.mxu0 %v296
        %v515 = vpop.f32.mrf.mxu0
        %v516 = vadd.f32 %v344, %v515
        %v517 = vpop.f32.mrf.mxu0
        %v518 = vadd.f32 %v348, %v517
        %v519 = vpop.f32.mrf.mxu0
        %v520 = vadd.f32 %v344, %v519
        %v521 = vpop.f32.mrf.mxu0
        %v522 = vadd.f32 %v348, %v521
        %523 = vmatprep.mubr.bf16.mxu0 0
        %524 = vmatmul.mubr.bf16.gmra.mxu0 %v297
        %v525 = vpop.f32.mrf.mxu0
        %v526 = vadd.f32 %v344, %v525
        %v527 = vpop.f32.mrf.mxu0
        %v528 = vadd.f32 %v348, %v527
        %v529 = vpop.f32.mrf.mxu0
        %v530 = vadd.f32 %v344, %v529
        %v531 = vpop.f32.mrf.mxu0
        %v532 = vadd.f32 %v348, %v531
        %533 = vmatprep.mubr.bf16.mxu0 0
        %534 = vmatmul.mubr.bf16.gmra.mxu0 %v298
        %v535 = vpop.f32.mrf.mxu0
        %v536 = vadd.f32 %v344, %v535
        %v537 = vpop.f32.mrf.mxu0
        %v538 = vadd.f32 %v348, %v537
        %v539 = vpop.f32.mrf.mxu0
        %v540 = vadd.f32 %v344, %v539
        %v541 = vpop.f32.mrf.mxu0
        %v542 = vadd.f32 %v348, %v541
        %543 = vmatprep.mubr.bf16.mxu0 0
        %544 = vmatmul.mubr.bf16.gmra.mxu0 %v299
        %v545 = vpop.f32.mrf.mxu0
        %v546 = vadd.f32 %v344, %v545
        %v547 = vpop.f32.mrf.mxu0
        %v548 = vadd.f32 %v348, %v547
        %v549 = vpop.f32.mrf.mxu0
        %v550 = vadd.f32 %v344, %v549
        %v551 = vpop.f32.mrf.mxu0
        %v552 = vadd.f32 %v348, %v551
        %553 = vmatprep.mubr.bf16.mxu0 0
        %554 = vmatmul.mubr.bf16.gmra.mxu0 %v300
        %v555 = vpop.f32.mrf.mxu0
        %v556 = vadd.f32 %v344, %v555
        %v557 = vpop.f32.mrf.mxu0
        %v558 = vadd.f32 %v348, %v557
        %v559 = vpop.f32.mrf.mxu0
        %v560 = vadd.f32 %v344, %v559
        %v561 = vpop.f32.mrf.mxu0
        %v562 = vadd.f32 %v348, %v561
        %563 = vmatprep.mubr.bf16.mxu0 0
        %564 = vmatmul.mubr.bf16.gmra.mxu0 %v301
        %v565 = vpop.f32.mrf.mxu0
        %v566 = vadd.f32 %v344, %v565
        %v567 = vpop.f32.mrf.mxu0
        %v568 = vadd.f32 %v348, %v567
        %v569 = vpop.f32.mrf.mxu0
        %v570 = vadd.f32 %v344, %v569
        %v571 = vpop.f32.mrf.mxu0
        %v572 = vadd.f32 %v348, %v571
        %573 = vmatprep.mubr.bf16.mxu0 0
        %574 = vmatmul.mubr.bf16.gmra.mxu0 %v302
        %v575 = vpop.f32.mrf.mxu0
        %v576 = vadd.f32 %v344, %v575
        %v577 = vpop.f32.mrf.mxu0
        %v578 = vadd.f32 %v348, %v577
        %v579 = vpop.f32.mrf.mxu0
        %v580 = vadd.f32 %v344, %v579
        %v581 = vpop.f32.mrf.mxu0
        %v582 = vadd.f32 %v348, %v581
        %583 = vmatprep.mubr.bf16.mxu0 0
        %584 = vmatmul.mubr.bf16.gmra.mxu0 %v303
        %v585 = vpop.f32.mrf.mxu0
        %v586 = vadd.f32 %v344, %v585
        %v587 = vpop.f32.mrf.mxu0
        %v588 = vadd.f32 %v348, %v587
        %v589 = vpop.f32.mrf.mxu0
        %v590 = vadd.f32 %v344, %v589
        %v591 = vpop.f32.mrf.mxu0
        %v592 = vadd.f32 %v348, %v591
        %593 = vmatprep.mubr.bf16.mxu0 0
        %594 = vmatmul.mubr.bf16.gmra.mxu0 %v304
        %v595 = vpop.f32.mrf.mxu0
        %v596 = vadd.f32 %v344, %v595
        %v597 = vpop.f32.mrf.mxu0
        %v598 = vadd.f32 %v348, %v597
        %v599 = vpop.f32.mrf.mxu0
        %v600 = vadd.f32 %v344, %v599
        %v601 = vpop.f32.mrf.mxu0
        %v602 = vadd.f32 %v348, %v601
        %603 = vmatprep.mubr.bf16.mxu0 0
        %604 = vmatmul.mubr.bf16.gmra.mxu0 %v305
        %v605 = vpop.f32.mrf.mxu0
        %v606 = vadd.f32 %v344, %v605
        %v607 = vpop.f32.mrf.mxu0
        %v608 = vadd.f32 %v348, %v607
        %v609 = vpop.f32.mrf.mxu0
        %v610 = vadd.f32 %v344, %v609
        %v611 = vpop.f32.mrf.mxu0
        %v612 = vadd.f32 %v348, %v611
        %613 = vmatprep.mubr.bf16.mxu0 0
        %614 = vmatmul.mubr.bf16.gmra.mxu0 %v306
        %v615 = vpop.f32.mrf.mxu0
        %v616 = vadd.f32 %v344, %v615
        %v617 = vpop.f32.mrf.mxu0
        %v618 = vadd.f32 %v348, %v617
        %v619 = vpop.f32.mrf.mxu0
        %v620 = vadd.f32 %v344, %v619
        %v621 = vpop.f32.mrf.mxu0
        %v622 = vadd.f32 %v348, %v621
        %623 = vmatprep.mubr.bf16.mxu0 0
        %624 = vmatmul.mubr.bf16.gmra.mxu0 %v307
        %v625 = vpop.f32.mrf.mxu0
        %v626 = vadd.f32 %v344, %v625
        %v627 = vpop.f32.mrf.mxu0
        %v628 = vadd.f32 %v348, %v627
        %v629 = vpop.f32.mrf.mxu0
        %v630 = vadd.f32 %v344, %v629
        %v631 = vpop.f32.mrf.mxu0
        %v632 = vadd.f32 %v348, %v631
        %633 = vmatprep.mubr.bf16.mxu0 0
        %634 = vmatmul.mubr.bf16.gmra.mxu0 %v308
        %v635 = vpop.f32.mrf.mxu0
        %v636 = vadd.f32 %v344, %v635
        %v637 = vpop.f32.mrf.mxu0
        %v638 = vadd.f32 %v348, %v637
        %v639 = vpop.f32.mrf.mxu0
        %v640 = vadd.f32 %v344, %v639
        %v641 = vpop.f32.mrf.mxu0
        %v642 = vadd.f32 %v348, %v641
        %643 = vmatprep.mubr.bf16.mxu0 0
        %644 = vmatmul.mubr.bf16.gmra.mxu0 %v309
        %v645 = vpop.f32.mrf.mxu0
        %v646 = vadd.f32 %v344, %v645
        %v647 = vpop.f32.mrf.mxu0
        %v648 = vadd.f32 %v348, %v647
        %v649 = vpop.f32.mrf.mxu0
        %v650 = vadd.f32 %v344, %v649
        %v651 = vpop.f32.mrf.mxu0
        %v652 = vadd.f32 %v348, %v651
        %653 = vmatprep.mubr.bf16.mxu0 0
        %654 = vmatmul.mubr.bf16.gmra.mxu0 %v310
        %v655 = vpop.f32.mrf.mxu0
        %v656 = vadd.f32 %v344, %v655
        %v657 = vpop.f32.mrf.mxu0
        %v658 = vadd.f32 %v348, %v657
        %v659 = vpop.f32.mrf.mxu0
        %v660 = vadd.f32 %v344, %v659
        %v661 = vpop.f32.mrf.mxu0
        %v662 = vadd.f32 %v348, %v661
        %663 = vmatprep.mubr.bf16.mxu0 0
        %664 = vmatmul.mubr.bf16.gmra.mxu0 %v311
        %v665 = vpop.f32.mrf.mxu0
        %v666 = vadd.f32 %v344, %v665
        %v667 = vpop.f32.mrf.mxu0
        %v668 = vadd.f32 %v348, %v667
        %v669 = vpop.f32.mrf.mxu0
        %v670 = vadd.f32 %v344, %v669
        %v671 = vpop.f32.mrf.mxu0
        %v672 = vadd.f32 %v348, %v671
        %673 = vmatprep.mubr.bf16.mxu0 0
        %674 = vmatmul.mubr.bf16.gmra.mxu0 %v312
        %v675 = vpop.f32.mrf.mxu0
        %v676 = vadd.f32 %v344, %v675
        %v677 = vpop.f32.mrf.mxu0
        %v678 = vadd.f32 %v348, %v677
        %v679 = vpop.f32.mrf.mxu0
        %v680 = vadd.f32 %v344, %v679
        %v681 = vpop.f32.mrf.mxu0
        %v682 = vadd.f32 %v348, %v681
        %683 = vmatprep.mubr.bf16.mxu0 0
        %684 = vmatmul.mubr.bf16.gmra.mxu0 %v313
        %v685 = vpop.f32.mrf.mxu0
        %v686 = vadd.f32 %v344, %v685
        %v687 = vpop.f32.mrf.mxu0
        %v688 = vadd.f32 %v348, %v687
        %v689 = vpop.f32.mrf.mxu0
        %v690 = vadd.f32 %v344, %v689
        %v691 = vpop.f32.mrf.mxu0
        %v692 = vadd.f32 %v348, %v691
        %693 = vmatprep.mubr.bf16.mxu0 0
        %694 = vmatmul.mubr.bf16.gmra.mxu0 %v314
        %v695 = vpop.f32.mrf.mxu0
        %v696 = vadd.f32 %v344, %v695
        %v697 = vpop.f32.mrf.mxu0
        %v698 = vadd.f32 %v348, %v697
        %v699 = vpop.f32.mrf.mxu0
        %v700 = vadd.f32 %v344, %v699
        %v701 = vpop.f32.mrf.mxu0
        %v702 = vadd.f32 %v348, %v701
        %703 = vmatprep.mubr.bf16.mxu0 0
        %704 = vmatmul.mubr.bf16.gmra.mxu0 %v315
        %v705 = vpop.f32.mrf.mxu0
        %v706 = vadd.f32 %v344, %v705
        %v707 = vpop.f32.mrf.mxu0
        %v708 = vadd.f32 %v348, %v707
        %v709 = vpop.f32.mrf.mxu0
        %v710 = vadd.f32 %v344, %v709
        %v711 = vpop.f32.mrf.mxu0
        %v712 = vadd.f32 %v348, %v711
        %713 = vmatprep.mubr.bf16.mxu0 0
        %714 = vmatmul.mubr.bf16.gmra.mxu0 %v316
        %v715 = vpop.f32.mrf.mxu0
        %v716 = vadd.f32 %v344, %v715
        %v717 = vpop.f32.mrf.mxu0
        %v718 = vadd.f32 %v348, %v717
        %v719 = vpop.f32.mrf.mxu0
        %v720 = vadd.f32 %v344, %v719
        %v721 = vpop.f32.mrf.mxu0
        %v722 = vadd.f32 %v348, %v721
        %723 = vmatprep.mubr.bf16.mxu0 0
        %724 = vmatmul.mubr.bf16.gmra.mxu0 %v317
        %v725 = vpop.f32.mrf.mxu0
        %v726 = vadd.f32 %v344, %v725
        %v727 = vpop.f32.mrf.mxu0
        %v728 = vadd.f32 %v348, %v727
        %v729 = vpop.f32.mrf.mxu0
        %v730 = vadd.f32 %v344, %v729
        %v731 = vpop.f32.mrf.mxu0
        %v732 = vadd.f32 %v348, %v731
        %733 = vmatprep.mubr.bf16.mxu0 0
        %734 = vmatmul.mubr.bf16.gmra.mxu0 %v318
        %v735 = vpop.f32.mrf.mxu0
        %v736 = vadd.f32 %v344, %v735
        %v737 = vpop.f32.mrf.mxu0
        %v738 = vadd.f32 %v348, %v737
        %v739 = vpop.f32.mrf.mxu0
        %v740 = vadd.f32 %v344, %v739
        %v741 = vpop.f32.mrf.mxu0
        %v742 = vadd.f32 %v348, %v741
        %743 = vmatprep.mubr.bf16.mxu0 0
        %744 = vmatmul.mubr.bf16.gmra.mxu0 %v319
        %v745 = vpop.f32.mrf.mxu0
        %v746 = vadd.f32 %v344, %v745
        %v747 = vpop.f32.mrf.mxu0
        %v748 = vadd.f32 %v348, %v747
        %v749 = vpop.f32.mrf.mxu0
        %v750 = vadd.f32 %v344, %v749
        %v751 = vpop.f32.mrf.mxu0
        %v752 = vadd.f32 %v348, %v751
        %753 = vmatprep.mubr.bf16.mxu0 0
        %754 = vmatmul.mubr.bf16.gmra.mxu0 %v320
        %v755 = vpop.f32.mrf.mxu0
        %v756 = vadd.f32 %v344, %v755
        %v757 = vpop.f32.mrf.mxu0
        %v758 = vadd.f32 %v348, %v757
        %v759 = vpop.f32.mrf.mxu0
        %v760 = vadd.f32 %v344, %v759
        %v761 = vpop.f32.mrf.mxu0
        %v762 = vadd.f32 %v348, %v761
        %763 = vmatprep.mubr.bf16.mxu0 0
        %764 = vmatmul.mubr.bf16.gmra.mxu0 %v321
        %v765 = vpop.f32.mrf.mxu0
        %v766 = vadd.f32 %v344, %v765
        %v767 = vpop.f32.mrf.mxu0
        %v768 = vadd.f32 %v348, %v767
        %v769 = vpop.f32.mrf.mxu0
        %v770 = vadd.f32 %v344, %v769
        %v771 = vpop.f32.mrf.mxu0
        %v772 = vadd.f32 %v348, %v771
        %773 = vmatprep.mubr.bf16.mxu0 0
        %774 = vmatmul.mubr.bf16.gmra.mxu0 %v322
        %v775 = vpop.f32.mrf.mxu0
        %v776 = vadd.f32 %v344, %v775
        %v777 = vpop.f32.mrf.mxu0
        %v778 = vadd.f32 %v348, %v777
        %v779 = vpop.f32.mrf.mxu0
        %v780 = vadd.f32 %v344, %v779
        %v781 = vpop.f32.mrf.mxu0
        %v782 = vadd.f32 %v348, %v781
        %783 = vdwg.mxu0
        %v784 = vmul.f32 %v466, 0.5
        %v785 = vmul.f32 %v468, 0.5
        %v786 = vmul.f32 %v470, 0.5
        %v787 = vmul.f32 %v472, 0.5
        %v788 = vmul.f32 %v476, 0.5
        %v789 = vmul.f32 %v478, 0.5
        %v790 = vmul.f32 %v480, 0.5
        %v791 = vmul.f32 %v482, 0.5
        %v792 = vmul.f32 %v486, 0.5
        %v793 = vmul.f32 %v488, 0.5
        %v794 = vmul.f32 %v490, 0.5
        %v795 = vmul.f32 %v492, 0.5
        %v796 = vmul.f32 %v496, 0.5
        %v797 = vmul.f32 %v498, 0.5
        %v798 = vmul.f32 %v500, 0.5
        %v799 = vmul.f32 %v502, 0.5
        %v800 = vmul.f32 %v506, 0.5
        %v801 = vmul.f32 %v508, 0.5
        %v802 = vmul.f32 %v510, 0.5
        %v803 = vmul.f32 %v512, 0.5
        %v804 = vmul.f32 %v516, 0.5
        %v805 = vmul.f32 %v518, 0.5
        %v806 = vmul.f32 %v520, 0.5
        %v807 = vmul.f32 %v522, 0.5
        %v808 = vmul.f32 %v526, 0.5
        %v809 = vmul.f32 %v528, 0.5
        %v810 = vmul.f32 %v530, 0.5
        %v811 = vmul.f32 %v532, 0.5
        %v812 = vmul.f32 %v536, 0.5
        %v813 = vmul.f32 %v538, 0.5
        %v814 = vmul.f32 %v540, 0.5
        %v815 = vmul.f32 %v542, 0.5
        %v816 = vmul.f32 %v546, 0.5
        %v817 = vmul.f32 %v548, 0.5
        %v818 = vmul.f32 %v550, 0.5
        %v819 = vmul.f32 %v552, 0.5
        %v820 = vmul.f32 %v556, 0.5
        %v821 = vmul.f32 %v558, 0.5
        %v822 = vmul.f32 %v560, 0.5
        %v823 = vmul.f32 %v562, 0.5
        %v824 = vmul.f32 %v566, 0.5
        %v825 = vmul.f32 %v568, 0.5
        %v826 = vmul.f32 %v570, 0.5
        %v827 = vmul.f32 %v572, 0.5
        %v828 = vmul.f32 %v576, 0.5
        %v829 = vmul.f32 %v578, 0.5
        %v830 = vmul.f32 %v580, 0.5
        %v831 = vmul.f32 %v582, 0.5
        %v832 = vmul.f32 %v586, 0.5
        %v833 = vmul.f32 %v588, 0.5
        %v834 = vmul.f32 %v590, 0.5
        %v835 = vmul.f32 %v592, 0.5
        %v836 = vmul.f32 %v596, 0.5
        %v837 = vmul.f32 %v598, 0.5
        %v838 = vmul.f32 %v600, 0.5
        %v839 = vmul.f32 %v602, 0.5
        %v840 = vmul.f32 %v606, 0.5
        %v841 = vmul.f32 %v608, 0.5
        %v842 = vmul.f32 %v610, 0.5
        %v843 = vmul.f32 %v612, 0.5
        %v844 = vmul.f32 %v616, 0.5
        %v845 = vmul.f32 %v618, 0.5
        %v846 = vmul.f32 %v620, 0.5
        %v847 = vmul.f32 %v622, 0.5
        %v848 = vmul.f32 %v626, 0.5
        %v849 = vmul.f32 %v628, 0.5
        %v850 = vmul.f32 %v630, 0.5
        %v851 = vmul.f32 %v632, 0.5
        %v852 = vmul.f32 %v636, 0.5
        %v853 = vmul.f32 %v638, 0.5
        %v854 = vmul.f32 %v640, 0.5
        %v855 = vmul.f32 %v642, 0.5
        %v856 = vmul.f32 %v646, 0.5
        %v857 = vmul.f32 %v648, 0.5
        %v858 = vmul.f32 %v650, 0.5
        %v859 = vmul.f32 %v652, 0.5
        %v860 = vmul.f32 %v656, 0.5
        %v861 = vmul.f32 %v658, 0.5
        %v862 = vmul.f32 %v660, 0.5
        %v863 = vmul.f32 %v662, 0.5
        %v864 = vmul.f32 %v666, 0.5
        %v865 = vmul.f32 %v668, 0.5
        %v866 = vmul.f32 %v670, 0.5
        %v867 = vmul.f32 %v672, 0.5
        %v868 = vmul.f32 %v676, 0.5
        %v869 = vmul.f32 %v678, 0.5
        %v870 = vmul.f32 %v680, 0.5
        %v871 = vmul.f32 %v682, 0.5
        %v872 = vmul.f32 %v686, 0.5
        %v873 = vmul.f32 %v688, 0.5
        %v874 = vmul.f32 %v690, 0.5
        %v875 = vmul.f32 %v692, 0.5
        %v876 = vmul.f32 %v696, 0.5
        %v877 = vmul.f32 %v698, 0.5
        %v878 = vmul.f32 %v700, 0.5
        %v879 = vmul.f32 %v702, 0.5
        %v880 = vmul.f32 %v706, 0.5
        %v881 = vmul.f32 %v708, 0.5
        %v882 = vmul.f32 %v710, 0.5
        %v883 = vmul.f32 %v712, 0.5
        %v884 = vmul.f32 %v716, 0.5
        %v885 = vmul.f32 %v718, 0.5
        %v886 = vmul.f32 %v720, 0.5
        %v887 = vmul.f32 %v722, 0.5
        %v888 = vmul.f32 %v726, 0.5
        %v889 = vmul.f32 %v728, 0.5
        %v890 = vmul.f32 %v730, 0.5
        %v891 = vmul.f32 %v732, 0.5
        %v892 = vmul.f32 %v736, 0.5
        %v893 = vmul.f32 %v738, 0.5
        %v894 = vmul.f32 %v740, 0.5
        %v895 = vmul.f32 %v742, 0.5
        %v896 = vmul.f32 %v746, 0.5
        %v897 = vmul.f32 %v748, 0.5
        %v898 = vmul.f32 %v750, 0.5
        %v899 = vmul.f32 %v752, 0.5
        %v900 = vmul.f32 %v756, 0.5
        %v901 = vmul.f32 %v758, 0.5
        %v902 = vmul.f32 %v760, 0.5
        %v903 = vmul.f32 %v762, 0.5
        %v904 = vmul.f32 %v766, 0.5
        %v905 = vmul.f32 %v768, 0.5
        %v906 = vmul.f32 %v770, 0.5
        %v907 = vmul.f32 %v772, 0.5
        %v908 = vmul.f32 %v776, 0.5
        %v909 = vmul.f32 %v778, 0.5
        %v910 = vmul.f32 %v780, 0.5
        %v911 = vmul.f32 %v782, 0.5
        %v912 = vmul.f32 %v466, 0.044715
        %v913 = vmul.f32 %v468, 0.044715
        %v914 = vmul.f32 %v470, 0.044715
        %v915 = vmul.f32 %v472, 0.044715
        %v916 = vmul.f32 %v476, 0.044715
        %v917 = vmul.f32 %v478, 0.044715
        %v918 = vmul.f32 %v480, 0.044715
        %v919 = vmul.f32 %v482, 0.044715
        %v920 = vmul.f32 %v486, 0.044715
        %v921 = vmul.f32 %v488, 0.044715
        %v922 = vmul.f32 %v490, 0.044715
        %v923 = vmul.f32 %v492, 0.044715
        %v924 = vmul.f32 %v496, 0.044715
        %v925 = vmul.f32 %v498, 0.044715
        %v926 = vmul.f32 %v500, 0.044715
        %v927 = vmul.f32 %v502, 0.044715
        %v928 = vmul.f32 %v506, 0.044715
        %v929 = vmul.f32 %v508, 0.044715
        %v930 = vmul.f32 %v510, 0.044715
        %v931 = vmul.f32 %v512, 0.044715
        %v932 = vmul.f32 %v516, 0.044715
        %v933 = vmul.f32 %v518, 0.044715
        %v934 = vmul.f32 %v520, 0.044715
        %v935 = vmul.f32 %v522, 0.044715
        %v936 = vmul.f32 %v526, 0.044715
        %v937 = vmul.f32 %v528, 0.044715
        %v938 = vmul.f32 %v530, 0.044715
        %v939 = vmul.f32 %v532, 0.044715
        %v940 = vmul.f32 %v536, 0.044715
        %v941 = vmul.f32 %v538, 0.044715
        %v942 = vmul.f32 %v540, 0.044715
        %v943 = vmul.f32 %v542, 0.044715
        %v944 = vmul.f32 %v546, 0.044715
        %v945 = vmul.f32 %v548, 0.044715
        %v946 = vmul.f32 %v550, 0.044715
        %v947 = vmul.f32 %v552, 0.044715
        %v948 = vmul.f32 %v556, 0.044715
        %v949 = vmul.f32 %v558, 0.044715
        %v950 = vmul.f32 %v560, 0.044715
        %v951 = vmul.f32 %v562, 0.044715
        %v952 = vmul.f32 %v566, 0.044715
        %v953 = vmul.f32 %v568, 0.044715
        %v954 = vmul.f32 %v570, 0.044715
        %v955 = vmul.f32 %v572, 0.044715
        %v956 = vmul.f32 %v576, 0.044715
        %v957 = vmul.f32 %v578, 0.044715
        %v958 = vmul.f32 %v580, 0.044715
        %v959 = vmul.f32 %v582, 0.044715
        %v960 = vmul.f32 %v586, 0.044715
        %v961 = vmul.f32 %v588, 0.044715
        %v962 = vmul.f32 %v590, 0.044715
        %v963 = vmul.f32 %v592, 0.044715
        %v964 = vmul.f32 %v596, 0.044715
        %v965 = vmul.f32 %v598, 0.044715
        %v966 = vmul.f32 %v600, 0.044715
        %v967 = vmul.f32 %v602, 0.044715
        %v968 = vmul.f32 %v606, 0.044715
        %v969 = vmul.f32 %v608, 0.044715
        %v970 = vmul.f32 %v610, 0.044715
        %v971 = vmul.f32 %v612, 0.044715
        %v972 = vmul.f32 %v616, 0.044715
        %v973 = vmul.f32 %v618, 0.044715
        %v974 = vmul.f32 %v620, 0.044715
        %v975 = vmul.f32 %v622, 0.044715
        %v976 = vmul.f32 %v626, 0.044715
        %v977 = vmul.f32 %v628, 0.044715
        %v978 = vmul.f32 %v630, 0.044715
        %v979 = vmul.f32 %v632, 0.044715
        %v980 = vmul.f32 %v636, 0.044715
        %v981 = vmul.f32 %v638, 0.044715
        %v982 = vmul.f32 %v640, 0.044715
        %v983 = vmul.f32 %v642, 0.044715
        %v984 = vmul.f32 %v646, 0.044715
        %v985 = vmul.f32 %v648, 0.044715
        %v986 = vmul.f32 %v650, 0.044715
        %v987 = vmul.f32 %v652, 0.044715
        %v988 = vmul.f32 %v656, 0.044715
        %v989 = vmul.f32 %v658, 0.044715
        %v990 = vmul.f32 %v660, 0.044715
        %v991 = vmul.f32 %v662, 0.044715
        %v992 = vmul.f32 %v666, 0.044715
        %v993 = vmul.f32 %v668, 0.044715
        %v994 = vmul.f32 %v670, 0.044715
        %v995 = vmul.f32 %v672, 0.044715
        %v996 = vmul.f32 %v676, 0.044715
        %v997 = vmul.f32 %v678, 0.044715
        %v998 = vmul.f32 %v680, 0.044715
        %v999 = vmul.f32 %v682, 0.044715
        %v1000 = vmul.f32 %v686, 0.044715
        %v1001 = vmul.f32 %v688, 0.044715
        %v1002 = vmul.f32 %v690, 0.044715
        %v1003 = vmul.f32 %v692, 0.044715
        %v1004 = vmul.f32 %v696, 0.044715
        %v1005 = vmul.f32 %v698, 0.044715
        %v1006 = vmul.f32 %v700, 0.044715
        %v1007 = vmul.f32 %v702, 0.044715
        %v1008 = vmul.f32 %v706, 0.044715
        %v1009 = vmul.f32 %v708, 0.044715
        %v1010 = vmul.f32 %v710, 0.044715
        %v1011 = vmul.f32 %v712, 0.044715
        %v1012 = vmul.f32 %v716, 0.044715
        %v1013 = vmul.f32 %v718, 0.044715
        %v1014 = vmul.f32 %v720, 0.044715
        %v1015 = vmul.f32 %v722, 0.044715
        %v1016 = vmul.f32 %v726, 0.044715
        %v1017 = vmul.f32 %v728, 0.044715
        %v1018 = vmul.f32 %v730, 0.044715
        %v1019 = vmul.f32 %v732, 0.044715
        %v1020 = vmul.f32 %v736, 0.044715
        %v1021 = vmul.f32 %v738, 0.044715
        %v1022 = vmul.f32 %v740, 0.044715
        %v1023 = vmul.f32 %v742, 0.044715
        %v1024 = vmul.f32 %v746, 0.044715
        %v1025 = vmul.f32 %v748, 0.044715
        %v1026 = vmul.f32 %v750, 0.044715
        %v1027 = vmul.f32 %v752, 0.044715
        %v1028 = vmul.f32 %v756, 0.044715
        %v1029 = vmul.f32 %v758, 0.044715
        %v1030 = vmul.f32 %v760, 0.044715
        %v1031 = vmul.f32 %v762, 0.044715
        %v1032 = vmul.f32 %v766, 0.044715
        %v1033 = vmul.f32 %v768, 0.044715
        %v1034 = vmul.f32 %v770, 0.044715
        %v1035 = vmul.f32 %v772, 0.044715
        %v1036 = vmul.f32 %v776, 0.044715
        %v1037 = vmul.f32 %v778, 0.044715
        %v1038 = vmul.f32 %v780, 0.044715
        %v1039 = vmul.f32 %v782, 0.044715
        %v1040 = vmul.f32 %v912, %v466
        %v1041 = vmul.f32 %v913, %v468
        %v1042 = vmul.f32 %v914, %v470
        %v1043 = vmul.f32 %v915, %v472
        %v1044 = vmul.f32 %v916, %v476
        %v1045 = vmul.f32 %v917, %v478
        %v1046 = vmul.f32 %v918, %v480
        %v1047 = vmul.f32 %v919, %v482
        %v1048 = vmul.f32 %v920, %v486
        %v1049 = vmul.f32 %v921, %v488
        %v1050 = vmul.f32 %v922, %v490
        %v1051 = vmul.f32 %v923, %v492
        %v1052 = vmul.f32 %v924, %v496
        %v1053 = vmul.f32 %v925, %v498
        %v1054 = vmul.f32 %v926, %v500
        %v1055 = vmul.f32 %v927, %v502
        %v1056 = vmul.f32 %v928, %v506
        %v1057 = vmul.f32 %v929, %v508
        %v1058 = vmul.f32 %v930, %v510
        %v1059 = vmul.f32 %v931, %v512
        %v1060 = vmul.f32 %v932, %v516
        %v1061 = vmul.f32 %v933, %v518
        %v1062 = vmul.f32 %v934, %v520
        %v1063 = vmul.f32 %v935, %v522
        %v1064 = vmul.f32 %v936, %v526
        %v1065 = vmul.f32 %v937, %v528
        %v1066 = vmul.f32 %v938, %v530
        %v1067 = vmul.f32 %v939, %v532
        %v1068 = vmul.f32 %v940, %v536
        %v1069 = vmul.f32 %v941, %v538
        %v1070 = vmul.f32 %v942, %v540
        %v1071 = vmul.f32 %v943, %v542
        %v1072 = vmul.f32 %v944, %v546
        %v1073 = vmul.f32 %v945, %v548
        %v1074 = vmul.f32 %v946, %v550
        %v1075 = vmul.f32 %v947, %v552
        %v1076 = vmul.f32 %v948, %v556
        %v1077 = vmul.f32 %v949, %v558
        %v1078 = vmul.f32 %v950, %v560
        %v1079 = vmul.f32 %v951, %v562
        %v1080 = vmul.f32 %v952, %v566
        %v1081 = vmul.f32 %v953, %v568
        %v1082 = vmul.f32 %v954, %v570
        %v1083 = vmul.f32 %v955, %v572
        %v1084 = vmul.f32 %v956, %v576
        %v1085 = vmul.f32 %v957, %v578
        %v1086 = vmul.f32 %v958, %v580
        %v1087 = vmul.f32 %v959, %v582
        %v1088 = vmul.f32 %v960, %v586
        %v1089 = vmul.f32 %v961, %v588
        %v1090 = vmul.f32 %v962, %v590
        %v1091 = vmul.f32 %v963, %v592
        %v1092 = vmul.f32 %v964, %v596
        %v1093 = vmul.f32 %v965, %v598
        %v1094 = vmul.f32 %v966, %v600
        %v1095 = vmul.f32 %v967, %v602
        %v1096 = vmul.f32 %v968, %v606
        %v1097 = vmul.f32 %v969, %v608
        %v1098 = vmul.f32 %v970, %v610
        %v1099 = vmul.f32 %v971, %v612
        %v1100 = vmul.f32 %v972, %v616
        %v1101 = vmul.f32 %v973, %v618
        %v1102 = vmul.f32 %v974, %v620
        %v1103 = vmul.f32 %v975, %v622
        %v1104 = vmul.f32 %v976, %v626
        %v1105 = vmul.f32 %v977, %v628
        %v1106 = vmul.f32 %v978, %v630
        %v1107 = vmul.f32 %v979, %v632
        %v1108 = vmul.f32 %v980, %v636
        %v1109 = vmul.f32 %v981, %v638
        %v1110 = vmul.f32 %v982, %v640
        %v1111 = vmul.f32 %v983, %v642
        %v1112 = vmul.f32 %v984, %v646
        %v1113 = vmul.f32 %v985, %v648
        %v1114 = vmul.f32 %v986, %v650
        %v1115 = vmul.f32 %v987, %v652
        %v1116 = vmul.f32 %v988, %v656
        %v1117 = vmul.f32 %v989, %v658
        %v1118 = vmul.f32 %v990, %v660
        %v1119 = vmul.f32 %v991, %v662
        %v1120 = vmul.f32 %v992, %v666
        %v1121 = vmul.f32 %v993, %v668
        %v1122 = vmul.f32 %v994, %v670
        %v1123 = vmul.f32 %v995, %v672
        %v1124 = vmul.f32 %v996, %v676
        %v1125 = vmul.f32 %v997, %v678
        %v1126 = vmul.f32 %v998, %v680
        %v1127 = vmul.f32 %v999, %v682
        %v1128 = vmul.f32 %v1000, %v686
        %v1129 = vmul.f32 %v1001, %v688
        %v1130 = vmul.f32 %v1002, %v690
        %v1131 = vmul.f32 %v1003, %v692
        %v1132 = vmul.f32 %v1004, %v696
        %v1133 = vmul.f32 %v1005, %v698
        %v1134 = vmul.f32 %v1006, %v700
        %v1135 = vmul.f32 %v1007, %v702
        %v1136 = vmul.f32 %v1008, %v706
        %v1137 = vmul.f32 %v1009, %v708
        %v1138 = vmul.f32 %v1010, %v710
        %v1139 = vmul.f32 %v1011, %v712
        %v1140 = vmul.f32 %v1012, %v716
        %v1141 = vmul.f32 %v1013, %v718
        %v1142 = vmul.f32 %v1014, %v720
        %v1143 = vmul.f32 %v1015, %v722
        %v1144 = vmul.f32 %v1016, %v726
        %v1145 = vmul.f32 %v1017, %v728
        %v1146 = vmul.f32 %v1018, %v730
        %v1147 = vmul.f32 %v1019, %v732
        %v1148 = vmul.f32 %v1020, %v736
        %v1149 = vmul.f32 %v1021, %v738
        %v1150 = vmul.f32 %v1022, %v740
        %v1151 = vmul.f32 %v1023, %v742
        %v1152 = vmul.f32 %v1024, %v746
        %v1153 = vmul.f32 %v1025, %v748
        %v1154 = vmul.f32 %v1026, %v750
        %v1155 = vmul.f32 %v1027, %v752
        %v1156 = vmul.f32 %v1028, %v756
        %v1157 = vmul.f32 %v1029, %v758
        %v1158 = vmul.f32 %v1030, %v760
        %v1159 = vmul.f32 %v1031, %v762
        %v1160 = vmul.f32 %v1032, %v766
        %v1161 = vmul.f32 %v1033, %v768
        %v1162 = vmul.f32 %v1034, %v770
        %v1163 = vmul.f32 %v1035, %v772
        %v1164 = vmul.f32 %v1036, %v776
        %v1165 = vmul.f32 %v1037, %v778
        %v1166 = vmul.f32 %v1038, %v780
        %v1167 = vmul.f32 %v1039, %v782
        %v1168 = vmul.f32 %v1040, %v466
        %v1169 = vmul.f32 %v1041, %v468
        %v1170 = vmul.f32 %v1042, %v470
        %v1171 = vmul.f32 %v1043, %v472
        %v1172 = vmul.f32 %v1044, %v476
        %v1173 = vmul.f32 %v1045, %v478
        %v1174 = vmul.f32 %v1046, %v480
        %v1175 = vmul.f32 %v1047, %v482
        %v1176 = vmul.f32 %v1048, %v486
        %v1177 = vmul.f32 %v1049, %v488
        %v1178 = vmul.f32 %v1050, %v490
        %v1179 = vmul.f32 %v1051, %v492
        %v1180 = vmul.f32 %v1052, %v496
        %v1181 = vmul.f32 %v1053, %v498
        %v1182 = vmul.f32 %v1054, %v500
        %v1183 = vmul.f32 %v1055, %v502
        %v1184 = vmul.f32 %v1056, %v506
        %v1185 = vmul.f32 %v1057, %v508
        %v1186 = vmul.f32 %v1058, %v510
        %v1187 = vmul.f32 %v1059, %v512
        %v1188 = vmul.f32 %v1060, %v516
        %v1189 = vmul.f32 %v1061, %v518
        %v1190 = vmul.f32 %v1062, %v520
        %v1191 = vmul.f32 %v1063, %v522
        %v1192 = vmul.f32 %v1064, %v526
        %v1193 = vmul.f32 %v1065, %v528
        %v1194 = vmul.f32 %v1066, %v530
        %v1195 = vmul.f32 %v1067, %v532
        %v1196 = vmul.f32 %v1068, %v536
        %v1197 = vmul.f32 %v1069, %v538
        %v1198 = vmul.f32 %v1070, %v540
        %v1199 = vmul.f32 %v1071, %v542
        %v1200 = vmul.f32 %v1072, %v546
        %v1201 = vmul.f32 %v1073, %v548
        %v1202 = vmul.f32 %v1074, %v550
        %v1203 = vmul.f32 %v1075, %v552
        %v1204 = vmul.f32 %v1076, %v556
        %v1205 = vmul.f32 %v1077, %v558
        %v1206 = vmul.f32 %v1078, %v560
        %v1207 = vmul.f32 %v1079, %v562
        %v1208 = vmul.f32 %v1080, %v566
        %v1209 = vmul.f32 %v1081, %v568
        %v1210 = vmul.f32 %v1082, %v570
        %v1211 = vmul.f32 %v1083, %v572
        %v1212 = vmul.f32 %v1084, %v576
        %v1213 = vmul.f32 %v1085, %v578
        %v1214 = vmul.f32 %v1086, %v580
        %v1215 = vmul.f32 %v1087, %v582
        %v1216 = vmul.f32 %v1088, %v586
        %v1217 = vmul.f32 %v1089, %v588
        %v1218 = vmul.f32 %v1090, %v590
        %v1219 = vmul.f32 %v1091, %v592
        %v1220 = vmul.f32 %v1092, %v596
        %v1221 = vmul.f32 %v1093, %v598
        %v1222 = vmul.f32 %v1094, %v600
        %v1223 = vmul.f32 %v1095, %v602
        %v1224 = vmul.f32 %v1096, %v606
        %v1225 = vmul.f32 %v1097, %v608
        %v1226 = vmul.f32 %v1098, %v610
        %v1227 = vmul.f32 %v1099, %v612
        %v1228 = vmul.f32 %v1100, %v616
        %v1229 = vmul.f32 %v1101, %v618
        %v1230 = vmul.f32 %v1102, %v620
        %v1231 = vmul.f32 %v1103, %v622
        %v1232 = vmul.f32 %v1104, %v626
        %v1233 = vmul.f32 %v1105, %v628
        %v1234 = vmul.f32 %v1106, %v630
        %v1235 = vmul.f32 %v1107, %v632
        %v1236 = vmul.f32 %v1108, %v636
        %v1237 = vmul.f32 %v1109, %v638
        %v1238 = vmul.f32 %v1110, %v640
        %v1239 = vmul.f32 %v1111, %v642
        %v1240 = vmul.f32 %v1112, %v646
        %v1241 = vmul.f32 %v1113, %v648
        %v1242 = vmul.f32 %v1114, %v650
        %v1243 = vmul.f32 %v1115, %v652
        %v1244 = vmul.f32 %v1116, %v656
        %v1245 = vmul.f32 %v1117, %v658
        %v1246 = vmul.f32 %v1118, %v660
        %v1247 = vmul.f32 %v1119, %v662
        %v1248 = vmul.f32 %v1120, %v666
        %v1249 = vmul.f32 %v1121, %v668
        %v1250 = vmul.f32 %v1122, %v670
        %v1251 = vmul.f32 %v1123, %v672
        %v1252 = vmul.f32 %v1124, %v676
        %v1253 = vmul.f32 %v1125, %v678
        %v1254 = vmul.f32 %v1126, %v680
        %v1255 = vmul.f32 %v1127, %v682
        %v1256 = vmul.f32 %v1128, %v686
        %v1257 = vmul.f32 %v1129, %v688
        %v1258 = vmul.f32 %v1130, %v690
        %v1259 = vmul.f32 %v1131, %v692
        %v1260 = vmul.f32 %v1132, %v696
        %v1261 = vmul.f32 %v1133, %v698
        %v1262 = vmul.f32 %v1134, %v700
        %v1263 = vmul.f32 %v1135, %v702
        %v1264 = vmul.f32 %v1136, %v706
        %v1265 = vmul.f32 %v1137, %v708
        %v1266 = vmul.f32 %v1138, %v710
        %v1267 = vmul.f32 %v1139, %v712
        %v1268 = vmul.f32 %v1140, %v716
        %v1269 = vmul.f32 %v1141, %v718
        %v1270 = vmul.f32 %v1142, %v720
        %v1271 = vmul.f32 %v1143, %v722
        %v1272 = vmul.f32 %v1144, %v726
        %v1273 = vmul.f32 %v1145, %v728
        %v1274 = vmul.f32 %v1146, %v730
        %v1275 = vmul.f32 %v1147, %v732
        %v1276 = vmul.f32 %v1148, %v736
        %v1277 = vmul.f32 %v1149, %v738
        %v1278 = vmul.f32 %v1150, %v740
        %v1279 = vmul.f32 %v1151, %v742
        %v1280 = vmul.f32 %v1152, %v746
        %v1281 = vmul.f32 %v1153, %v748
        %v1282 = vmul.f32 %v1154, %v750
        %v1283 = vmul.f32 %v1155, %v752
        %v1284 = vmul.f32 %v1156, %v756
        %v1285 = vmul.f32 %v1157, %v758
        %v1286 = vmul.f32 %v1158, %v760
        %v1287 = vmul.f32 %v1159, %v762
        %v1288 = vmul.f32 %v1160, %v766
        %v1289 = vmul.f32 %v1161, %v768
        %v1290 = vmul.f32 %v1162, %v770
        %v1291 = vmul.f32 %v1163, %v772
        %v1292 = vmul.f32 %v1164, %v776
        %v1293 = vmul.f32 %v1165, %v778
        %v1294 = vmul.f32 %v1166, %v780
        %v1295 = vmul.f32 %v1167, %v782
        %v1296 = vadd.f32 %v466, %v1168
        %v1297 = vadd.f32 %v468, %v1169
        %v1298 = vadd.f32 %v470, %v1170
        %v1299 = vadd.f32 %v472, %v1171
        %v1300 = vadd.f32 %v476, %v1172
        %v1301 = vadd.f32 %v478, %v1173
        %v1302 = vadd.f32 %v480, %v1174
        %v1303 = vadd.f32 %v482, %v1175
        %v1304 = vadd.f32 %v486, %v1176
        %v1305 = vadd.f32 %v488, %v1177
        %v1306 = vadd.f32 %v490, %v1178
        %v1307 = vadd.f32 %v492, %v1179
        %v1308 = vadd.f32 %v496, %v1180
        %v1309 = vadd.f32 %v498, %v1181
        %v1310 = vadd.f32 %v500, %v1182
        %v1311 = vadd.f32 %v502, %v1183
        %v1312 = vadd.f32 %v506, %v1184
        %v1313 = vadd.f32 %v508, %v1185
        %v1314 = vadd.f32 %v510, %v1186
        %v1315 = vadd.f32 %v512, %v1187
        %v1316 = vadd.f32 %v516, %v1188
        %v1317 = vadd.f32 %v518, %v1189
        %v1318 = vadd.f32 %v520, %v1190
        %v1319 = vadd.f32 %v522, %v1191
        %v1320 = vadd.f32 %v526, %v1192
        %v1321 = vadd.f32 %v528, %v1193
        %v1322 = vadd.f32 %v530, %v1194
        %v1323 = vadd.f32 %v532, %v1195
        %v1324 = vadd.f32 %v536, %v1196
        %v1325 = vadd.f32 %v538, %v1197
        %v1326 = vadd.f32 %v540, %v1198
        %v1327 = vadd.f32 %v542, %v1199
        %v1328 = vadd.f32 %v546, %v1200
        %v1329 = vadd.f32 %v548, %v1201
        %v1330 = vadd.f32 %v550, %v1202
        %v1331 = vadd.f32 %v552, %v1203
        %v1332 = vadd.f32 %v556, %v1204
        %v1333 = vadd.f32 %v558, %v1205
        %v1334 = vadd.f32 %v560, %v1206
        %v1335 = vadd.f32 %v562, %v1207
        %v1336 = vadd.f32 %v566, %v1208
        %v1337 = vadd.f32 %v568, %v1209
        %v1338 = vadd.f32 %v570, %v1210
        %v1339 = vadd.f32 %v572, %v1211
        %v1340 = vadd.f32 %v576, %v1212
        %v1341 = vadd.f32 %v578, %v1213
        %v1342 = vadd.f32 %v580, %v1214
        %v1343 = vadd.f32 %v582, %v1215
        %v1344 = vadd.f32 %v586, %v1216
        %v1345 = vadd.f32 %v588, %v1217
        %v1346 = vadd.f32 %v590, %v1218
        %v1347 = vadd.f32 %v592, %v1219
        %v1348 = vadd.f32 %v596, %v1220
        %v1349 = vadd.f32 %v598, %v1221
        %v1350 = vadd.f32 %v600, %v1222
        %v1351 = vadd.f32 %v602, %v1223
        %v1352 = vadd.f32 %v606, %v1224
        %v1353 = vadd.f32 %v608, %v1225
        %v1354 = vadd.f32 %v610, %v1226
        %v1355 = vadd.f32 %v612, %v1227
        %v1356 = vadd.f32 %v616, %v1228
        %v1357 = vadd.f32 %v618, %v1229
        %v1358 = vadd.f32 %v620, %v1230
        %v1359 = vadd.f32 %v622, %v1231
        %v1360 = vadd.f32 %v626, %v1232
        %v1361 = vadd.f32 %v628, %v1233
        %v1362 = vadd.f32 %v630, %v1234
        %v1363 = vadd.f32 %v632, %v1235
        %v1364 = vadd.f32 %v636, %v1236
        %v1365 = vadd.f32 %v638, %v1237
        %v1366 = vadd.f32 %v640, %v1238
        %v1367 = vadd.f32 %v642, %v1239
        %v1368 = vadd.f32 %v646, %v1240
        %v1369 = vadd.f32 %v648, %v1241
        %v1370 = vadd.f32 %v650, %v1242
        %v1371 = vadd.f32 %v652, %v1243
        %v1372 = vadd.f32 %v656, %v1244
        %v1373 = vadd.f32 %v658, %v1245
        %v1374 = vadd.f32 %v660, %v1246
        %v1375 = vadd.f32 %v662, %v1247
        %v1376 = vadd.f32 %v666, %v1248
        %v1377 = vadd.f32 %v668, %v1249
        %v1378 = vadd.f32 %v670, %v1250
        %v1379 = vadd.f32 %v672, %v1251
        %v1380 = vadd.f32 %v676, %v1252
        %v1381 = vadd.f32 %v678, %v1253
        %v1382 = vadd.f32 %v680, %v1254
        %v1383 = vadd.f32 %v682, %v1255
        %v1384 = vadd.f32 %v686, %v1256
        %v1385 = vadd.f32 %v688, %v1257
        %v1386 = vadd.f32 %v690, %v1258
        %v1387 = vadd.f32 %v692, %v1259
        %v1388 = vadd.f32 %v696, %v1260
        %v1389 = vadd.f32 %v698, %v1261
        %v1390 = vadd.f32 %v700, %v1262
        %v1391 = vadd.f32 %v702, %v1263
        %v1392 = vadd.f32 %v706, %v1264
        %v1393 = vadd.f32 %v708, %v1265
        %v1394 = vadd.f32 %v710, %v1266
        %v1395 = vadd.f32 %v712, %v1267
        %v1396 = vadd.f32 %v716, %v1268
        %v1397 = vadd.f32 %v718, %v1269
        %v1398 = vadd.f32 %v720, %v1270
        %v1399 = vadd.f32 %v722, %v1271
        %v1400 = vadd.f32 %v726, %v1272
        %v1401 = vadd.f32 %v728, %v1273
        %v1402 = vadd.f32 %v730, %v1274
        %v1403 = vadd.f32 %v732, %v1275
        %v1404 = vadd.f32 %v736, %v1276
        %v1405 = vadd.f32 %v738, %v1277
        %v1406 = vadd.f32 %v740, %v1278
        %v1407 = vadd.f32 %v742, %v1279
        %v1408 = vadd.f32 %v746, %v1280
        %v1409 = vadd.f32 %v748, %v1281
        %v1410 = vadd.f32 %v750, %v1282
        %v1411 = vadd.f32 %v752, %v1283
        %v1412 = vadd.f32 %v756, %v1284
        %v1413 = vadd.f32 %v758, %v1285
        %v1414 = vadd.f32 %v760, %v1286
        %v1415 = vadd.f32 %v762, %v1287
        %v1416 = vadd.f32 %v766, %v1288
        %v1417 = vadd.f32 %v768, %v1289
        %v1418 = vadd.f32 %v770, %v1290
        %v1419 = vadd.f32 %v772, %v1291
        %v1420 = vadd.f32 %v776, %v1292
        %v1421 = vadd.f32 %v778, %v1293
        %v1422 = vadd.f32 %v780, %v1294
        %v1423 = vadd.f32 %v782, %v1295
        %v1424 = vmul.f32 %v1296, 0.7978846
        %v1425 = vmul.f32 %v1297, 0.7978846
        %v1426 = vmul.f32 %v1298, 0.7978846
        %v1427 = vmul.f32 %v1299, 0.7978846
        %v1428 = vmul.f32 %v1300, 0.7978846
        %v1429 = vmul.f32 %v1301, 0.7978846
        %v1430 = vmul.f32 %v1302, 0.7978846
        %v1431 = vmul.f32 %v1303, 0.7978846
        %v1432 = vmul.f32 %v1304, 0.7978846
        %v1433 = vmul.f32 %v1305, 0.7978846
        %v1434 = vmul.f32 %v1306, 0.7978846
        %v1435 = vmul.f32 %v1307, 0.7978846
        %v1436 = vmul.f32 %v1308, 0.7978846
        %v1437 = vmul.f32 %v1309, 0.7978846
        %v1438 = vmul.f32 %v1310, 0.7978846
        %v1439 = vmul.f32 %v1311, 0.7978846
        %v1440 = vmul.f32 %v1312, 0.7978846
        %v1441 = vmul.f32 %v1313, 0.7978846
        %v1442 = vmul.f32 %v1314, 0.7978846
        %v1443 = vmul.f32 %v1315, 0.7978846
        %v1444 = vmul.f32 %v1316, 0.7978846
        %v1445 = vmul.f32 %v1317, 0.7978846
        %v1446 = vmul.f32 %v1318, 0.7978846
        %v1447 = vmul.f32 %v1319, 0.7978846
        %v1448 = vmul.f32 %v1320, 0.7978846
        %v1449 = vmul.f32 %v1321, 0.7978846
        %v1450 = vmul.f32 %v1322, 0.7978846
        %v1451 = vmul.f32 %v1323, 0.7978846
        %v1452 = vmul.f32 %v1324, 0.7978846
        %v1453 = vmul.f32 %v1325, 0.7978846
        %v1454 = vmul.f32 %v1326, 0.7978846
        %v1455 = vmul.f32 %v1327, 0.7978846
        %v1456 = vmul.f32 %v1328, 0.7978846
        %v1457 = vmul.f32 %v1329, 0.7978846
        %v1458 = vmul.f32 %v1330, 0.7978846
        %v1459 = vmul.f32 %v1331, 0.7978846
        %v1460 = vmul.f32 %v1332, 0.7978846
        %v1461 = vmul.f32 %v1333, 0.7978846
        %v1462 = vmul.f32 %v1334, 0.7978846
        %v1463 = vmul.f32 %v1335, 0.7978846
        %v1464 = vmul.f32 %v1336, 0.7978846
        %v1465 = vmul.f32 %v1337, 0.7978846
        %v1466 = vmul.f32 %v1338, 0.7978846
        %v1467 = vmul.f32 %v1339, 0.7978846
        %v1468 = vmul.f32 %v1340, 0.7978846
        %v1469 = vmul.f32 %v1341, 0.7978846
        %v1470 = vmul.f32 %v1342, 0.7978846
        %v1471 = vmul.f32 %v1343, 0.7978846
        %v1472 = vmul.f32 %v1344, 0.7978846
        %v1473 = vmul.f32 %v1345, 0.7978846
        %v1474 = vmul.f32 %v1346, 0.7978846
        %v1475 = vmul.f32 %v1347, 0.7978846
        %v1476 = vmul.f32 %v1348, 0.7978846
        %v1477 = vmul.f32 %v1349, 0.7978846
        %v1478 = vmul.f32 %v1350, 0.7978846
        %v1479 = vmul.f32 %v1351, 0.7978846
        %v1480 = vmul.f32 %v1352, 0.7978846
        %v1481 = vmul.f32 %v1353, 0.7978846
        %v1482 = vmul.f32 %v1354, 0.7978846
        %v1483 = vmul.f32 %v1355, 0.7978846
        %v1484 = vmul.f32 %v1356, 0.7978846
        %v1485 = vmul.f32 %v1357, 0.7978846
        %v1486 = vmul.f32 %v1358, 0.7978846
        %v1487 = vmul.f32 %v1359, 0.7978846
        %v1488 = vmul.f32 %v1360, 0.7978846
        %v1489 = vmul.f32 %v1361, 0.7978846
        %v1490 = vmul.f32 %v1362, 0.7978846
        %v1491 = vmul.f32 %v1363, 0.7978846
        %v1492 = vmul.f32 %v1364, 0.7978846
        %v1493 = vmul.f32 %v1365, 0.7978846
        %v1494 = vmul.f32 %v1366, 0.7978846
        %v1495 = vmul.f32 %v1367, 0.7978846
        %v1496 = vmul.f32 %v1368, 0.7978846
        %v1497 = vmul.f32 %v1369, 0.7978846
        %v1498 = vmul.f32 %v1370, 0.7978846
        %v1499 = vmul.f32 %v1371, 0.7978846
        %v1500 = vmul.f32 %v1372, 0.7978846
        %v1501 = vmul.f32 %v1373, 0.7978846
        %v1502 = vmul.f32 %v1374, 0.7978846
        %v1503 = vmul.f32 %v1375, 0.7978846
        %v1504 = vmul.f32 %v1376, 0.7978846
        %v1505 = vmul.f32 %v1377, 0.7978846
        %v1506 = vmul.f32 %v1378, 0.7978846
        %v1507 = vmul.f32 %v1379, 0.7978846
        %v1508 = vmul.f32 %v1380, 0.7978846
        %v1509 = vmul.f32 %v1381, 0.7978846
        %v1510 = vmul.f32 %v1382, 0.7978846
        %v1511 = vmul.f32 %v1383, 0.7978846
        %v1512 = vmul.f32 %v1384, 0.7978846
        %v1513 = vmul.f32 %v1385, 0.7978846
        %v1514 = vmul.f32 %v1386, 0.7978846
        %v1515 = vmul.f32 %v1387, 0.7978846
        %v1516 = vmul.f32 %v1388, 0.7978846
        %v1517 = vmul.f32 %v1389, 0.7978846
        %v1518 = vmul.f32 %v1390, 0.7978846
        %v1519 = vmul.f32 %v1391, 0.7978846
        %v1520 = vmul.f32 %v1392, 0.7978846
        %v1521 = vmul.f32 %v1393, 0.7978846
        %v1522 = vmul.f32 %v1394, 0.7978846
        %v1523 = vmul.f32 %v1395, 0.7978846
        %v1524 = vmul.f32 %v1396, 0.7978846
        %v1525 = vmul.f32 %v1397, 0.7978846
        %v1526 = vmul.f32 %v1398, 0.7978846
        %v1527 = vmul.f32 %v1399, 0.7978846
        %v1528 = vmul.f32 %v1400, 0.7978846
        %v1529 = vmul.f32 %v1401, 0.7978846
        %v1530 = vmul.f32 %v1402, 0.7978846
        %v1531 = vmul.f32 %v1403, 0.7978846
        %v1532 = vmul.f32 %v1404, 0.7978846
        %v1533 = vmul.f32 %v1405, 0.7978846
        %v1534 = vmul.f32 %v1406, 0.7978846
        %v1535 = vmul.f32 %v1407, 0.7978846
        %v1536 = vmul.f32 %v1408, 0.7978846
        %v1537 = vmul.f32 %v1409, 0.7978846
        %v1538 = vmul.f32 %v1410, 0.7978846
        %v1539 = vmul.f32 %v1411, 0.7978846
        %v1540 = vmul.f32 %v1412, 0.7978846
        %v1541 = vmul.f32 %v1413, 0.7978846
        %v1542 = vmul.f32 %v1414, 0.7978846
        %v1543 = vmul.f32 %v1415, 0.7978846
        %v1544 = vmul.f32 %v1416, 0.7978846
        %v1545 = vmul.f32 %v1417, 0.7978846
        %v1546 = vmul.f32 %v1418, 0.7978846
        %v1547 = vmul.f32 %v1419, 0.7978846
        %v1548 = vmul.f32 %v1420, 0.7978846
        %v1549 = vmul.f32 %v1421, 0.7978846
        %v1550 = vmul.f32 %v1422, 0.7978846
        %v1551 = vmul.f32 %v1423, 0.7978846
        %v1552 = vtanh.pop %v1424
        %v1553 = vtanh.pop %v1425
        %v1554 = vtanh.pop %v1426
        %v1555 = vtanh.pop %v1427
        %v1556 = vtanh.pop %v1428
        %v1557 = vtanh.pop %v1429
        %v1558 = vtanh.pop %v1430
        %v1559 = vtanh.pop %v1431
        %v1560 = vtanh.pop %v1432
        %v1561 = vtanh.pop %v1433
        %v1562 = vtanh.pop %v1434
        %v1563 = vtanh.pop %v1435
        %v1564 = vtanh.pop %v1436
        %v1565 = vtanh.pop %v1437
        %v1566 = vtanh.pop %v1438
        %v1567 = vtanh.pop %v1439
        %v1568 = vtanh.pop %v1440
        %v1569 = vtanh.pop %v1441
        %v1570 = vtanh.pop %v1442
        %v1571 = vtanh.pop %v1443
        %v1572 = vtanh.pop %v1444
        %v1573 = vtanh.pop %v1445
        %v1574 = vtanh.pop %v1446
        %v1575 = vtanh.pop %v1447
        %v1576 = vtanh.pop %v1448
        %v1577 = vtanh.pop %v1449
        %v1578 = vtanh.pop %v1450
        %v1579 = vtanh.pop %v1451
        %v1580 = vtanh.pop %v1452
        %v1581 = vtanh.pop %v1453
        %v1582 = vtanh.pop %v1454
        %v1583 = vtanh.pop %v1455
        %v1584 = vtanh.pop %v1456
        %v1585 = vtanh.pop %v1457
        %v1586 = vtanh.pop %v1458
        %v1587 = vtanh.pop %v1459
        %v1588 = vtanh.pop %v1460
        %v1589 = vtanh.pop %v1461
        %v1590 = vtanh.pop %v1462
        %v1591 = vtanh.pop %v1463
        %v1592 = vtanh.pop %v1464
        %v1593 = vtanh.pop %v1465
        %v1594 = vtanh.pop %v1466
        %v1595 = vtanh.pop %v1467
        %v1596 = vtanh.pop %v1468
        %v1597 = vtanh.pop %v1469
        %v1598 = vtanh.pop %v1470
        %v1599 = vtanh.pop %v1471
        %v1600 = vtanh.pop %v1472
        %v1601 = vtanh.pop %v1473
        %v1602 = vtanh.pop %v1474
        %v1603 = vtanh.pop %v1475
        %v1604 = vtanh.pop %v1476
        %v1605 = vtanh.pop %v1477
        %v1606 = vtanh.pop %v1478
        %v1607 = vtanh.pop %v1479
        %v1608 = vtanh.pop %v1480
        %v1609 = vtanh.pop %v1481
        %v1610 = vtanh.pop %v1482
        %v1611 = vtanh.pop %v1483
        %v1612 = vtanh.pop %v1484
        %v1613 = vtanh.pop %v1485
        %v1614 = vtanh.pop %v1486
        %v1615 = vtanh.pop %v1487
        %v1616 = vtanh.pop %v1488
        %v1617 = vtanh.pop %v1489
        %v1618 = vtanh.pop %v1490
        %v1619 = vtanh.pop %v1491
        %v1620 = vtanh.pop %v1492
        %v1621 = vtanh.pop %v1493
        %v1622 = vtanh.pop %v1494
        %v1623 = vtanh.pop %v1495
        %v1624 = vtanh.pop %v1496
        %v1625 = vtanh.pop %v1497
        %v1626 = vtanh.pop %v1498
        %v1627 = vtanh.pop %v1499
        %v1628 = vtanh.pop %v1500
        %v1629 = vtanh.pop %v1501
        %v1630 = vtanh.pop %v1502
        %v1631 = vtanh.pop %v1503
        %v1632 = vtanh.pop %v1504
        %v1633 = vtanh.pop %v1505
        %v1634 = vtanh.pop %v1506
        %v1635 = vtanh.pop %v1507
        %v1636 = vtanh.pop %v1508
        %v1637 = vtanh.pop %v1509
        %v1638 = vtanh.pop %v1510
        %v1639 = vtanh.pop %v1511
        %v1640 = vtanh.pop %v1512
        %v1641 = vtanh.pop %v1513
        %v1642 = vtanh.pop %v1514
        %v1643 = vtanh.pop %v1515
        %v1644 = vtanh.pop %v1516
        %v1645 = vtanh.pop %v1517
        %v1646 = vtanh.pop %v1518
        %v1647 = vtanh.pop %v1519
        %v1648 = vtanh.pop %v1520
        %v1649 = vtanh.pop %v1521
        %v1650 = vtanh.pop %v1522
        %v1651 = vtanh.pop %v1523
        %v1652 = vtanh.pop %v1524
        %v1653 = vtanh.pop %v1525
        %v1654 = vtanh.pop %v1526
        %v1655 = vtanh.pop %v1527
        %v1656 = vtanh.pop %v1528
        %v1657 = vtanh.pop %v1529
        %v1658 = vtanh.pop %v1530
        %v1659 = vtanh.pop %v1531
        %v1660 = vtanh.pop %v1532
        %v1661 = vtanh.pop %v1533
        %v1662 = vtanh.pop %v1534
        %v1663 = vtanh.pop %v1535
        %v1664 = vtanh.pop %v1536
        %v1665 = vtanh.pop %v1537
        %v1666 = vtanh.pop %v1538
        %v1667 = vtanh.pop %v1539
        %v1668 = vtanh.pop %v1540
        %v1669 = vtanh.pop %v1541
        %v1670 = vtanh.pop %v1542
        %v1671 = vtanh.pop %v1543
        %v1672 = vtanh.pop %v1544
        %v1673 = vtanh.pop %v1545
        %v1674 = vtanh.pop %v1546
        %v1675 = vtanh.pop %v1547
        %v1676 = vtanh.pop %v1548
        %v1677 = vtanh.pop %v1549
        %v1678 = vtanh.pop %v1550
        %v1679 = vtanh.pop %v1551
        %v1680 = vadd.f32 %v1552, 1.0
        %v1681 = vadd.f32 %v1553, 1.0
        %v1682 = vadd.f32 %v1554, 1.0
        %v1683 = vadd.f32 %v1555, 1.0
        %v1684 = vadd.f32 %v1556, 1.0
        %v1685 = vadd.f32 %v1557, 1.0
        %v1686 = vadd.f32 %v1558, 1.0
        %v1687 = vadd.f32 %v1559, 1.0
        %v1688 = vadd.f32 %v1560, 1.0
        %v1689 = vadd.f32 %v1561, 1.0
        %v1690 = vadd.f32 %v1562, 1.0
        %v1691 = vadd.f32 %v1563, 1.0
        %v1692 = vadd.f32 %v1564, 1.0
        %v1693 = vadd.f32 %v1565, 1.0
        %v1694 = vadd.f32 %v1566, 1.0
        %v1695 = vadd.f32 %v1567, 1.0
        %v1696 = vadd.f32 %v1568, 1.0
        %v1697 = vadd.f32 %v1569, 1.0
        %v1698 = vadd.f32 %v1570, 1.0
        %v1699 = vadd.f32 %v1571, 1.0
        %v1700 = vadd.f32 %v1572, 1.0
        %v1701 = vadd.f32 %v1573, 1.0
        %v1702 = vadd.f32 %v1574, 1.0
        %v1703 = vadd.f32 %v1575, 1.0
        %v1704 = vadd.f32 %v1576, 1.0
        %v1705 = vadd.f32 %v1577, 1.0
        %v1706 = vadd.f32 %v1578, 1.0
        %v1707 = vadd.f32 %v1579, 1.0
        %v1708 = vadd.f32 %v1580, 1.0
        %v1709 = vadd.f32 %v1581, 1.0
        %v1710 = vadd.f32 %v1582, 1.0
        %v1711 = vadd.f32 %v1583, 1.0
        %v1712 = vadd.f32 %v1584, 1.0
        %v1713 = vadd.f32 %v1585, 1.0
        %v1714 = vadd.f32 %v1586, 1.0
        %v1715 = vadd.f32 %v1587, 1.0
        %v1716 = vadd.f32 %v1588, 1.0
        %v1717 = vadd.f32 %v1589, 1.0
        %v1718 = vadd.f32 %v1590, 1.0
        %v1719 = vadd.f32 %v1591, 1.0
        %v1720 = vadd.f32 %v1592, 1.0
        %v1721 = vadd.f32 %v1593, 1.0
        %v1722 = vadd.f32 %v1594, 1.0
        %v1723 = vadd.f32 %v1595, 1.0
        %v1724 = vadd.f32 %v1596, 1.0
        %v1725 = vadd.f32 %v1597, 1.0
        %v1726 = vadd.f32 %v1598, 1.0
        %v1727 = vadd.f32 %v1599, 1.0
        %v1728 = vadd.f32 %v1600, 1.0
        %v1729 = vadd.f32 %v1601, 1.0
        %v1730 = vadd.f32 %v1602, 1.0
        %v1731 = vadd.f32 %v1603, 1.0
        %v1732 = vadd.f32 %v1604, 1.0
        %v1733 = vadd.f32 %v1605, 1.0
        %v1734 = vadd.f32 %v1606, 1.0
        %v1735 = vadd.f32 %v1607, 1.0
        %v1736 = vadd.f32 %v1608, 1.0
        %v1737 = vadd.f32 %v1609, 1.0
        %v1738 = vadd.f32 %v1610, 1.0
        %v1739 = vadd.f32 %v1611, 1.0
        %v1740 = vadd.f32 %v1612, 1.0
        %v1741 = vadd.f32 %v1613, 1.0
        %v1742 = vadd.f32 %v1614, 1.0
        %v1743 = vadd.f32 %v1615, 1.0
        %v1744 = vadd.f32 %v1616, 1.0
        %v1745 = vadd.f32 %v1617, 1.0
        %v1746 = vadd.f32 %v1618, 1.0
        %v1747 = vadd.f32 %v1619, 1.0
        %v1748 = vadd.f32 %v1620, 1.0
        %v1749 = vadd.f32 %v1621, 1.0
        %v1750 = vadd.f32 %v1622, 1.0
        %v1751 = vadd.f32 %v1623, 1.0
        %v1752 = vadd.f32 %v1624, 1.0
        %v1753 = vadd.f32 %v1625, 1.0
        %v1754 = vadd.f32 %v1626, 1.0
        %v1755 = vadd.f32 %v1627, 1.0
        %v1756 = vadd.f32 %v1628, 1.0
        %v1757 = vadd.f32 %v1629, 1.0
        %v1758 = vadd.f32 %v1630, 1.0
        %v1759 = vadd.f32 %v1631, 1.0
        %v1760 = vadd.f32 %v1632, 1.0
        %v1761 = vadd.f32 %v1633, 1.0
        %v1762 = vadd.f32 %v1634, 1.0
        %v1763 = vadd.f32 %v1635, 1.0
        %v1764 = vadd.f32 %v1636, 1.0
        %v1765 = vadd.f32 %v1637, 1.0
        %v1766 = vadd.f32 %v1638, 1.0
        %v1767 = vadd.f32 %v1639, 1.0
        %v1768 = vadd.f32 %v1640, 1.0
        %v1769 = vadd.f32 %v1641, 1.0
        %v1770 = vadd.f32 %v1642, 1.0
        %v1771 = vadd.f32 %v1643, 1.0
        %v1772 = vadd.f32 %v1644, 1.0
        %v1773 = vadd.f32 %v1645, 1.0
        %v1774 = vadd.f32 %v1646, 1.0
        %v1775 = vadd.f32 %v1647, 1.0
        %v1776 = vadd.f32 %v1648, 1.0
        %v1777 = vadd.f32 %v1649, 1.0
        %v1778 = vadd.f32 %v1650, 1.0
        %v1779 = vadd.f32 %v1651, 1.0
        %v1780 = vadd.f32 %v1652, 1.0
        %v1781 = vadd.f32 %v1653, 1.0
        %v1782 = vadd.f32 %v1654, 1.0
        %v1783 = vadd.f32 %v1655, 1.0
        %v1784 = vadd.f32 %v1656, 1.0
        %v1785 = vadd.f32 %v1657, 1.0
        %v1786 = vadd.f32 %v1658, 1.0
        %v1787 = vadd.f32 %v1659, 1.0
        %v1788 = vadd.f32 %v1660, 1.0
        %v1789 = vadd.f32 %v1661, 1.0
        %v1790 = vadd.f32 %v1662, 1.0
        %v1791 = vadd.f32 %v1663, 1.0
        %v1792 = vadd.f32 %v1664, 1.0
        %v1793 = vadd.f32 %v1665, 1.0
        %v1794 = vadd.f32 %v1666, 1.0
        %v1795 = vadd.f32 %v1667, 1.0
        %v1796 = vadd.f32 %v1668, 1.0
        %v1797 = vadd.f32 %v1669, 1.0
        %v1798 = vadd.f32 %v1670, 1.0
        %v1799 = vadd.f32 %v1671, 1.0
        %v1800 = vadd.f32 %v1672, 1.0
        %v1801 = vadd.f32 %v1673, 1.0
        %v1802 = vadd.f32 %v1674, 1.0
        %v1803 = vadd.f32 %v1675, 1.0
        %v1804 = vadd.f32 %v1676, 1.0
        %v1805 = vadd.f32 %v1677, 1.0
        %v1806 = vadd.f32 %v1678, 1.0
        %v1807 = vadd.f32 %v1679, 1.0
        %v1808 = vmul.f32 %v784, %v1680
        %v1809 = vmul.f32 %v785, %v1681
        %v1810 = vmul.f32 %v786, %v1682
        %v1811 = vmul.f32 %v787, %v1683
        %v1812 = vmul.f32 %v788, %v1684
        %v1813 = vmul.f32 %v789, %v1685
        %v1814 = vmul.f32 %v790, %v1686
        %v1815 = vmul.f32 %v791, %v1687
        %v1816 = vmul.f32 %v792, %v1688
        %v1817 = vmul.f32 %v793, %v1689
        %v1818 = vmul.f32 %v794, %v1690
        %v1819 = vmul.f32 %v795, %v1691
        %v1820 = vmul.f32 %v796, %v1692
        %v1821 = vmul.f32 %v797, %v1693
        %v1822 = vmul.f32 %v798, %v1694
        %v1823 = vmul.f32 %v799, %v1695
        %v1824 = vmul.f32 %v800, %v1696
        %v1825 = vmul.f32 %v801, %v1697
        %v1826 = vmul.f32 %v802, %v1698
        %v1827 = vmul.f32 %v803, %v1699
        %v1828 = vmul.f32 %v804, %v1700
        %v1829 = vmul.f32 %v805, %v1701
        %v1830 = vmul.f32 %v806, %v1702
        %v1831 = vmul.f32 %v807, %v1703
        %v1832 = vmul.f32 %v808, %v1704
        %v1833 = vmul.f32 %v809, %v1705
        %v1834 = vmul.f32 %v810, %v1706
        %v1835 = vmul.f32 %v811, %v1707
        %v1836 = vmul.f32 %v812, %v1708
        %v1837 = vmul.f32 %v813, %v1709
        %v1838 = vmul.f32 %v814, %v1710
        %v1839 = vmul.f32 %v815, %v1711
        %v1840 = vmul.f32 %v816, %v1712
        %v1841 = vmul.f32 %v817, %v1713
        %v1842 = vmul.f32 %v818, %v1714
        %v1843 = vmul.f32 %v819, %v1715
        %v1844 = vmul.f32 %v820, %v1716
        %v1845 = vmul.f32 %v821, %v1717
        %v1846 = vmul.f32 %v822, %v1718
        %v1847 = vmul.f32 %v823, %v1719
        %v1848 = vmul.f32 %v824, %v1720
        %v1849 = vmul.f32 %v825, %v1721
        %v1850 = vmul.f32 %v826, %v1722
        %v1851 = vmul.f32 %v827, %v1723
        %v1852 = vmul.f32 %v828, %v1724
        %v1853 = vmul.f32 %v829, %v1725
        %v1854 = vmul.f32 %v830, %v1726
        %v1855 = vmul.f32 %v831, %v1727
        %v1856 = vmul.f32 %v832, %v1728
        %v1857 = vmul.f32 %v833, %v1729
        %v1858 = vmul.f32 %v834, %v1730
        %v1859 = vmul.f32 %v835, %v1731
        %v1860 = vmul.f32 %v836, %v1732
        %v1861 = vmul.f32 %v837, %v1733
        %v1862 = vmul.f32 %v838, %v1734
        %v1863 = vmul.f32 %v839, %v1735
        %v1864 = vmul.f32 %v840, %v1736
        %v1865 = vmul.f32 %v841, %v1737
        %v1866 = vmul.f32 %v842, %v1738
        %v1867 = vmul.f32 %v843, %v1739
        %v1868 = vmul.f32 %v844, %v1740
        %v1869 = vmul.f32 %v845, %v1741
        %v1870 = vmul.f32 %v846, %v1742
        %v1871 = vmul.f32 %v847, %v1743
        %v1872 = vmul.f32 %v848, %v1744
        %v1873 = vmul.f32 %v849, %v1745
        %v1874 = vmul.f32 %v850, %v1746
        %v1875 = vmul.f32 %v851, %v1747
        %v1876 = vmul.f32 %v852, %v1748
        %v1877 = vmul.f32 %v853, %v1749
        %v1878 = vmul.f32 %v854, %v1750
        %v1879 = vmul.f32 %v855, %v1751
        %v1880 = vmul.f32 %v856, %v1752
        %v1881 = vmul.f32 %v857, %v1753
        %v1882 = vmul.f32 %v858, %v1754
        %v1883 = vmul.f32 %v859, %v1755
        %v1884 = vmul.f32 %v860, %v1756
        %v1885 = vmul.f32 %v861, %v1757
        %v1886 = vmul.f32 %v862, %v1758
        %v1887 = vmul.f32 %v863, %v1759
        %v1888 = vmul.f32 %v864, %v1760
        %v1889 = vmul.f32 %v865, %v1761
        %v1890 = vmul.f32 %v866, %v1762
        %v1891 = vmul.f32 %v867, %v1763
        %v1892 = vmul.f32 %v868, %v1764
        %v1893 = vmul.f32 %v869, %v1765
        %v1894 = vmul.f32 %v870, %v1766
        %v1895 = vmul.f32 %v871, %v1767
        %v1896 = vmul.f32 %v872, %v1768
        %v1897 = vmul.f32 %v873, %v1769
        %v1898 = vmul.f32 %v874, %v1770
        %v1899 = vmul.f32 %v875, %v1771
        %v1900 = vmul.f32 %v876, %v1772
        %v1901 = vmul.f32 %v877, %v1773
        %v1902 = vmul.f32 %v878, %v1774
        %v1903 = vmul.f32 %v879, %v1775
        %v1904 = vmul.f32 %v880, %v1776
        %v1905 = vmul.f32 %v881, %v1777
        %v1906 = vmul.f32 %v882, %v1778
        %v1907 = vmul.f32 %v883, %v1779
        %v1908 = vmul.f32 %v884, %v1780
        %v1909 = vmul.f32 %v885, %v1781
        %v1910 = vmul.f32 %v886, %v1782
        %v1911 = vmul.f32 %v887, %v1783
        %v1912 = vmul.f32 %v888, %v1784
        %v1913 = vmul.f32 %v889, %v1785
        %v1914 = vmul.f32 %v890, %v1786
        %v1915 = vmul.f32 %v891, %v1787
        %v1916 = vmul.f32 %v892, %v1788
        %v1917 = vmul.f32 %v893, %v1789
        %v1918 = vmul.f32 %v894, %v1790
        %v1919 = vmul.f32 %v895, %v1791
        %v1920 = vmul.f32 %v896, %v1792
        %v1921 = vmul.f32 %v897, %v1793
        %v1922 = vmul.f32 %v898, %v1794
        %v1923 = vmul.f32 %v899, %v1795
        %v1924 = vmul.f32 %v900, %v1796
        %v1925 = vmul.f32 %v901, %v1797
        %v1926 = vmul.f32 %v902, %v1798
        %v1927 = vmul.f32 %v903, %v1799
        %v1928 = vmul.f32 %v904, %v1800
        %v1929 = vmul.f32 %v905, %v1801
        %v1930 = vmul.f32 %v906, %v1802
        %v1931 = vmul.f32 %v907, %v1803
        %v1932 = vmul.f32 %v908, %v1804
        %v1933 = vmul.f32 %v909, %v1805
        %v1934 = vmul.f32 %v910, %v1806
        %v1935 = vmul.f32 %v911, %v1807
        %v1936 = vpack.c.bf16 %v1810, %v1808
        %v1937 = vpack.c.bf16 %v1811, %v1809
        %v1938 = vpack.c.bf16 %v1814, %v1812
        %v1939 = vpack.c.bf16 %v1815, %v1813
        %v1940 = vpack.c.bf16 %v1818, %v1816
        %v1941 = vpack.c.bf16 %v1819, %v1817
        %v1942 = vpack.c.bf16 %v1822, %v1820
        %v1943 = vpack.c.bf16 %v1823, %v1821
        %v1944 = vpack.c.bf16 %v1826, %v1824
        %v1945 = vpack.c.bf16 %v1827, %v1825
        %v1946 = vpack.c.bf16 %v1830, %v1828
        %v1947 = vpack.c.bf16 %v1831, %v1829
        %v1948 = vpack.c.bf16 %v1834, %v1832
        %v1949 = vpack.c.bf16 %v1835, %v1833
        %v1950 = vpack.c.bf16 %v1838, %v1836
        %v1951 = vpack.c.bf16 %v1839, %v1837
        %v1952 = vpack.c.bf16 %v1842, %v1840
        %v1953 = vpack.c.bf16 %v1843, %v1841
        %v1954 = vpack.c.bf16 %v1846, %v1844
        %v1955 = vpack.c.bf16 %v1847, %v1845
        %v1956 = vpack.c.bf16 %v1850, %v1848
        %v1957 = vpack.c.bf16 %v1851, %v1849
        %v1958 = vpack.c.bf16 %v1854, %v1852
        %v1959 = vpack.c.bf16 %v1855, %v1853
        %v1960 = vpack.c.bf16 %v1858, %v1856
        %v1961 = vpack.c.bf16 %v1859, %v1857
        %v1962 = vpack.c.bf16 %v1862, %v1860
        %v1963 = vpack.c.bf16 %v1863, %v1861
        %v1964 = vpack.c.bf16 %v1866, %v1864
        %v1965 = vpack.c.bf16 %v1867, %v1865
        %v1966 = vpack.c.bf16 %v1870, %v1868
        %v1967 = vpack.c.bf16 %v1871, %v1869
        %v1968 = vpack.c.bf16 %v1874, %v1872
        %v1969 = vpack.c.bf16 %v1875, %v1873
        %v1970 = vpack.c.bf16 %v1878, %v1876
        %v1971 = vpack.c.bf16 %v1879, %v1877
        %v1972 = vpack.c.bf16 %v1882, %v1880
        %v1973 = vpack.c.bf16 %v1883, %v1881
        %v1974 = vpack.c.bf16 %v1886, %v1884
        %v1975 = vpack.c.bf16 %v1887, %v1885
        %v1976 = vpack.c.bf16 %v1890, %v1888
        %v1977 = vpack.c.bf16 %v1891, %v1889
        %v1978 = vpack.c.bf16 %v1894, %v1892
        %v1979 = vpack.c.bf16 %v1895, %v1893
        %v1980 = vpack.c.bf16 %v1898, %v1896
        %v1981 = vpack.c.bf16 %v1899, %v1897
        %v1982 = vpack.c.bf16 %v1902, %v1900
        %v1983 = vpack.c.bf16 %v1903, %v1901
        %v1984 = vpack.c.bf16 %v1906, %v1904
        %v1985 = vpack.c.bf16 %v1907, %v1905
        %v1986 = vpack.c.bf16 %v1910, %v1908
        %v1987 = vpack.c.bf16 %v1911, %v1909
        %v1988 = vpack.c.bf16 %v1914, %v1912
        %v1989 = vpack.c.bf16 %v1915, %v1913
        %v1990 = vpack.c.bf16 %v1918, %v1916
        %v1991 = vpack.c.bf16 %v1919, %v1917
        %v1992 = vpack.c.bf16 %v1922, %v1920
        %v1993 = vpack.c.bf16 %v1923, %v1921
        %v1994 = vpack.c.bf16 %v1926, %v1924
        %v1995 = vpack.c.bf16 %v1927, %v1925
        %v1996 = vpack.c.bf16 %v1930, %v1928
        %v1997 = vpack.c.bf16 %v1931, %v1929
        %v1998 = vpack.c.bf16 %v1934, %v1932
        %v1999 = vpack.c.bf16 %v1935, %v1933
        %v2000 = vld [vmem:[%s3] sm:$0xf]
        %v2001 = vld [vmem:[%s3 + $0x4] sm:$0xf]
        %v2002 = vld [vmem:[%s3 + $0x8] sm:$0xf]
        %v2003 = vld [vmem:[%s3 + $0xc] sm:$0xf]
        %v2004 = vld [vmem:[%s3 + $0x10] sm:$0xf]
        %v2005 = vld [vmem:[%s3 + $0x14] sm:$0xf]
        %v2006 = vld [vmem:[%s3 + $0x18] sm:$0xf]
        %v2007 = vld [vmem:[%s3 + $0x1c] sm:$0xf]
        %v2008 = vld [vmem:[%s3 + $0x20] sm:$0xf]
        %v2009 = vld [vmem:[%s3 + $0x24] sm:$0xf]
        %v2010 = vld [vmem:[%s3 + $0x28] sm:$0xf]
        %v2011 = vld [vmem:[%s3 + $0x2c] sm:$0xf]
        %v2012 = vld [vmem:[%s3 + $0x30] sm:$0xf]
        %v2013 = vld [vmem:[%s3 + $0x34] sm:$0xf]
        %v2014 = vld [vmem:[%s3 + $0x38] sm:$0xf]
        %v2015 = vld [vmem:[%s3 + $0x3c] sm:$0xf]
        %v2016 = vld [vmem:[%s3 + $0x40] sm:$0xf]
        %v2017 = vld [vmem:[%s3 + $0x44] sm:$0xf]
        %v2018 = vld [vmem:[%s3 + $0x48] sm:$0xf]
        %v2019 = vld [vmem:[%s3 + $0x4c] sm:$0xf]
        %v2020 = vld [vmem:[%s3 + $0x50] sm:$0xf]
        %v2021 = vld [vmem:[%s3 + $0x54] sm:$0xf]
        %v2022 = vld [vmem:[%s3 + $0x58] sm:$0xf]
        %v2023 = vld [vmem:[%s3 + $0x5c] sm:$0xf]
        %v2024 = vld [vmem:[%s3 + $0x60] sm:$0xf]
        %v2025 = vld [vmem:[%s3 + $0x64] sm:$0xf]
        %v2026 = vld [vmem:[%s3 + $0x68] sm:$0xf]
        %v2027 = vld [vmem:[%s3 + $0x6c] sm:$0xf]
        %v2028 = vld [vmem:[%s3 + $0x70] sm:$0xf]
        %v2029 = vld [vmem:[%s3 + $0x74] sm:$0xf]
        %v2030 = vld [vmem:[%s3 + $0x78] sm:$0xf]
        %v2031 = vld [vmem:[%s3 + $0x7c] sm:$0xf]
        %v2032 = vld [vmem:[%s1 + $0x8] sm:$0xff]
        %v2033 = vld [vmem:[%s1 + $0x18] sm:$0xff]
        %v2034 = vld [vmem:[%s1 + $0x28] sm:$0xff]
        %v2035 = vld [vmem:[%s1 + $0x38] sm:$0xff]
        %v2036 = vld [vmem:[%s1 + $0x48] sm:$0xff]
        %v2037 = vld [vmem:[%s1 + $0x58] sm:$0xff]
        %v2038 = vld [vmem:[%s1 + $0x68] sm:$0xff]
        %v2039 = vld [vmem:[%s1 + $0x78] sm:$0xff]
        %v2040 = vld [vmem:[%s1 + $0x88] sm:$0xff]
        %v2041 = vld [vmem:[%s1 + $0x98] sm:$0xff]
        %v2042 = vld [vmem:[%s1 + $0xa8] sm:$0xff]
        %v2043 = vld [vmem:[%s1 + $0xb8] sm:$0xff]
        %v2044 = vld [vmem:[%s1 + $0xc8] sm:$0xff]
        %v2045 = vld [vmem:[%s1 + $0xd8] sm:$0xff]
        %v2046 = vld [vmem:[%s1 + $0xe8] sm:$0xff]
        %v2047 = vld [vmem:[%s1 + $0xf8] sm:$0xff]
        %v2048 = vld [vmem:[%s2 + $0x2] sm:$0x3]
        %v2050 = vlaneseq
        %v2051 = vshrl.u32 %v2050, 7
        %v2052 = vsub.s32 0, %v2051
        %v2053 = vrot.slane %v2048, %v2052
        %v2054 = vlaneseq
        %v2055 = vshrl.u32 %v2054, 7
        %v2056 = vsub.s32 1, %v2055
        %v2057 = vrot.slane %v2048, %v2056
        %v2076 = vunpack.c.l.b16 %v2032
        %v2077 = vunpack.c.h.b16 %v2032
        %v2078 = vunpack.c.l.b16 %v2033
        %v2079 = vunpack.c.h.b16 %v2033
        %v2080 = vunpack.c.l.b16 %v2034
        %v2081 = vunpack.c.h.b16 %v2034
        %v2082 = vunpack.c.l.b16 %v2035
        %v2083 = vunpack.c.h.b16 %v2035
        %v2084 = vunpack.c.l.b16 %v2036
        %v2085 = vunpack.c.h.b16 %v2036
        %v2086 = vunpack.c.l.b16 %v2037
        %v2087 = vunpack.c.h.b16 %v2037
        %v2088 = vunpack.c.l.b16 %v2038
        %v2089 = vunpack.c.h.b16 %v2038
        %v2090 = vunpack.c.l.b16 %v2039
        %v2091 = vunpack.c.h.b16 %v2039
        %v2092 = vunpack.c.l.b16 %v2040
        %v2093 = vunpack.c.h.b16 %v2040
        %v2094 = vunpack.c.l.b16 %v2041
        %v2095 = vunpack.c.h.b16 %v2041
        %v2096 = vunpack.c.l.b16 %v2042
        %v2097 = vunpack.c.h.b16 %v2042
        %v2098 = vunpack.c.l.b16 %v2043
        %v2099 = vunpack.c.h.b16 %v2043
        %v2100 = vunpack.c.l.b16 %v2044
        %v2101 = vunpack.c.h.b16 %v2044
        %v2102 = vunpack.c.l.b16 %v2045
        %v2103 = vunpack.c.h.b16 %v2045
        %v2104 = vunpack.c.l.b16 %v2046
        %v2105 = vunpack.c.h.b16 %v2046
        %v2106 = vunpack.c.l.b16 %v2047
        %v2107 = vunpack.c.h.b16 %v2047
        %v2108 = vpack.c.b16 %v2078, %v2076
        %v2109 = vpack.c.b16 %v2079, %v2077
        %v2110 = vpack.c.b16 %v2082, %v2080
        %v2111 = vpack.c.b16 %v2083, %v2081
        %v2112 = vpack.c.b16 %v2086, %v2084
        %v2113 = vpack.c.b16 %v2087, %v2085
        %v2114 = vpack.c.b16 %v2090, %v2088
        %v2115 = vpack.c.b16 %v2091, %v2089
        %v2116 = vpack.c.b16 %v2094, %v2092
        %v2117 = vpack.c.b16 %v2095, %v2093
        %v2118 = vpack.c.b16 %v2098, %v2096
        %v2119 = vpack.c.b16 %v2099, %v2097
        %v2120 = vpack.c.b16 %v2102, %v2100
        %v2121 = vpack.c.b16 %v2103, %v2101
        %v2122 = vpack.c.b16 %v2106, %v2104
        %v2123 = vpack.c.b16 %v2107, %v2105
        %2140 = vmatprep.subr.bf16.mxu0 %v2123
        %2141 = vmatpush1.bf16.msra.mxu0 %v2122
        %2142 = vmatprep.subr.bf16.mxu0 %v2121
        %2143 = vmatpush1.bf16.msra.mxu0 %v2120
        %2144 = vmatprep.subr.bf16.mxu0 %v2119
        %2145 = vmatpush1.bf16.msra.mxu0 %v2118
        %2146 = vmatprep.subr.bf16.mxu0 %v2117
        %2147 = vmatpush1.bf16.msra.mxu0 %v2116
        %2148 = vmatprep.subr.bf16.mxu0 %v2115
        %2149 = vmatpush1.bf16.msra.mxu0 %v2114
        %2150 = vmatprep.subr.bf16.mxu0 %v2113
        %2151 = vmatpush1.bf16.msra.mxu0 %v2112
        %2152 = vmatprep.subr.bf16.mxu0 %v2111
        %2153 = vmatpush1.bf16.msra.mxu0 %v2110
        %2154 = vmatprep.subr.bf16.mxu0 %v2109
        %2155 = vmatpush1.bf16.msra.mxu0 %v2108
        %2156 = vmatprep.subr.bf16.mxu0 0
        %2157 = vmatpush2.bf16.msra.mxu0 0
        %2158 = vmatprep.subr.bf16.mxu0 0
        %2159 = vmatpush2.bf16.msra.mxu0 0
        %2160 = vmatprep.subr.bf16.mxu0 0
        %2161 = vmatpush2.bf16.msra.mxu0 0
        %2162 = vmatprep.subr.bf16.mxu0 0
        %2163 = vmatpush2.bf16.msra.mxu0 0
        %2164 = vmatprep.subr.bf16.mxu0 0
        %2165 = vmatpush2.bf16.msra.mxu0 0
        %2166 = vmatprep.subr.bf16.mxu0 0
        %2167 = vmatpush2.bf16.msra.mxu0 0
        %2168 = vmatprep.subr.bf16.mxu0 0
        %2169 = vmatpush2.bf16.msra.mxu0 0
        %2170 = vmatprep.subr.bf16.mxu0 0
        %2171 = vmatpush2.bf16.msra.mxu0 0
        %2172 = vmatprep.mubr.bf16.mxu0 0
        %2173 = vmatmul.mubr.bf16.gmra.mxu0 %v291
        %v2174 = vpop.f32.mrf.mxu0
        %v2175 = vadd.f32 %v2053, %v2174
        %v2176 = vpop.f32.mrf.mxu0
        %v2177 = vadd.f32 %v2057, %v2176
        %v2178 = vpop.f32.mrf.mxu0
        %v2179 = vadd.f32 %v2053, %v2178
        %v2180 = vpop.f32.mrf.mxu0
        %v2181 = vadd.f32 %v2057, %v2180
        %2182 = vmatprep.mubr.bf16.mxu0 0
        %2183 = vmatmul.mubr.bf16.gmra.mxu0 %v292
        %v2184 = vpop.f32.mrf.mxu0
        %v2185 = vadd.f32 %v2053, %v2184
        %v2186 = vpop.f32.mrf.mxu0
        %v2187 = vadd.f32 %v2057, %v2186
        %v2188 = vpop.f32.mrf.mxu0
        %v2189 = vadd.f32 %v2053, %v2188
        %v2190 = vpop.f32.mrf.mxu0
        %v2191 = vadd.f32 %v2057, %v2190
        %2192 = vmatprep.mubr.bf16.mxu0 0
        %2193 = vmatmul.mubr.bf16.gmra.mxu0 %v293
        %v2194 = vpop.f32.mrf.mxu0
        %v2195 = vadd.f32 %v2053, %v2194
        %v2196 = vpop.f32.mrf.mxu0
        %v2197 = vadd.f32 %v2057, %v2196
        %v2198 = vpop.f32.mrf.mxu0
        %v2199 = vadd.f32 %v2053, %v2198
        %v2200 = vpop.f32.mrf.mxu0
        %v2201 = vadd.f32 %v2057, %v2200
        %2202 = vmatprep.mubr.bf16.mxu0 0
        %2203 = vmatmul.mubr.bf16.gmra.mxu0 %v294
        %v2204 = vpop.f32.mrf.mxu0
        %v2205 = vadd.f32 %v2053, %v2204
        %v2206 = vpop.f32.mrf.mxu0
        %v2207 = vadd.f32 %v2057, %v2206
        %v2208 = vpop.f32.mrf.mxu0
        %v2209 = vadd.f32 %v2053, %v2208
        %v2210 = vpop.f32.mrf.mxu0
        %v2211 = vadd.f32 %v2057, %v2210
        %2212 = vmatprep.mubr.bf16.mxu0 0
        %2213 = vmatmul.mubr.bf16.gmra.mxu0 %v295
        %v2214 = vpop.f32.mrf.mxu0
        %v2215 = vadd.f32 %v2053, %v2214
        %v2216 = vpop.f32.mrf.mxu0
        %v2217 = vadd.f32 %v2057, %v2216
        %v2218 = vpop.f32.mrf.mxu0
        %v2219 = vadd.f32 %v2053, %v2218
        %v2220 = vpop.f32.mrf.mxu0
        %v2221 = vadd.f32 %v2057, %v2220
        %2222 = vmatprep.mubr.bf16.mxu0 0
        %2223 = vmatmul.mubr.bf16.gmra.mxu0 %v296
        %v2224 = vpop.f32.mrf.mxu0
        %v2225 = vadd.f32 %v2053, %v2224
        %v2226 = vpop.f32.mrf.mxu0
        %v2227 = vadd.f32 %v2057, %v2226
        %v2228 = vpop.f32.mrf.mxu0
        %v2229 = vadd.f32 %v2053, %v2228
        %v2230 = vpop.f32.mrf.mxu0
        %v2231 = vadd.f32 %v2057, %v2230
        %2232 = vmatprep.mubr.bf16.mxu0 0
        %2233 = vmatmul.mubr.bf16.gmra.mxu0 %v297
        %v2234 = vpop.f32.mrf.mxu0
        %v2235 = vadd.f32 %v2053, %v2234
        %v2236 = vpop.f32.mrf.mxu0
        %v2237 = vadd.f32 %v2057, %v2236
        %v2238 = vpop.f32.mrf.mxu0
        %v2239 = vadd.f32 %v2053, %v2238
        %v2240 = vpop.f32.mrf.mxu0
        %v2241 = vadd.f32 %v2057, %v2240
        %2242 = vmatprep.mubr.bf16.mxu0 0
        %2243 = vmatmul.mubr.bf16.gmra.mxu0 %v298
        %v2244 = vpop.f32.mrf.mxu0
        %v2245 = vadd.f32 %v2053, %v2244
        %v2246 = vpop.f32.mrf.mxu0
        %v2247 = vadd.f32 %v2057, %v2246
        %v2248 = vpop.f32.mrf.mxu0
        %v2249 = vadd.f32 %v2053, %v2248
        %v2250 = vpop.f32.mrf.mxu0
        %v2251 = vadd.f32 %v2057, %v2250
        %2252 = vmatprep.mubr.bf16.mxu0 0
        %2253 = vmatmul.mubr.bf16.gmra.mxu0 %v299
        %v2254 = vpop.f32.mrf.mxu0
        %v2255 = vadd.f32 %v2053, %v2254
        %v2256 = vpop.f32.mrf.mxu0
        %v2257 = vadd.f32 %v2057, %v2256
        %v2258 = vpop.f32.mrf.mxu0
        %v2259 = vadd.f32 %v2053, %v2258
        %v2260 = vpop.f32.mrf.mxu0
        %v2261 = vadd.f32 %v2057, %v2260
        %2262 = vmatprep.mubr.bf16.mxu0 0
        %2263 = vmatmul.mubr.bf16.gmra.mxu0 %v300
        %v2264 = vpop.f32.mrf.mxu0
        %v2265 = vadd.f32 %v2053, %v2264
        %v2266 = vpop.f32.mrf.mxu0
        %v2267 = vadd.f32 %v2057, %v2266
        %v2268 = vpop.f32.mrf.mxu0
        %v2269 = vadd.f32 %v2053, %v2268
        %v2270 = vpop.f32.mrf.mxu0
        %v2271 = vadd.f32 %v2057, %v2270
        %2272 = vmatprep.mubr.bf16.mxu0 0
        %2273 = vmatmul.mubr.bf16.gmra.mxu0 %v301
        %v2274 = vpop.f32.mrf.mxu0
        %v2275 = vadd.f32 %v2053, %v2274
        %v2276 = vpop.f32.mrf.mxu0
        %v2277 = vadd.f32 %v2057, %v2276
        %v2278 = vpop.f32.mrf.mxu0
        %v2279 = vadd.f32 %v2053, %v2278
        %v2280 = vpop.f32.mrf.mxu0
        %v2281 = vadd.f32 %v2057, %v2280
        %2282 = vmatprep.mubr.bf16.mxu0 0
        %2283 = vmatmul.mubr.bf16.gmra.mxu0 %v302
        %v2284 = vpop.f32.mrf.mxu0
        %v2285 = vadd.f32 %v2053, %v2284
        %v2286 = vpop.f32.mrf.mxu0
        %v2287 = vadd.f32 %v2057, %v2286
        %v2288 = vpop.f32.mrf.mxu0
        %v2289 = vadd.f32 %v2053, %v2288
        %v2290 = vpop.f32.mrf.mxu0
        %v2291 = vadd.f32 %v2057, %v2290
        %2292 = vmatprep.mubr.bf16.mxu0 0
        %2293 = vmatmul.mubr.bf16.gmra.mxu0 %v303
        %v2294 = vpop.f32.mrf.mxu0
        %v2295 = vadd.f32 %v2053, %v2294
        %v2296 = vpop.f32.mrf.mxu0
        %v2297 = vadd.f32 %v2057, %v2296
        %v2298 = vpop.f32.mrf.mxu0
        %v2299 = vadd.f32 %v2053, %v2298
        %v2300 = vpop.f32.mrf.mxu0
        %v2301 = vadd.f32 %v2057, %v2300
        %2302 = vmatprep.mubr.bf16.mxu0 0
        %2303 = vmatmul.mubr.bf16.gmra.mxu0 %v304
        %v2304 = vpop.f32.mrf.mxu0
        %v2305 = vadd.f32 %v2053, %v2304
        %v2306 = vpop.f32.mrf.mxu0
        %v2307 = vadd.f32 %v2057, %v2306
        %v2308 = vpop.f32.mrf.mxu0
        %v2309 = vadd.f32 %v2053, %v2308
        %v2310 = vpop.f32.mrf.mxu0
        %v2311 = vadd.f32 %v2057, %v2310
        %2312 = vmatprep.mubr.bf16.mxu0 0
        %2313 = vmatmul.mubr.bf16.gmra.mxu0 %v305
        %v2314 = vpop.f32.mrf.mxu0
        %v2315 = vadd.f32 %v2053, %v2314
        %v2316 = vpop.f32.mrf.mxu0
        %v2317 = vadd.f32 %v2057, %v2316
        %v2318 = vpop.f32.mrf.mxu0
        %v2319 = vadd.f32 %v2053, %v2318
        %v2320 = vpop.f32.mrf.mxu0
        %v2321 = vadd.f32 %v2057, %v2320
        %2322 = vmatprep.mubr.bf16.mxu0 0
        %2323 = vmatmul.mubr.bf16.gmra.mxu0 %v306
        %v2324 = vpop.f32.mrf.mxu0
        %v2325 = vadd.f32 %v2053, %v2324
        %v2326 = vpop.f32.mrf.mxu0
        %v2327 = vadd.f32 %v2057, %v2326
        %v2328 = vpop.f32.mrf.mxu0
        %v2329 = vadd.f32 %v2053, %v2328
        %v2330 = vpop.f32.mrf.mxu0
        %v2331 = vadd.f32 %v2057, %v2330
        %2332 = vmatprep.mubr.bf16.mxu0 0
        %2333 = vmatmul.mubr.bf16.gmra.mxu0 %v307
        %v2334 = vpop.f32.mrf.mxu0
        %v2335 = vadd.f32 %v2053, %v2334
        %v2336 = vpop.f32.mrf.mxu0
        %v2337 = vadd.f32 %v2057, %v2336
        %v2338 = vpop.f32.mrf.mxu0
        %v2339 = vadd.f32 %v2053, %v2338
        %v2340 = vpop.f32.mrf.mxu0
        %v2341 = vadd.f32 %v2057, %v2340
        %2342 = vmatprep.mubr.bf16.mxu0 0
        %2343 = vmatmul.mubr.bf16.gmra.mxu0 %v308
        %v2344 = vpop.f32.mrf.mxu0
        %v2345 = vadd.f32 %v2053, %v2344
        %v2346 = vpop.f32.mrf.mxu0
        %v2347 = vadd.f32 %v2057, %v2346
        %v2348 = vpop.f32.mrf.mxu0
        %v2349 = vadd.f32 %v2053, %v2348
        %v2350 = vpop.f32.mrf.mxu0
        %v2351 = vadd.f32 %v2057, %v2350
        %2352 = vmatprep.mubr.bf16.mxu0 0
        %2353 = vmatmul.mubr.bf16.gmra.mxu0 %v309
        %v2354 = vpop.f32.mrf.mxu0
        %v2355 = vadd.f32 %v2053, %v2354
        %v2356 = vpop.f32.mrf.mxu0
        %v2357 = vadd.f32 %v2057, %v2356
        %v2358 = vpop.f32.mrf.mxu0
        %v2359 = vadd.f32 %v2053, %v2358
        %v2360 = vpop.f32.mrf.mxu0
        %v2361 = vadd.f32 %v2057, %v2360
        %2362 = vmatprep.mubr.bf16.mxu0 0
        %2363 = vmatmul.mubr.bf16.gmra.mxu0 %v310
        %v2364 = vpop.f32.mrf.mxu0
        %v2365 = vadd.f32 %v2053, %v2364
        %v2366 = vpop.f32.mrf.mxu0
        %v2367 = vadd.f32 %v2057, %v2366
        %v2368 = vpop.f32.mrf.mxu0
        %v2369 = vadd.f32 %v2053, %v2368
        %v2370 = vpop.f32.mrf.mxu0
        %v2371 = vadd.f32 %v2057, %v2370
        %2372 = vmatprep.mubr.bf16.mxu0 0
        %2373 = vmatmul.mubr.bf16.gmra.mxu0 %v311
        %v2374 = vpop.f32.mrf.mxu0
        %v2375 = vadd.f32 %v2053, %v2374
        %v2376 = vpop.f32.mrf.mxu0
        %v2377 = vadd.f32 %v2057, %v2376
        %v2378 = vpop.f32.mrf.mxu0
        %v2379 = vadd.f32 %v2053, %v2378
        %v2380 = vpop.f32.mrf.mxu0
        %v2381 = vadd.f32 %v2057, %v2380
        %2382 = vmatprep.mubr.bf16.mxu0 0
        %2383 = vmatmul.mubr.bf16.gmra.mxu0 %v312
        %v2384 = vpop.f32.mrf.mxu0
        %v2385 = vadd.f32 %v2053, %v2384
        %v2386 = vpop.f32.mrf.mxu0
        %v2387 = vadd.f32 %v2057, %v2386
        %v2388 = vpop.f32.mrf.mxu0
        %v2389 = vadd.f32 %v2053, %v2388
        %v2390 = vpop.f32.mrf.mxu0
        %v2391 = vadd.f32 %v2057, %v2390
        %2392 = vmatprep.mubr.bf16.mxu0 0
        %2393 = vmatmul.mubr.bf16.gmra.mxu0 %v313
        %v2394 = vpop.f32.mrf.mxu0
        %v2395 = vadd.f32 %v2053, %v2394
        %v2396 = vpop.f32.mrf.mxu0
        %v2397 = vadd.f32 %v2057, %v2396
        %v2398 = vpop.f32.mrf.mxu0
        %v2399 = vadd.f32 %v2053, %v2398
        %v2400 = vpop.f32.mrf.mxu0
        %v2401 = vadd.f32 %v2057, %v2400
        %2402 = vmatprep.mubr.bf16.mxu0 0
        %2403 = vmatmul.mubr.bf16.gmra.mxu0 %v314
        %v2404 = vpop.f32.mrf.mxu0
        %v2405 = vadd.f32 %v2053, %v2404
        %v2406 = vpop.f32.mrf.mxu0
        %v2407 = vadd.f32 %v2057, %v2406
        %v2408 = vpop.f32.mrf.mxu0
        %v2409 = vadd.f32 %v2053, %v2408
        %v2410 = vpop.f32.mrf.mxu0
        %v2411 = vadd.f32 %v2057, %v2410
        %2412 = vmatprep.mubr.bf16.mxu0 0
        %2413 = vmatmul.mubr.bf16.gmra.mxu0 %v315
        %v2414 = vpop.f32.mrf.mxu0
        %v2415 = vadd.f32 %v2053, %v2414
        %v2416 = vpop.f32.mrf.mxu0
        %v2417 = vadd.f32 %v2057, %v2416
        %v2418 = vpop.f32.mrf.mxu0
        %v2419 = vadd.f32 %v2053, %v2418
        %v2420 = vpop.f32.mrf.mxu0
        %v2421 = vadd.f32 %v2057, %v2420
        %2422 = vmatprep.mubr.bf16.mxu0 0
        %2423 = vmatmul.mubr.bf16.gmra.mxu0 %v316
        %v2424 = vpop.f32.mrf.mxu0
        %v2425 = vadd.f32 %v2053, %v2424
        %v2426 = vpop.f32.mrf.mxu0
        %v2427 = vadd.f32 %v2057, %v2426
        %v2428 = vpop.f32.mrf.mxu0
        %v2429 = vadd.f32 %v2053, %v2428
        %v2430 = vpop.f32.mrf.mxu0
        %v2431 = vadd.f32 %v2057, %v2430
        %2432 = vmatprep.mubr.bf16.mxu0 0
        %2433 = vmatmul.mubr.bf16.gmra.mxu0 %v317
        %v2434 = vpop.f32.mrf.mxu0
        %v2435 = vadd.f32 %v2053, %v2434
        %v2436 = vpop.f32.mrf.mxu0
        %v2437 = vadd.f32 %v2057, %v2436
        %v2438 = vpop.f32.mrf.mxu0
        %v2439 = vadd.f32 %v2053, %v2438
        %v2440 = vpop.f32.mrf.mxu0
        %v2441 = vadd.f32 %v2057, %v2440
        %2442 = vmatprep.mubr.bf16.mxu0 0
        %2443 = vmatmul.mubr.bf16.gmra.mxu0 %v318
        %v2444 = vpop.f32.mrf.mxu0
        %v2445 = vadd.f32 %v2053, %v2444
        %v2446 = vpop.f32.mrf.mxu0
        %v2447 = vadd.f32 %v2057, %v2446
        %v2448 = vpop.f32.mrf.mxu0
        %v2449 = vadd.f32 %v2053, %v2448
        %v2450 = vpop.f32.mrf.mxu0
        %v2451 = vadd.f32 %v2057, %v2450
        %2452 = vmatprep.mubr.bf16.mxu0 0
        %2453 = vmatmul.mubr.bf16.gmra.mxu0 %v319
        %v2454 = vpop.f32.mrf.mxu0
        %v2455 = vadd.f32 %v2053, %v2454
        %v2456 = vpop.f32.mrf.mxu0
        %v2457 = vadd.f32 %v2057, %v2456
        %v2458 = vpop.f32.mrf.mxu0
        %v2459 = vadd.f32 %v2053, %v2458
        %v2460 = vpop.f32.mrf.mxu0
        %v2461 = vadd.f32 %v2057, %v2460
        %2462 = vmatprep.mubr.bf16.mxu0 0
        %2463 = vmatmul.mubr.bf16.gmra.mxu0 %v320
        %v2464 = vpop.f32.mrf.mxu0
        %v2465 = vadd.f32 %v2053, %v2464
        %v2466 = vpop.f32.mrf.mxu0
        %v2467 = vadd.f32 %v2057, %v2466
        %v2468 = vpop.f32.mrf.mxu0
        %v2469 = vadd.f32 %v2053, %v2468
        %v2470 = vpop.f32.mrf.mxu0
        %v2471 = vadd.f32 %v2057, %v2470
        %2472 = vmatprep.mubr.bf16.mxu0 0
        %2473 = vmatmul.mubr.bf16.gmra.mxu0 %v321
        %v2474 = vpop.f32.mrf.mxu0
        %v2475 = vadd.f32 %v2053, %v2474
        %v2476 = vpop.f32.mrf.mxu0
        %v2477 = vadd.f32 %v2057, %v2476
        %v2478 = vpop.f32.mrf.mxu0
        %v2479 = vadd.f32 %v2053, %v2478
        %v2480 = vpop.f32.mrf.mxu0
        %v2481 = vadd.f32 %v2057, %v2480
        %2482 = vmatprep.mubr.bf16.mxu0 0
        %2483 = vmatmul.mubr.bf16.gmra.mxu0 %v322
        %v2484 = vpop.f32.mrf.mxu0
        %v2485 = vadd.f32 %v2053, %v2484
        %v2486 = vpop.f32.mrf.mxu0
        %v2487 = vadd.f32 %v2057, %v2486
        %v2488 = vpop.f32.mrf.mxu0
        %v2489 = vadd.f32 %v2053, %v2488
        %v2490 = vpop.f32.mrf.mxu0
        %v2491 = vadd.f32 %v2057, %v2490
        %2492 = vdwg.mxu0
        %v2493 = vmul.f32 %v2175, 0.5
        %v2494 = vmul.f32 %v2177, 0.5
        %v2495 = vmul.f32 %v2179, 0.5
        %v2496 = vmul.f32 %v2181, 0.5
        %v2497 = vmul.f32 %v2185, 0.5
        %v2498 = vmul.f32 %v2187, 0.5
        %v2499 = vmul.f32 %v2189, 0.5
        %v2500 = vmul.f32 %v2191, 0.5
        %v2501 = vmul.f32 %v2195, 0.5
        %v2502 = vmul.f32 %v2197, 0.5
        %v2503 = vmul.f32 %v2199, 0.5
        %v2504 = vmul.f32 %v2201, 0.5
        %v2505 = vmul.f32 %v2205, 0.5
        %v2506 = vmul.f32 %v2207, 0.5
        %v2507 = vmul.f32 %v2209, 0.5
        %v2508 = vmul.f32 %v2211, 0.5
        %v2509 = vmul.f32 %v2215, 0.5
        %v2510 = vmul.f32 %v2217, 0.5
        %v2511 = vmul.f32 %v2219, 0.5
        %v2512 = vmul.f32 %v2221, 0.5
        %v2513 = vmul.f32 %v2225, 0.5
        %v2514 = vmul.f32 %v2227, 0.5
        %v2515 = vmul.f32 %v2229, 0.5
        %v2516 = vmul.f32 %v2231, 0.5
        %v2517 = vmul.f32 %v2235, 0.5
        %v2518 = vmul.f32 %v2237, 0.5
        %v2519 = vmul.f32 %v2239, 0.5
        %v2520 = vmul.f32 %v2241, 0.5
        %v2521 = vmul.f32 %v2245, 0.5
        %v2522 = vmul.f32 %v2247, 0.5
        %v2523 = vmul.f32 %v2249, 0.5
        %v2524 = vmul.f32 %v2251, 0.5
        %v2525 = vmul.f32 %v2255, 0.5
        %v2526 = vmul.f32 %v2257, 0.5
        %v2527 = vmul.f32 %v2259, 0.5
        %v2528 = vmul.f32 %v2261, 0.5
        %v2529 = vmul.f32 %v2265, 0.5
        %v2530 = vmul.f32 %v2267, 0.5
        %v2531 = vmul.f32 %v2269, 0.5
        %v2532 = vmul.f32 %v2271, 0.5
        %v2533 = vmul.f32 %v2275, 0.5
        %v2534 = vmul.f32 %v2277, 0.5
        %v2535 = vmul.f32 %v2279, 0.5
        %v2536 = vmul.f32 %v2281, 0.5
        %v2537 = vmul.f32 %v2285, 0.5
        %v2538 = vmul.f32 %v2287, 0.5
        %v2539 = vmul.f32 %v2289, 0.5
        %v2540 = vmul.f32 %v2291, 0.5
        %v2541 = vmul.f32 %v2295, 0.5
        %v2542 = vmul.f32 %v2297, 0.5
        %v2543 = vmul.f32 %v2299, 0.5
        %v2544 = vmul.f32 %v2301, 0.5
        %v2545 = vmul.f32 %v2305, 0.5
        %v2546 = vmul.f32 %v2307, 0.5
        %v2547 = vmul.f32 %v2309, 0.5
        %v2548 = vmul.f32 %v2311, 0.5
        %v2549 = vmul.f32 %v2315, 0.5
        %v2550 = vmul.f32 %v2317, 0.5
        %v2551 = vmul.f32 %v2319, 0.5
        %v2552 = vmul.f32 %v2321, 0.5
        %v2553 = vmul.f32 %v2325, 0.5
        %v2554 = vmul.f32 %v2327, 0.5
        %v2555 = vmul.f32 %v2329, 0.5
        %v2556 = vmul.f32 %v2331, 0.5
        %v2557 = vmul.f32 %v2335, 0.5
        %v2558 = vmul.f32 %v2337, 0.5
        %v2559 = vmul.f32 %v2339, 0.5
        %v2560 = vmul.f32 %v2341, 0.5
        %v2561 = vmul.f32 %v2345, 0.5
        %v2562 = vmul.f32 %v2347, 0.5
        %v2563 = vmul.f32 %v2349, 0.5
        %v2564 = vmul.f32 %v2351, 0.5
        %v2565 = vmul.f32 %v2355, 0.5
        %v2566 = vmul.f32 %v2357, 0.5
        %v2567 = vmul.f32 %v2359, 0.5
        %v2568 = vmul.f32 %v2361, 0.5
        %v2569 = vmul.f32 %v2365, 0.5
        %v2570 = vmul.f32 %v2367, 0.5
        %v2571 = vmul.f32 %v2369, 0.5
        %v2572 = vmul.f32 %v2371, 0.5
        %v2573 = vmul.f32 %v2375, 0.5
        %v2574 = vmul.f32 %v2377, 0.5
        %v2575 = vmul.f32 %v2379, 0.5
        %v2576 = vmul.f32 %v2381, 0.5
        %v2577 = vmul.f32 %v2385, 0.5
        %v2578 = vmul.f32 %v2387, 0.5
        %v2579 = vmul.f32 %v2389, 0.5
        %v2580 = vmul.f32 %v2391, 0.5
        %v2581 = vmul.f32 %v2395, 0.5
        %v2582 = vmul.f32 %v2397, 0.5
        %v2583 = vmul.f32 %v2399, 0.5
        %v2584 = vmul.f32 %v2401, 0.5
        %v2585 = vmul.f32 %v2405, 0.5
        %v2586 = vmul.f32 %v2407, 0.5
        %v2587 = vmul.f32 %v2409, 0.5
        %v2588 = vmul.f32 %v2411, 0.5
        %v2589 = vmul.f32 %v2415, 0.5
        %v2590 = vmul.f32 %v2417, 0.5
        %v2591 = vmul.f32 %v2419, 0.5
        %v2592 = vmul.f32 %v2421, 0.5
        %v2593 = vmul.f32 %v2425, 0.5
        %v2594 = vmul.f32 %v2427, 0.5
        %v2595 = vmul.f32 %v2429, 0.5
        %v2596 = vmul.f32 %v2431, 0.5
        %v2597 = vmul.f32 %v2435, 0.5
        %v2598 = vmul.f32 %v2437, 0.5
        %v2599 = vmul.f32 %v2439, 0.5
        %v2600 = vmul.f32 %v2441, 0.5
        %v2601 = vmul.f32 %v2445, 0.5
        %v2602 = vmul.f32 %v2447, 0.5
        %v2603 = vmul.f32 %v2449, 0.5
        %v2604 = vmul.f32 %v2451, 0.5
        %v2605 = vmul.f32 %v2455, 0.5
        %v2606 = vmul.f32 %v2457, 0.5
        %v2607 = vmul.f32 %v2459, 0.5
        %v2608 = vmul.f32 %v2461, 0.5
        %v2609 = vmul.f32 %v2465, 0.5
        %v2610 = vmul.f32 %v2467, 0.5
        %v2611 = vmul.f32 %v2469, 0.5
        %v2612 = vmul.f32 %v2471, 0.5
        %v2613 = vmul.f32 %v2475, 0.5
        %v2614 = vmul.f32 %v2477, 0.5
        %v2615 = vmul.f32 %v2479, 0.5
        %v2616 = vmul.f32 %v2481, 0.5
        %v2617 = vmul.f32 %v2485, 0.5
        %v2618 = vmul.f32 %v2487, 0.5
        %v2619 = vmul.f32 %v2489, 0.5
        %v2620 = vmul.f32 %v2491, 0.5
        %v2621 = vmul.f32 %v2175, 0.044715
        %v2622 = vmul.f32 %v2177, 0.044715
        %v2623 = vmul.f32 %v2179, 0.044715
        %v2624 = vmul.f32 %v2181, 0.044715
        %v2625 = vmul.f32 %v2185, 0.044715
        %v2626 = vmul.f32 %v2187, 0.044715
        %v2627 = vmul.f32 %v2189, 0.044715
        %v2628 = vmul.f32 %v2191, 0.044715
        %v2629 = vmul.f32 %v2195, 0.044715
        %v2630 = vmul.f32 %v2197, 0.044715
        %v2631 = vmul.f32 %v2199, 0.044715
        %v2632 = vmul.f32 %v2201, 0.044715
        %v2633 = vmul.f32 %v2205, 0.044715
        %v2634 = vmul.f32 %v2207, 0.044715
        %v2635 = vmul.f32 %v2209, 0.044715
        %v2636 = vmul.f32 %v2211, 0.044715
        %v2637 = vmul.f32 %v2215, 0.044715
        %v2638 = vmul.f32 %v2217, 0.044715
        %v2639 = vmul.f32 %v2219, 0.044715
        %v2640 = vmul.f32 %v2221, 0.044715
        %v2641 = vmul.f32 %v2225, 0.044715
        %v2642 = vmul.f32 %v2227, 0.044715
        %v2643 = vmul.f32 %v2229, 0.044715
        %v2644 = vmul.f32 %v2231, 0.044715
        %v2645 = vmul.f32 %v2235, 0.044715
        %v2646 = vmul.f32 %v2237, 0.044715
        %v2647 = vmul.f32 %v2239, 0.044715
        %v2648 = vmul.f32 %v2241, 0.044715
        %v2649 = vmul.f32 %v2245, 0.044715
        %v2650 = vmul.f32 %v2247, 0.044715
        %v2651 = vmul.f32 %v2249, 0.044715
        %v2652 = vmul.f32 %v2251, 0.044715
        %v2653 = vmul.f32 %v2255, 0.044715
        %v2654 = vmul.f32 %v2257, 0.044715
        %v2655 = vmul.f32 %v2259, 0.044715
        %v2656 = vmul.f32 %v2261, 0.044715
        %v2657 = vmul.f32 %v2265, 0.044715
        %v2658 = vmul.f32 %v2267, 0.044715
        %v2659 = vmul.f32 %v2269, 0.044715
        %v2660 = vmul.f32 %v2271, 0.044715
        %v2661 = vmul.f32 %v2275, 0.044715
        %v2662 = vmul.f32 %v2277, 0.044715
        %v2663 = vmul.f32 %v2279, 0.044715
        %v2664 = vmul.f32 %v2281, 0.044715
        %v2665 = vmul.f32 %v2285, 0.044715
        %v2666 = vmul.f32 %v2287, 0.044715
        %v2667 = vmul.f32 %v2289, 0.044715
        %v2668 = vmul.f32 %v2291, 0.044715
        %v2669 = vmul.f32 %v2295, 0.044715
        %v2670 = vmul.f32 %v2297, 0.044715
        %v2671 = vmul.f32 %v2299, 0.044715
        %v2672 = vmul.f32 %v2301, 0.044715
        %v2673 = vmul.f32 %v2305, 0.044715
        %v2674 = vmul.f32 %v2307, 0.044715
        %v2675 = vmul.f32 %v2309, 0.044715
        %v2676 = vmul.f32 %v2311, 0.044715
        %v2677 = vmul.f32 %v2315, 0.044715
        %v2678 = vmul.f32 %v2317, 0.044715
        %v2679 = vmul.f32 %v2319, 0.044715
        %v2680 = vmul.f32 %v2321, 0.044715
        %v2681 = vmul.f32 %v2325, 0.044715
        %v2682 = vmul.f32 %v2327, 0.044715
        %v2683 = vmul.f32 %v2329, 0.044715
        %v2684 = vmul.f32 %v2331, 0.044715
        %v2685 = vmul.f32 %v2335, 0.044715
        %v2686 = vmul.f32 %v2337, 0.044715
        %v2687 = vmul.f32 %v2339, 0.044715
        %v2688 = vmul.f32 %v2341, 0.044715
        %v2689 = vmul.f32 %v2345, 0.044715
        %v2690 = vmul.f32 %v2347, 0.044715
        %v2691 = vmul.f32 %v2349, 0.044715
        %v2692 = vmul.f32 %v2351, 0.044715
        %v2693 = vmul.f32 %v2355, 0.044715
        %v2694 = vmul.f32 %v2357, 0.044715
        %v2695 = vmul.f32 %v2359, 0.044715
        %v2696 = vmul.f32 %v2361, 0.044715
        %v2697 = vmul.f32 %v2365, 0.044715
        %v2698 = vmul.f32 %v2367, 0.044715
        %v2699 = vmul.f32 %v2369, 0.044715
        %v2700 = vmul.f32 %v2371, 0.044715
        %v2701 = vmul.f32 %v2375, 0.044715
        %v2702 = vmul.f32 %v2377, 0.044715
        %v2703 = vmul.f32 %v2379, 0.044715
        %v2704 = vmul.f32 %v2381, 0.044715
        %v2705 = vmul.f32 %v2385, 0.044715
        %v2706 = vmul.f32 %v2387, 0.044715
        %v2707 = vmul.f32 %v2389, 0.044715
        %v2708 = vmul.f32 %v2391, 0.044715
        %v2709 = vmul.f32 %v2395, 0.044715
        %v2710 = vmul.f32 %v2397, 0.044715
        %v2711 = vmul.f32 %v2399, 0.044715
        %v2712 = vmul.f32 %v2401, 0.044715
        %v2713 = vmul.f32 %v2405, 0.044715
        %v2714 = vmul.f32 %v2407, 0.044715
        %v2715 = vmul.f32 %v2409, 0.044715
        %v2716 = vmul.f32 %v2411, 0.044715
        %v2717 = vmul.f32 %v2415, 0.044715
        %v2718 = vmul.f32 %v2417, 0.044715
        %v2719 = vmul.f32 %v2419, 0.044715
        %v2720 = vmul.f32 %v2421, 0.044715
        %v2721 = vmul.f32 %v2425, 0.044715
        %v2722 = vmul.f32 %v2427, 0.044715
        %v2723 = vmul.f32 %v2429, 0.044715
        %v2724 = vmul.f32 %v2431, 0.044715
        %v2725 = vmul.f32 %v2435, 0.044715
        %v2726 = vmul.f32 %v2437, 0.044715
        %v2727 = vmul.f32 %v2439, 0.044715
        %v2728 = vmul.f32 %v2441, 0.044715
        %v2729 = vmul.f32 %v2445, 0.044715
        %v2730 = vmul.f32 %v2447, 0.044715
        %v2731 = vmul.f32 %v2449, 0.044715
        %v2732 = vmul.f32 %v2451, 0.044715
        %v2733 = vmul.f32 %v2455, 0.044715
        %v2734 = vmul.f32 %v2457, 0.044715
        %v2735 = vmul.f32 %v2459, 0.044715
        %v2736 = vmul.f32 %v2461, 0.044715
        %v2737 = vmul.f32 %v2465, 0.044715
        %v2738 = vmul.f32 %v2467, 0.044715
        %v2739 = vmul.f32 %v2469, 0.044715
        %v2740 = vmul.f32 %v2471, 0.044715
        %v2741 = vmul.f32 %v2475, 0.044715
        %v2742 = vmul.f32 %v2477, 0.044715
        %v2743 = vmul.f32 %v2479, 0.044715
        %v2744 = vmul.f32 %v2481, 0.044715
        %v2745 = vmul.f32 %v2485, 0.044715
        %v2746 = vmul.f32 %v2487, 0.044715
        %v2747 = vmul.f32 %v2489, 0.044715
        %v2748 = vmul.f32 %v2491, 0.044715
        %v2749 = vmul.f32 %v2621, %v2175
        %v2750 = vmul.f32 %v2622, %v2177
        %v2751 = vmul.f32 %v2623, %v2179
        %v2752 = vmul.f32 %v2624, %v2181
        %v2753 = vmul.f32 %v2625, %v2185
        %v2754 = vmul.f32 %v2626, %v2187
        %v2755 = vmul.f32 %v2627, %v2189
        %v2756 = vmul.f32 %v2628, %v2191
        %v2757 = vmul.f32 %v2629, %v2195
        %v2758 = vmul.f32 %v2630, %v2197
        %v2759 = vmul.f32 %v2631, %v2199
        %v2760 = vmul.f32 %v2632, %v2201
        %v2761 = vmul.f32 %v2633, %v2205
        %v2762 = vmul.f32 %v2634, %v2207
        %v2763 = vmul.f32 %v2635, %v2209
        %v2764 = vmul.f32 %v2636, %v2211
        %v2765 = vmul.f32 %v2637, %v2215
        %v2766 = vmul.f32 %v2638, %v2217
        %v2767 = vmul.f32 %v2639, %v2219
        %v2768 = vmul.f32 %v2640, %v2221
        %v2769 = vmul.f32 %v2641, %v2225
        %v2770 = vmul.f32 %v2642, %v2227
        %v2771 = vmul.f32 %v2643, %v2229
        %v2772 = vmul.f32 %v2644, %v2231
        %v2773 = vmul.f32 %v2645, %v2235
        %v2774 = vmul.f32 %v2646, %v2237
        %v2775 = vmul.f32 %v2647, %v2239
        %v2776 = vmul.f32 %v2648, %v2241
        %v2777 = vmul.f32 %v2649, %v2245
        %v2778 = vmul.f32 %v2650, %v2247
        %v2779 = vmul.f32 %v2651, %v2249
        %v2780 = vmul.f32 %v2652, %v2251
        %v2781 = vmul.f32 %v2653, %v2255
        %v2782 = vmul.f32 %v2654, %v2257
        %v2783 = vmul.f32 %v2655, %v2259
        %v2784 = vmul.f32 %v2656, %v2261
        %v2785 = vmul.f32 %v2657, %v2265
        %v2786 = vmul.f32 %v2658, %v2267
        %v2787 = vmul.f32 %v2659, %v2269
        %v2788 = vmul.f32 %v2660, %v2271
        %v2789 = vmul.f32 %v2661, %v2275
        %v2790 = vmul.f32 %v2662, %v2277
        %v2791 = vmul.f32 %v2663, %v2279
        %v2792 = vmul.f32 %v2664, %v2281
        %v2793 = vmul.f32 %v2665, %v2285
        %v2794 = vmul.f32 %v2666, %v2287
        %v2795 = vmul.f32 %v2667, %v2289
        %v2796 = vmul.f32 %v2668, %v2291
        %v2797 = vmul.f32 %v2669, %v2295
        %v2798 = vmul.f32 %v2670, %v2297
        %v2799 = vmul.f32 %v2671, %v2299
        %v2800 = vmul.f32 %v2672, %v2301
        %v2801 = vmul.f32 %v2673, %v2305
        %v2802 = vmul.f32 %v2674, %v2307
        %v2803 = vmul.f32 %v2675, %v2309
        %v2804 = vmul.f32 %v2676, %v2311
        %v2805 = vmul.f32 %v2677, %v2315
        %v2806 = vmul.f32 %v2678, %v2317
        %v2807 = vmul.f32 %v2679, %v2319
        %v2808 = vmul.f32 %v2680, %v2321
        %v2809 = vmul.f32 %v2681, %v2325
        %v2810 = vmul.f32 %v2682, %v2327
        %v2811 = vmul.f32 %v2683, %v2329
        %v2812 = vmul.f32 %v2684, %v2331
        %v2813 = vmul.f32 %v2685, %v2335
        %v2814 = vmul.f32 %v2686, %v2337
        %v2815 = vmul.f32 %v2687, %v2339
        %v2816 = vmul.f32 %v2688, %v2341
        %v2817 = vmul.f32 %v2689, %v2345
        %v2818 = vmul.f32 %v2690, %v2347
        %v2819 = vmul.f32 %v2691, %v2349
        %v2820 = vmul.f32 %v2692, %v2351
        %v2821 = vmul.f32 %v2693, %v2355
        %v2822 = vmul.f32 %v2694, %v2357
        %v2823 = vmul.f32 %v2695, %v2359
        %v2824 = vmul.f32 %v2696, %v2361
        %v2825 = vmul.f32 %v2697, %v2365
        %v2826 = vmul.f32 %v2698, %v2367
        %v2827 = vmul.f32 %v2699, %v2369
        %v2828 = vmul.f32 %v2700, %v2371
        %v2829 = vmul.f32 %v2701, %v2375
        %v2830 = vmul.f32 %v2702, %v2377
        %v2831 = vmul.f32 %v2703, %v2379
        %v2832 = vmul.f32 %v2704, %v2381
        %v2833 = vmul.f32 %v2705, %v2385
        %v2834 = vmul.f32 %v2706, %v2387
        %v2835 = vmul.f32 %v2707, %v2389
        %v2836 = vmul.f32 %v2708, %v2391
        %v2837 = vmul.f32 %v2709, %v2395
        %v2838 = vmul.f32 %v2710, %v2397
        %v2839 = vmul.f32 %v2711, %v2399
        %v2840 = vmul.f32 %v2712, %v2401
        %v2841 = vmul.f32 %v2713, %v2405
        %v2842 = vmul.f32 %v2714, %v2407
        %v2843 = vmul.f32 %v2715, %v2409
        %v2844 = vmul.f32 %v2716, %v2411
        %v2845 = vmul.f32 %v2717, %v2415
        %v2846 = vmul.f32 %v2718, %v2417
        %v2847 = vmul.f32 %v2719, %v2419
        %v2848 = vmul.f32 %v2720, %v2421
        %v2849 = vmul.f32 %v2721, %v2425
        %v2850 = vmul.f32 %v2722, %v2427
        %v2851 = vmul.f32 %v2723, %v2429
        %v2852 = vmul.f32 %v2724, %v2431
        %v2853 = vmul.f32 %v2725, %v2435
        %v2854 = vmul.f32 %v2726, %v2437
        %v2855 = vmul.f32 %v2727, %v2439
        %v2856 = vmul.f32 %v2728, %v2441
        %v2857 = vmul.f32 %v2729, %v2445
        %v2858 = vmul.f32 %v2730, %v2447
        %v2859 = vmul.f32 %v2731, %v2449
        %v2860 = vmul.f32 %v2732, %v2451
        %v2861 = vmul.f32 %v2733, %v2455
        %v2862 = vmul.f32 %v2734, %v2457
        %v2863 = vmul.f32 %v2735, %v2459
        %v2864 = vmul.f32 %v2736, %v2461
        %v2865 = vmul.f32 %v2737, %v2465
        %v2866 = vmul.f32 %v2738, %v2467
        %v2867 = vmul.f32 %v2739, %v2469
        %v2868 = vmul.f32 %v2740, %v2471
        %v2869 = vmul.f32 %v2741, %v2475
        %v2870 = vmul.f32 %v2742, %v2477
        %v2871 = vmul.f32 %v2743, %v2479
        %v2872 = vmul.f32 %v2744, %v2481
        %v2873 = vmul.f32 %v2745, %v2485
        %v2874 = vmul.f32 %v2746, %v2487
        %v2875 = vmul.f32 %v2747, %v2489
        %v2876 = vmul.f32 %v2748, %v2491
        %v2877 = vmul.f32 %v2749, %v2175
        %v2878 = vmul.f32 %v2750, %v2177
        %v2879 = vmul.f32 %v2751, %v2179
        %v2880 = vmul.f32 %v2752, %v2181
        %v2881 = vmul.f32 %v2753, %v2185
        %v2882 = vmul.f32 %v2754, %v2187
        %v2883 = vmul.f32 %v2755, %v2189
        %v2884 = vmul.f32 %v2756, %v2191
        %v2885 = vmul.f32 %v2757, %v2195
        %v2886 = vmul.f32 %v2758, %v2197
        %v2887 = vmul.f32 %v2759, %v2199
        %v2888 = vmul.f32 %v2760, %v2201
        %v2889 = vmul.f32 %v2761, %v2205
        %v2890 = vmul.f32 %v2762, %v2207
        %v2891 = vmul.f32 %v2763, %v2209
        %v2892 = vmul.f32 %v2764, %v2211
        %v2893 = vmul.f32 %v2765, %v2215
        %v2894 = vmul.f32 %v2766, %v2217
        %v2895 = vmul.f32 %v2767, %v2219
        %v2896 = vmul.f32 %v2768, %v2221
        %v2897 = vmul.f32 %v2769, %v2225
        %v2898 = vmul.f32 %v2770, %v2227
        %v2899 = vmul.f32 %v2771, %v2229
        %v2900 = vmul.f32 %v2772, %v2231
        %v2901 = vmul.f32 %v2773, %v2235
        %v2902 = vmul.f32 %v2774, %v2237
        %v2903 = vmul.f32 %v2775, %v2239
        %v2904 = vmul.f32 %v2776, %v2241
        %v2905 = vmul.f32 %v2777, %v2245
        %v2906 = vmul.f32 %v2778, %v2247
        %v2907 = vmul.f32 %v2779, %v2249
        %v2908 = vmul.f32 %v2780, %v2251
        %v2909 = vmul.f32 %v2781, %v2255
        %v2910 = vmul.f32 %v2782, %v2257
        %v2911 = vmul.f32 %v2783, %v2259
        %v2912 = vmul.f32 %v2784, %v2261
        %v2913 = vmul.f32 %v2785, %v2265
        %v2914 = vmul.f32 %v2786, %v2267
        %v2915 = vmul.f32 %v2787, %v2269
        %v2916 = vmul.f32 %v2788, %v2271
        %v2917 = vmul.f32 %v2789, %v2275
        %v2918 = vmul.f32 %v2790, %v2277
        %v2919 = vmul.f32 %v2791, %v2279
        %v2920 = vmul.f32 %v2792, %v2281
        %v2921 = vmul.f32 %v2793, %v2285
        %v2922 = vmul.f32 %v2794, %v2287
        %v2923 = vmul.f32 %v2795, %v2289
        %v2924 = vmul.f32 %v2796, %v2291
        %v2925 = vmul.f32 %v2797, %v2295
        %v2926 = vmul.f32 %v2798, %v2297
        %v2927 = vmul.f32 %v2799, %v2299
        %v2928 = vmul.f32 %v2800, %v2301
        %v2929 = vmul.f32 %v2801, %v2305
        %v2930 = vmul.f32 %v2802, %v2307
        %v2931 = vmul.f32 %v2803, %v2309
        %v2932 = vmul.f32 %v2804, %v2311
        %v2933 = vmul.f32 %v2805, %v2315
        %v2934 = vmul.f32 %v2806, %v2317
        %v2935 = vmul.f32 %v2807, %v2319
        %v2936 = vmul.f32 %v2808, %v2321
        %v2937 = vmul.f32 %v2809, %v2325
        %v2938 = vmul.f32 %v2810, %v2327
        %v2939 = vmul.f32 %v2811, %v2329
        %v2940 = vmul.f32 %v2812, %v2331
        %v2941 = vmul.f32 %v2813, %v2335
        %v2942 = vmul.f32 %v2814, %v2337
        %v2943 = vmul.f32 %v2815, %v2339
        %v2944 = vmul.f32 %v2816, %v2341
        %v2945 = vmul.f32 %v2817, %v2345
        %v2946 = vmul.f32 %v2818, %v2347
        %v2947 = vmul.f32 %v2819, %v2349
        %v2948 = vmul.f32 %v2820, %v2351
        %v2949 = vmul.f32 %v2821, %v2355
        %v2950 = vmul.f32 %v2822, %v2357
        %v2951 = vmul.f32 %v2823, %v2359
        %v2952 = vmul.f32 %v2824, %v2361
        %v2953 = vmul.f32 %v2825, %v2365
        %v2954 = vmul.f32 %v2826, %v2367
        %v2955 = vmul.f32 %v2827, %v2369
        %v2956 = vmul.f32 %v2828, %v2371
        %v2957 = vmul.f32 %v2829, %v2375
        %v2958 = vmul.f32 %v2830, %v2377
        %v2959 = vmul.f32 %v2831, %v2379
        %v2960 = vmul.f32 %v2832, %v2381
        %v2961 = vmul.f32 %v2833, %v2385
        %v2962 = vmul.f32 %v2834, %v2387
        %v2963 = vmul.f32 %v2835, %v2389
        %v2964 = vmul.f32 %v2836, %v2391
        %v2965 = vmul.f32 %v2837, %v2395
        %v2966 = vmul.f32 %v2838, %v2397
        %v2967 = vmul.f32 %v2839, %v2399
        %v2968 = vmul.f32 %v2840, %v2401
        %v2969 = vmul.f32 %v2841, %v2405
        %v2970 = vmul.f32 %v2842, %v2407
        %v2971 = vmul.f32 %v2843, %v2409
        %v2972 = vmul.f32 %v2844, %v2411
        %v2973 = vmul.f32 %v2845, %v2415
        %v2974 = vmul.f32 %v2846, %v2417
        %v2975 = vmul.f32 %v2847, %v2419
        %v2976 = vmul.f32 %v2848, %v2421
        %v2977 = vmul.f32 %v2849, %v2425
        %v2978 = vmul.f32 %v2850, %v2427
        %v2979 = vmul.f32 %v2851, %v2429
        %v2980 = vmul.f32 %v2852, %v2431
        %v2981 = vmul.f32 %v2853, %v2435
        %v2982 = vmul.f32 %v2854, %v2437
        %v2983 = vmul.f32 %v2855, %v2439
        %v2984 = vmul.f32 %v2856, %v2441
        %v2985 = vmul.f32 %v2857, %v2445
        %v2986 = vmul.f32 %v2858, %v2447
        %v2987 = vmul.f32 %v2859, %v2449
        %v2988 = vmul.f32 %v2860, %v2451
        %v2989 = vmul.f32 %v2861, %v2455
        %v2990 = vmul.f32 %v2862, %v2457
        %v2991 = vmul.f32 %v2863, %v2459
        %v2992 = vmul.f32 %v2864, %v2461
        %v2993 = vmul.f32 %v2865, %v2465
        %v2994 = vmul.f32 %v2866, %v2467
        %v2995 = vmul.f32 %v2867, %v2469
        %v2996 = vmul.f32 %v2868, %v2471
        %v2997 = vmul.f32 %v2869, %v2475
        %v2998 = vmul.f32 %v2870, %v2477
        %v2999 = vmul.f32 %v2871, %v2479
        %v3000 = vmul.f32 %v2872, %v2481
        %v3001 = vmul.f32 %v2873, %v2485
        %v3002 = vmul.f32 %v2874, %v2487
        %v3003 = vmul.f32 %v2875, %v2489
        %v3004 = vmul.f32 %v2876, %v2491
        %v3005 = vadd.f32 %v2175, %v2877
        %v3006 = vadd.f32 %v2177, %v2878
        %v3007 = vadd.f32 %v2179, %v2879
        %v3008 = vadd.f32 %v2181, %v2880
        %v3009 = vadd.f32 %v2185, %v2881
        %v3010 = vadd.f32 %v2187, %v2882
        %v3011 = vadd.f32 %v2189, %v2883
        %v3012 = vadd.f32 %v2191, %v2884
        %v3013 = vadd.f32 %v2195, %v2885
        %v3014 = vadd.f32 %v2197, %v2886
        %v3015 = vadd.f32 %v2199, %v2887
        %v3016 = vadd.f32 %v2201, %v2888
        %v3017 = vadd.f32 %v2205, %v2889
        %v3018 = vadd.f32 %v2207, %v2890
        %v3019 = vadd.f32 %v2209, %v2891
        %v3020 = vadd.f32 %v2211, %v2892
        %v3021 = vadd.f32 %v2215, %v2893
        %v3022 = vadd.f32 %v2217, %v2894
        %v3023 = vadd.f32 %v2219, %v2895
        %v3024 = vadd.f32 %v2221, %v2896
        %v3025 = vadd.f32 %v2225, %v2897
        %v3026 = vadd.f32 %v2227, %v2898
        %v3027 = vadd.f32 %v2229, %v2899
        %v3028 = vadd.f32 %v2231, %v2900
        %v3029 = vadd.f32 %v2235, %v2901
        %v3030 = vadd.f32 %v2237, %v2902
        %v3031 = vadd.f32 %v2239, %v2903
        %v3032 = vadd.f32 %v2241, %v2904
        %v3033 = vadd.f32 %v2245, %v2905
        %v3034 = vadd.f32 %v2247, %v2906
        %v3035 = vadd.f32 %v2249, %v2907
        %v3036 = vadd.f32 %v2251, %v2908
        %v3037 = vadd.f32 %v2255, %v2909
        %v3038 = vadd.f32 %v2257, %v2910
        %v3039 = vadd.f32 %v2259, %v2911
        %v3040 = vadd.f32 %v2261, %v2912
        %v3041 = vadd.f32 %v2265, %v2913
        %v3042 = vadd.f32 %v2267, %v2914
        %v3043 = vadd.f32 %v2269, %v2915
        %v3044 = vadd.f32 %v2271, %v2916
        %v3045 = vadd.f32 %v2275, %v2917
        %v3046 = vadd.f32 %v2277, %v2918
        %v3047 = vadd.f32 %v2279, %v2919
        %v3048 = vadd.f32 %v2281, %v2920
        %v3049 = vadd.f32 %v2285, %v2921
        %v3050 = vadd.f32 %v2287, %v2922
        %v3051 = vadd.f32 %v2289, %v2923
        %v3052 = vadd.f32 %v2291, %v2924
        %v3053 = vadd.f32 %v2295, %v2925
        %v3054 = vadd.f32 %v2297, %v2926
        %v3055 = vadd.f32 %v2299, %v2927
        %v3056 = vadd.f32 %v2301, %v2928
        %v3057 = vadd.f32 %v2305, %v2929
        %v3058 = vadd.f32 %v2307, %v2930
        %v3059 = vadd.f32 %v2309, %v2931
        %v3060 = vadd.f32 %v2311, %v2932
        %v3061 = vadd.f32 %v2315, %v2933
        %v3062 = vadd.f32 %v2317, %v2934
        %v3063 = vadd.f32 %v2319, %v2935
        %v3064 = vadd.f32 %v2321, %v2936
        %v3065 = vadd.f32 %v2325, %v2937
        %v3066 = vadd.f32 %v2327, %v2938
        %v3067 = vadd.f32 %v2329, %v2939
        %v3068 = vadd.f32 %v2331, %v2940
        %v3069 = vadd.f32 %v2335, %v2941
        %v3070 = vadd.f32 %v2337, %v2942
        %v3071 = vadd.f32 %v2339, %v2943
        %v3072 = vadd.f32 %v2341, %v2944
        %v3073 = vadd.f32 %v2345, %v2945
        %v3074 = vadd.f32 %v2347, %v2946
        %v3075 = vadd.f32 %v2349, %v2947
        %v3076 = vadd.f32 %v2351, %v2948
        %v3077 = vadd.f32 %v2355, %v2949
        %v3078 = vadd.f32 %v2357, %v2950
        %v3079 = vadd.f32 %v2359, %v2951
        %v3080 = vadd.f32 %v2361, %v2952
        %v3081 = vadd.f32 %v2365, %v2953
        %v3082 = vadd.f32 %v2367, %v2954
        %v3083 = vadd.f32 %v2369, %v2955
        %v3084 = vadd.f32 %v2371, %v2956
        %v3085 = vadd.f32 %v2375, %v2957
        %v3086 = vadd.f32 %v2377, %v2958
        %v3087 = vadd.f32 %v2379, %v2959
        %v3088 = vadd.f32 %v2381, %v2960
        %v3089 = vadd.f32 %v2385, %v2961
        %v3090 = vadd.f32 %v2387, %v2962
        %v3091 = vadd.f32 %v2389, %v2963
        %v3092 = vadd.f32 %v2391, %v2964
        %v3093 = vadd.f32 %v2395, %v2965
        %v3094 = vadd.f32 %v2397, %v2966
        %v3095 = vadd.f32 %v2399, %v2967
        %v3096 = vadd.f32 %v2401, %v2968
        %v3097 = vadd.f32 %v2405, %v2969
        %v3098 = vadd.f32 %v2407, %v2970
        %v3099 = vadd.f32 %v2409, %v2971
        %v3100 = vadd.f32 %v2411, %v2972
        %v3101 = vadd.f32 %v2415, %v2973
        %v3102 = vadd.f32 %v2417, %v2974
        %v3103 = vadd.f32 %v2419, %v2975
        %v3104 = vadd.f32 %v2421, %v2976
        %v3105 = vadd.f32 %v2425, %v2977
        %v3106 = vadd.f32 %v2427, %v2978
        %v3107 = vadd.f32 %v2429, %v2979
        %v3108 = vadd.f32 %v2431, %v2980
        %v3109 = vadd.f32 %v2435, %v2981
        %v3110 = vadd.f32 %v2437, %v2982
        %v3111 = vadd.f32 %v2439, %v2983
        %v3112 = vadd.f32 %v2441, %v2984
        %v3113 = vadd.f32 %v2445, %v2985
        %v3114 = vadd.f32 %v2447, %v2986
        %v3115 = vadd.f32 %v2449, %v2987
        %v3116 = vadd.f32 %v2451, %v2988
        %v3117 = vadd.f32 %v2455, %v2989
        %v3118 = vadd.f32 %v2457, %v2990
        %v3119 = vadd.f32 %v2459, %v2991
        %v3120 = vadd.f32 %v2461, %v2992
        %v3121 = vadd.f32 %v2465, %v2993
        %v3122 = vadd.f32 %v2467, %v2994
        %v3123 = vadd.f32 %v2469, %v2995
        %v3124 = vadd.f32 %v2471, %v2996
        %v3125 = vadd.f32 %v2475, %v2997
        %v3126 = vadd.f32 %v2477, %v2998
        %v3127 = vadd.f32 %v2479, %v2999
        %v3128 = vadd.f32 %v2481, %v3000
        %v3129 = vadd.f32 %v2485, %v3001
        %v3130 = vadd.f32 %v2487, %v3002
        %v3131 = vadd.f32 %v2489, %v3003
        %v3132 = vadd.f32 %v2491, %v3004
        %v3133 = vmul.f32 %v3005, 0.7978846
        %v3134 = vmul.f32 %v3006, 0.7978846
        %v3135 = vmul.f32 %v3007, 0.7978846
        %v3136 = vmul.f32 %v3008, 0.7978846
        %v3137 = vmul.f32 %v3009, 0.7978846
        %v3138 = vmul.f32 %v3010, 0.7978846
        %v3139 = vmul.f32 %v3011, 0.7978846
        %v3140 = vmul.f32 %v3012, 0.7978846
        %v3141 = vmul.f32 %v3013, 0.7978846
        %v3142 = vmul.f32 %v3014, 0.7978846
        %v3143 = vmul.f32 %v3015, 0.7978846
        %v3144 = vmul.f32 %v3016, 0.7978846
        %v3145 = vmul.f32 %v3017, 0.7978846
        %v3146 = vmul.f32 %v3018, 0.7978846
        %v3147 = vmul.f32 %v3019, 0.7978846
        %v3148 = vmul.f32 %v3020, 0.7978846
        %v3149 = vmul.f32 %v3021, 0.7978846
        %v3150 = vmul.f32 %v3022, 0.7978846
        %v3151 = vmul.f32 %v3023, 0.7978846
        %v3152 = vmul.f32 %v3024, 0.7978846
        %v3153 = vmul.f32 %v3025, 0.7978846
        %v3154 = vmul.f32 %v3026, 0.7978846
        %v3155 = vmul.f32 %v3027, 0.7978846
        %v3156 = vmul.f32 %v3028, 0.7978846
        %v3157 = vmul.f32 %v3029, 0.7978846
        %v3158 = vmul.f32 %v3030, 0.7978846
        %v3159 = vmul.f32 %v3031, 0.7978846
        %v3160 = vmul.f32 %v3032, 0.7978846
        %v3161 = vmul.f32 %v3033, 0.7978846
        %v3162 = vmul.f32 %v3034, 0.7978846
        %v3163 = vmul.f32 %v3035, 0.7978846
        %v3164 = vmul.f32 %v3036, 0.7978846
        %v3165 = vmul.f32 %v3037, 0.7978846
        %v3166 = vmul.f32 %v3038, 0.7978846
        %v3167 = vmul.f32 %v3039, 0.7978846
        %v3168 = vmul.f32 %v3040, 0.7978846
        %v3169 = vmul.f32 %v3041, 0.7978846
        %v3170 = vmul.f32 %v3042, 0.7978846
        %v3171 = vmul.f32 %v3043, 0.7978846
        %v3172 = vmul.f32 %v3044, 0.7978846
        %v3173 = vmul.f32 %v3045, 0.7978846
        %v3174 = vmul.f32 %v3046, 0.7978846
        %v3175 = vmul.f32 %v3047, 0.7978846
        %v3176 = vmul.f32 %v3048, 0.7978846
        %v3177 = vmul.f32 %v3049, 0.7978846
        %v3178 = vmul.f32 %v3050, 0.7978846
        %v3179 = vmul.f32 %v3051, 0.7978846
        %v3180 = vmul.f32 %v3052, 0.7978846
        %v3181 = vmul.f32 %v3053, 0.7978846
        %v3182 = vmul.f32 %v3054, 0.7978846
        %v3183 = vmul.f32 %v3055, 0.7978846
        %v3184 = vmul.f32 %v3056, 0.7978846
        %v3185 = vmul.f32 %v3057, 0.7978846
        %v3186 = vmul.f32 %v3058, 0.7978846
        %v3187 = vmul.f32 %v3059, 0.7978846
        %v3188 = vmul.f32 %v3060, 0.7978846
        %v3189 = vmul.f32 %v3061, 0.7978846
        %v3190 = vmul.f32 %v3062, 0.7978846
        %v3191 = vmul.f32 %v3063, 0.7978846
        %v3192 = vmul.f32 %v3064, 0.7978846
        %v3193 = vmul.f32 %v3065, 0.7978846
        %v3194 = vmul.f32 %v3066, 0.7978846
        %v3195 = vmul.f32 %v3067, 0.7978846
        %v3196 = vmul.f32 %v3068, 0.7978846
        %v3197 = vmul.f32 %v3069, 0.7978846
        %v3198 = vmul.f32 %v3070, 0.7978846
        %v3199 = vmul.f32 %v3071, 0.7978846
        %v3200 = vmul.f32 %v3072, 0.7978846
        %v3201 = vmul.f32 %v3073, 0.7978846
        %v3202 = vmul.f32 %v3074, 0.7978846
        %v3203 = vmul.f32 %v3075, 0.7978846
        %v3204 = vmul.f32 %v3076, 0.7978846
        %v3205 = vmul.f32 %v3077, 0.7978846
        %v3206 = vmul.f32 %v3078, 0.7978846
        %v3207 = vmul.f32 %v3079, 0.7978846
        %v3208 = vmul.f32 %v3080, 0.7978846
        %v3209 = vmul.f32 %v3081, 0.7978846
        %v3210 = vmul.f32 %v3082, 0.7978846
        %v3211 = vmul.f32 %v3083, 0.7978846
        %v3212 = vmul.f32 %v3084, 0.7978846
        %v3213 = vmul.f32 %v3085, 0.7978846
        %v3214 = vmul.f32 %v3086, 0.7978846
        %v3215 = vmul.f32 %v3087, 0.7978846
        %v3216 = vmul.f32 %v3088, 0.7978846
        %v3217 = vmul.f32 %v3089, 0.7978846
        %v3218 = vmul.f32 %v3090, 0.7978846
        %v3219 = vmul.f32 %v3091, 0.7978846
        %v3220 = vmul.f32 %v3092, 0.7978846
        %v3221 = vmul.f32 %v3093, 0.7978846
        %v3222 = vmul.f32 %v3094, 0.7978846
        %v3223 = vmul.f32 %v3095, 0.7978846
        %v3224 = vmul.f32 %v3096, 0.7978846
        %v3225 = vmul.f32 %v3097, 0.7978846
        %v3226 = vmul.f32 %v3098, 0.7978846
        %v3227 = vmul.f32 %v3099, 0.7978846
        %v3228 = vmul.f32 %v3100, 0.7978846
        %v3229 = vmul.f32 %v3101, 0.7978846
        %v3230 = vmul.f32 %v3102, 0.7978846
        %v3231 = vmul.f32 %v3103, 0.7978846
        %v3232 = vmul.f32 %v3104, 0.7978846
        %v3233 = vmul.f32 %v3105, 0.7978846
        %v3234 = vmul.f32 %v3106, 0.7978846
        %v3235 = vmul.f32 %v3107, 0.7978846
        %v3236 = vmul.f32 %v3108, 0.7978846
        %v3237 = vmul.f32 %v3109, 0.7978846
        %v3238 = vmul.f32 %v3110, 0.7978846
        %v3239 = vmul.f32 %v3111, 0.7978846
        %v3240 = vmul.f32 %v3112, 0.7978846
        %v3241 = vmul.f32 %v3113, 0.7978846
        %v3242 = vmul.f32 %v3114, 0.7978846
        %v3243 = vmul.f32 %v3115, 0.7978846
        %v3244 = vmul.f32 %v3116, 0.7978846
        %v3245 = vmul.f32 %v3117, 0.7978846
        %v3246 = vmul.f32 %v3118, 0.7978846
        %v3247 = vmul.f32 %v3119, 0.7978846
        %v3248 = vmul.f32 %v3120, 0.7978846
        %v3249 = vmul.f32 %v3121, 0.7978846
        %v3250 = vmul.f32 %v3122, 0.7978846
        %v3251 = vmul.f32 %v3123, 0.7978846
        %v3252 = vmul.f32 %v3124, 0.7978846
        %v3253 = vmul.f32 %v3125, 0.7978846
        %v3254 = vmul.f32 %v3126, 0.7978846
        %v3255 = vmul.f32 %v3127, 0.7978846
        %v3256 = vmul.f32 %v3128, 0.7978846
        %v3257 = vmul.f32 %v3129, 0.7978846
        %v3258 = vmul.f32 %v3130, 0.7978846
        %v3259 = vmul.f32 %v3131, 0.7978846
        %v3260 = vmul.f32 %v3132, 0.7978846
        %v3261 = vtanh.pop %v3133
        %v3262 = vtanh.pop %v3134
        %v3263 = vtanh.pop %v3135
        %v3264 = vtanh.pop %v3136
        %v3265 = vtanh.pop %v3137
        %v3266 = vtanh.pop %v3138
        %v3267 = vtanh.pop %v3139
        %v3268 = vtanh.pop %v3140
        %v3269 = vtanh.pop %v3141
        %v3270 = vtanh.pop %v3142
        %v3271 = vtanh.pop %v3143
        %v3272 = vtanh.pop %v3144
        %v3273 = vtanh.pop %v3145
        %v3274 = vtanh.pop %v3146
        %v3275 = vtanh.pop %v3147
        %v3276 = vtanh.pop %v3148
        %v3277 = vtanh.pop %v3149
        %v3278 = vtanh.pop %v3150
        %v3279 = vtanh.pop %v3151
        %v3280 = vtanh.pop %v3152
        %v3281 = vtanh.pop %v3153
        %v3282 = vtanh.pop %v3154
        %v3283 = vtanh.pop %v3155
        %v3284 = vtanh.pop %v3156
        %v3285 = vtanh.pop %v3157
        %v3286 = vtanh.pop %v3158
        %v3287 = vtanh.pop %v3159
        %v3288 = vtanh.pop %v3160
        %v3289 = vtanh.pop %v3161
        %v3290 = vtanh.pop %v3162
        %v3291 = vtanh.pop %v3163
        %v3292 = vtanh.pop %v3164
        %v3293 = vtanh.pop %v3165
        %v3294 = vtanh.pop %v3166
        %v3295 = vtanh.pop %v3167
        %v3296 = vtanh.pop %v3168
        %v3297 = vtanh.pop %v3169
        %v3298 = vtanh.pop %v3170
        %v3299 = vtanh.pop %v3171
        %v3300 = vtanh.pop %v3172
        %v3301 = vtanh.pop %v3173
        %v3302 = vtanh.pop %v3174
        %v3303 = vtanh.pop %v3175
        %v3304 = vtanh.pop %v3176
        %v3305 = vtanh.pop %v3177
        %v3306 = vtanh.pop %v3178
        %v3307 = vtanh.pop %v3179
        %v3308 = vtanh.pop %v3180
        %v3309 = vtanh.pop %v3181
        %v3310 = vtanh.pop %v3182
        %v3311 = vtanh.pop %v3183
        %v3312 = vtanh.pop %v3184
        %v3313 = vtanh.pop %v3185
        %v3314 = vtanh.pop %v3186
        %v3315 = vtanh.pop %v3187
        %v3316 = vtanh.pop %v3188
        %v3317 = vtanh.pop %v3189
        %v3318 = vtanh.pop %v3190
        %v3319 = vtanh.pop %v3191
        %v3320 = vtanh.pop %v3192
        %v3321 = vtanh.pop %v3193
        %v3322 = vtanh.pop %v3194
        %v3323 = vtanh.pop %v3195
        %v3324 = vtanh.pop %v3196
        %v3325 = vtanh.pop %v3197
        %v3326 = vtanh.pop %v3198
        %v3327 = vtanh.pop %v3199
        %v3328 = vtanh.pop %v3200
        %v3329 = vtanh.pop %v3201
        %v3330 = vtanh.pop %v3202
        %v3331 = vtanh.pop %v3203
        %v3332 = vtanh.pop %v3204
        %v3333 = vtanh.pop %v3205
        %v3334 = vtanh.pop %v3206
        %v3335 = vtanh.pop %v3207
        %v3336 = vtanh.pop %v3208
        %v3337 = vtanh.pop %v3209
        %v3338 = vtanh.pop %v3210
        %v3339 = vtanh.pop %v3211
        %v3340 = vtanh.pop %v3212
        %v3341 = vtanh.pop %v3213
        %v3342 = vtanh.pop %v3214
        %v3343 = vtanh.pop %v3215
        %v3344 = vtanh.pop %v3216
        %v3345 = vtanh.pop %v3217
        %v3346 = vtanh.pop %v3218
        %v3347 = vtanh.pop %v3219
        %v3348 = vtanh.pop %v3220
        %v3349 = vtanh.pop %v3221
        %v3350 = vtanh.pop %v3222
        %v3351 = vtanh.pop %v3223
        %v3352 = vtanh.pop %v3224
        %v3353 = vtanh.pop %v3225
        %v3354 = vtanh.pop %v3226
        %v3355 = vtanh.pop %v3227
        %v3356 = vtanh.pop %v3228
        %v3357 = vtanh.pop %v3229
        %v3358 = vtanh.pop %v3230
        %v3359 = vtanh.pop %v3231
        %v3360 = vtanh.pop %v3232
        %v3361 = vtanh.pop %v3233
        %v3362 = vtanh.pop %v3234
        %v3363 = vtanh.pop %v3235
        %v3364 = vtanh.pop %v3236
        %v3365 = vtanh.pop %v3237
        %v3366 = vtanh.pop %v3238
        %v3367 = vtanh.pop %v3239
        %v3368 = vtanh.pop %v3240
        %v3369 = vtanh.pop %v3241
        %v3370 = vtanh.pop %v3242
        %v3371 = vtanh.pop %v3243
        %v3372 = vtanh.pop %v3244
        %v3373 = vtanh.pop %v3245
        %v3374 = vtanh.pop %v3246
        %v3375 = vtanh.pop %v3247
        %v3376 = vtanh.pop %v3248
        %v3377 = vtanh.pop %v3249
        %v3378 = vtanh.pop %v3250
        %v3379 = vtanh.pop %v3251
        %v3380 = vtanh.pop %v3252
        %v3381 = vtanh.pop %v3253
        %v3382 = vtanh.pop %v3254
        %v3383 = vtanh.pop %v3255
        %v3384 = vtanh.pop %v3256
        %v3385 = vtanh.pop %v3257
        %v3386 = vtanh.pop %v3258
        %v3387 = vtanh.pop %v3259
        %v3388 = vtanh.pop %v3260
        %v3389 = vadd.f32 %v3261, 1.0
        %v3390 = vadd.f32 %v3262, 1.0
        %v3391 = vadd.f32 %v3263, 1.0
        %v3392 = vadd.f32 %v3264, 1.0
        %v3393 = vadd.f32 %v3265, 1.0
        %v3394 = vadd.f32 %v3266, 1.0
        %v3395 = vadd.f32 %v3267, 1.0
        %v3396 = vadd.f32 %v3268, 1.0
        %v3397 = vadd.f32 %v3269, 1.0
        %v3398 = vadd.f32 %v3270, 1.0
        %v3399 = vadd.f32 %v3271, 1.0
        %v3400 = vadd.f32 %v3272, 1.0
        %v3401 = vadd.f32 %v3273, 1.0
        %v3402 = vadd.f32 %v3274, 1.0
        %v3403 = vadd.f32 %v3275, 1.0
        %v3404 = vadd.f32 %v3276, 1.0
        %v3405 = vadd.f32 %v3277, 1.0
        %v3406 = vadd.f32 %v3278, 1.0
        %v3407 = vadd.f32 %v3279, 1.0
        %v3408 = vadd.f32 %v3280, 1.0
        %v3409 = vadd.f32 %v3281, 1.0
        %v3410 = vadd.f32 %v3282, 1.0
        %v3411 = vadd.f32 %v3283, 1.0
        %v3412 = vadd.f32 %v3284, 1.0
        %v3413 = vadd.f32 %v3285, 1.0
        %v3414 = vadd.f32 %v3286, 1.0
        %v3415 = vadd.f32 %v3287, 1.0
        %v3416 = vadd.f32 %v3288, 1.0
        %v3417 = vadd.f32 %v3289, 1.0
        %v3418 = vadd.f32 %v3290, 1.0
        %v3419 = vadd.f32 %v3291, 1.0
        %v3420 = vadd.f32 %v3292, 1.0
        %v3421 = vadd.f32 %v3293, 1.0
        %v3422 = vadd.f32 %v3294, 1.0
        %v3423 = vadd.f32 %v3295, 1.0
        %v3424 = vadd.f32 %v3296, 1.0
        %v3425 = vadd.f32 %v3297, 1.0
        %v3426 = vadd.f32 %v3298, 1.0
        %v3427 = vadd.f32 %v3299, 1.0
        %v3428 = vadd.f32 %v3300, 1.0
        %v3429 = vadd.f32 %v3301, 1.0
        %v3430 = vadd.f32 %v3302, 1.0
        %v3431 = vadd.f32 %v3303, 1.0
        %v3432 = vadd.f32 %v3304, 1.0
        %v3433 = vadd.f32 %v3305, 1.0
        %v3434 = vadd.f32 %v3306, 1.0
        %v3435 = vadd.f32 %v3307, 1.0
        %v3436 = vadd.f32 %v3308, 1.0
        %v3437 = vadd.f32 %v3309, 1.0
        %v3438 = vadd.f32 %v3310, 1.0
        %v3439 = vadd.f32 %v3311, 1.0
        %v3440 = vadd.f32 %v3312, 1.0
        %v3441 = vadd.f32 %v3313, 1.0
        %v3442 = vadd.f32 %v3314, 1.0
        %v3443 = vadd.f32 %v3315, 1.0
        %v3444 = vadd.f32 %v3316, 1.0
        %v3445 = vadd.f32 %v3317, 1.0
        %v3446 = vadd.f32 %v3318, 1.0
        %v3447 = vadd.f32 %v3319, 1.0
        %v3448 = vadd.f32 %v3320, 1.0
        %v3449 = vadd.f32 %v3321, 1.0
        %v3450 = vadd.f32 %v3322, 1.0
        %v3451 = vadd.f32 %v3323, 1.0
        %v3452 = vadd.f32 %v3324, 1.0
        %v3453 = vadd.f32 %v3325, 1.0
        %v3454 = vadd.f32 %v3326, 1.0
        %v3455 = vadd.f32 %v3327, 1.0
        %v3456 = vadd.f32 %v3328, 1.0
        %v3457 = vadd.f32 %v3329, 1.0
        %v3458 = vadd.f32 %v3330, 1.0
        %v3459 = vadd.f32 %v3331, 1.0
        %v3460 = vadd.f32 %v3332, 1.0
        %v3461 = vadd.f32 %v3333, 1.0
        %v3462 = vadd.f32 %v3334, 1.0
        %v3463 = vadd.f32 %v3335, 1.0
        %v3464 = vadd.f32 %v3336, 1.0
        %v3465 = vadd.f32 %v3337, 1.0
        %v3466 = vadd.f32 %v3338, 1.0
        %v3467 = vadd.f32 %v3339, 1.0
        %v3468 = vadd.f32 %v3340, 1.0
        %v3469 = vadd.f32 %v3341, 1.0
        %v3470 = vadd.f32 %v3342, 1.0
        %v3471 = vadd.f32 %v3343, 1.0
        %v3472 = vadd.f32 %v3344, 1.0
        %v3473 = vadd.f32 %v3345, 1.0
        %v3474 = vadd.f32 %v3346, 1.0
        %v3475 = vadd.f32 %v3347, 1.0
        %v3476 = vadd.f32 %v3348, 1.0
        %v3477 = vadd.f32 %v3349, 1.0
        %v3478 = vadd.f32 %v3350, 1.0
        %v3479 = vadd.f32 %v3351, 1.0
        %v3480 = vadd.f32 %v3352, 1.0
        %v3481 = vadd.f32 %v3353, 1.0
        %v3482 = vadd.f32 %v3354, 1.0
        %v3483 = vadd.f32 %v3355, 1.0
        %v3484 = vadd.f32 %v3356, 1.0
        %v3485 = vadd.f32 %v3357, 1.0
        %v3486 = vadd.f32 %v3358, 1.0
        %v3487 = vadd.f32 %v3359, 1.0
        %v3488 = vadd.f32 %v3360, 1.0
        %v3489 = vadd.f32 %v3361, 1.0
        %v3490 = vadd.f32 %v3362, 1.0
        %v3491 = vadd.f32 %v3363, 1.0
        %v3492 = vadd.f32 %v3364, 1.0
        %v3493 = vadd.f32 %v3365, 1.0
        %v3494 = vadd.f32 %v3366, 1.0
        %v3495 = vadd.f32 %v3367, 1.0
        %v3496 = vadd.f32 %v3368, 1.0
        %v3497 = vadd.f32 %v3369, 1.0
        %v3498 = vadd.f32 %v3370, 1.0
        %v3499 = vadd.f32 %v3371, 1.0
        %v3500 = vadd.f32 %v3372, 1.0
        %v3501 = vadd.f32 %v3373, 1.0
        %v3502 = vadd.f32 %v3374, 1.0
        %v3503 = vadd.f32 %v3375, 1.0
        %v3504 = vadd.f32 %v3376, 1.0
        %v3505 = vadd.f32 %v3377, 1.0
        %v3506 = vadd.f32 %v3378, 1.0
        %v3507 = vadd.f32 %v3379, 1.0
        %v3508 = vadd.f32 %v3380, 1.0
        %v3509 = vadd.f32 %v3381, 1.0
        %v3510 = vadd.f32 %v3382, 1.0
        %v3511 = vadd.f32 %v3383, 1.0
        %v3512 = vadd.f32 %v3384, 1.0
        %v3513 = vadd.f32 %v3385, 1.0
        %v3514 = vadd.f32 %v3386, 1.0
        %v3515 = vadd.f32 %v3387, 1.0
        %v3516 = vadd.f32 %v3388, 1.0
        %v3517 = vmul.f32 %v2493, %v3389
        %v3518 = vmul.f32 %v2494, %v3390
        %v3519 = vmul.f32 %v2495, %v3391
        %v3520 = vmul.f32 %v2496, %v3392
        %v3521 = vmul.f32 %v2497, %v3393
        %v3522 = vmul.f32 %v2498, %v3394
        %v3523 = vmul.f32 %v2499, %v3395
        %v3524 = vmul.f32 %v2500, %v3396
        %v3525 = vmul.f32 %v2501, %v3397
        %v3526 = vmul.f32 %v2502, %v3398
        %v3527 = vmul.f32 %v2503, %v3399
        %v3528 = vmul.f32 %v2504, %v3400
        %v3529 = vmul.f32 %v2505, %v3401
        %v3530 = vmul.f32 %v2506, %v3402
        %v3531 = vmul.f32 %v2507, %v3403
        %v3532 = vmul.f32 %v2508, %v3404
        %v3533 = vmul.f32 %v2509, %v3405
        %v3534 = vmul.f32 %v2510, %v3406
        %v3535 = vmul.f32 %v2511, %v3407
        %v3536 = vmul.f32 %v2512, %v3408
        %v3537 = vmul.f32 %v2513, %v3409
        %v3538 = vmul.f32 %v2514, %v3410
        %v3539 = vmul.f32 %v2515, %v3411
        %v3540 = vmul.f32 %v2516, %v3412
        %v3541 = vmul.f32 %v2517, %v3413
        %v3542 = vmul.f32 %v2518, %v3414
        %v3543 = vmul.f32 %v2519, %v3415
        %v3544 = vmul.f32 %v2520, %v3416
        %v3545 = vmul.f32 %v2521, %v3417
        %v3546 = vmul.f32 %v2522, %v3418
        %v3547 = vmul.f32 %v2523, %v3419
        %v3548 = vmul.f32 %v2524, %v3420
        %v3549 = vmul.f32 %v2525, %v3421
        %v3550 = vmul.f32 %v2526, %v3422
        %v3551 = vmul.f32 %v2527, %v3423
        %v3552 = vmul.f32 %v2528, %v3424
        %v3553 = vmul.f32 %v2529, %v3425
        %v3554 = vmul.f32 %v2530, %v3426
        %v3555 = vmul.f32 %v2531, %v3427
        %v3556 = vmul.f32 %v2532, %v3428
        %v3557 = vmul.f32 %v2533, %v3429
        %v3558 = vmul.f32 %v2534, %v3430
        %v3559 = vmul.f32 %v2535, %v3431
        %v3560 = vmul.f32 %v2536, %v3432
        %v3561 = vmul.f32 %v2537, %v3433
        %v3562 = vmul.f32 %v2538, %v3434
        %v3563 = vmul.f32 %v2539, %v3435
        %v3564 = vmul.f32 %v2540, %v3436
        %v3565 = vmul.f32 %v2541, %v3437
        %v3566 = vmul.f32 %v2542, %v3438
        %v3567 = vmul.f32 %v2543, %v3439
        %v3568 = vmul.f32 %v2544, %v3440
        %v3569 = vmul.f32 %v2545, %v3441
        %v3570 = vmul.f32 %v2546, %v3442
        %v3571 = vmul.f32 %v2547, %v3443
        %v3572 = vmul.f32 %v2548, %v3444
        %v3573 = vmul.f32 %v2549, %v3445
        %v3574 = vmul.f32 %v2550, %v3446
        %v3575 = vmul.f32 %v2551, %v3447
        %v3576 = vmul.f32 %v2552, %v3448
        %v3577 = vmul.f32 %v2553, %v3449
        %v3578 = vmul.f32 %v2554, %v3450
        %v3579 = vmul.f32 %v2555, %v3451
        %v3580 = vmul.f32 %v2556, %v3452
        %v3581 = vmul.f32 %v2557, %v3453
        %v3582 = vmul.f32 %v2558, %v3454
        %v3583 = vmul.f32 %v2559, %v3455
        %v3584 = vmul.f32 %v2560, %v3456
        %v3585 = vmul.f32 %v2561, %v3457
        %v3586 = vmul.f32 %v2562, %v3458
        %v3587 = vmul.f32 %v2563, %v3459
        %v3588 = vmul.f32 %v2564, %v3460
        %v3589 = vmul.f32 %v2565, %v3461
        %v3590 = vmul.f32 %v2566, %v3462
        %v3591 = vmul.f32 %v2567, %v3463
        %v3592 = vmul.f32 %v2568, %v3464
        %v3593 = vmul.f32 %v2569, %v3465
        %v3594 = vmul.f32 %v2570, %v3466
        %v3595 = vmul.f32 %v2571, %v3467
        %v3596 = vmul.f32 %v2572, %v3468
        %v3597 = vmul.f32 %v2573, %v3469
        %v3598 = vmul.f32 %v2574, %v3470
        %v3599 = vmul.f32 %v2575, %v3471
        %v3600 = vmul.f32 %v2576, %v3472
        %v3601 = vmul.f32 %v2577, %v3473
        %v3602 = vmul.f32 %v2578, %v3474
        %v3603 = vmul.f32 %v2579, %v3475
        %v3604 = vmul.f32 %v2580, %v3476
        %v3605 = vmul.f32 %v2581, %v3477
        %v3606 = vmul.f32 %v2582, %v3478
        %v3607 = vmul.f32 %v2583, %v3479
        %v3608 = vmul.f32 %v2584, %v3480
        %v3609 = vmul.f32 %v2585, %v3481
        %v3610 = vmul.f32 %v2586, %v3482
        %v3611 = vmul.f32 %v2587, %v3483
        %v3612 = vmul.f32 %v2588, %v3484
        %v3613 = vmul.f32 %v2589, %v3485
        %v3614 = vmul.f32 %v2590, %v3486
        %v3615 = vmul.f32 %v2591, %v3487
        %v3616 = vmul.f32 %v2592, %v3488
        %v3617 = vmul.f32 %v2593, %v3489
        %v3618 = vmul.f32 %v2594, %v3490
        %v3619 = vmul.f32 %v2595, %v3491
        %v3620 = vmul.f32 %v2596, %v3492
        %v3621 = vmul.f32 %v2597, %v3493
        %v3622 = vmul.f32 %v2598, %v3494
        %v3623 = vmul.f32 %v2599, %v3495
        %v3624 = vmul.f32 %v2600, %v3496
        %v3625 = vmul.f32 %v2601, %v3497
        %v3626 = vmul.f32 %v2602, %v3498
        %v3627 = vmul.f32 %v2603, %v3499
        %v3628 = vmul.f32 %v2604, %v3500
        %v3629 = vmul.f32 %v2605, %v3501
        %v3630 = vmul.f32 %v2606, %v3502
        %v3631 = vmul.f32 %v2607, %v3503
        %v3632 = vmul.f32 %v2608, %v3504
        %v3633 = vmul.f32 %v2609, %v3505
        %v3634 = vmul.f32 %v2610, %v3506
        %v3635 = vmul.f32 %v2611, %v3507
        %v3636 = vmul.f32 %v2612, %v3508
        %v3637 = vmul.f32 %v2613, %v3509
        %v3638 = vmul.f32 %v2614, %v3510
        %v3639 = vmul.f32 %v2615, %v3511
        %v3640 = vmul.f32 %v2616, %v3512
        %v3641 = vmul.f32 %v2617, %v3513
        %v3642 = vmul.f32 %v2618, %v3514
        %v3643 = vmul.f32 %v2619, %v3515
        %v3644 = vmul.f32 %v2620, %v3516
        %v3645 = vpack.c.bf16 %v3519, %v3517
        %v3646 = vpack.c.bf16 %v3520, %v3518
        %v3647 = vpack.c.bf16 %v3523, %v3521
        %v3648 = vpack.c.bf16 %v3524, %v3522
        %v3649 = vpack.c.bf16 %v3527, %v3525
        %v3650 = vpack.c.bf16 %v3528, %v3526
        %v3651 = vpack.c.bf16 %v3531, %v3529
        %v3652 = vpack.c.bf16 %v3532, %v3530
        %v3653 = vpack.c.bf16 %v3535, %v3533
        %v3654 = vpack.c.bf16 %v3536, %v3534
        %v3655 = vpack.c.bf16 %v3539, %v3537
        %v3656 = vpack.c.bf16 %v3540, %v3538
        %v3657 = vpack.c.bf16 %v3543, %v3541
        %v3658 = vpack.c.bf16 %v3544, %v3542
        %v3659 = vpack.c.bf16 %v3547, %v3545
        %v3660 = vpack.c.bf16 %v3548, %v3546
        %v3661 = vpack.c.bf16 %v3551, %v3549
        %v3662 = vpack.c.bf16 %v3552, %v3550
        %v3663 = vpack.c.bf16 %v3555, %v3553
        %v3664 = vpack.c.bf16 %v3556, %v3554
        %v3665 = vpack.c.bf16 %v3559, %v3557
        %v3666 = vpack.c.bf16 %v3560, %v3558
        %v3667 = vpack.c.bf16 %v3563, %v3561
        %v3668 = vpack.c.bf16 %v3564, %v3562
        %v3669 = vpack.c.bf16 %v3567, %v3565
        %v3670 = vpack.c.bf16 %v3568, %v3566
        %v3671 = vpack.c.bf16 %v3571, %v3569
        %v3672 = vpack.c.bf16 %v3572, %v3570
        %v3673 = vpack.c.bf16 %v3575, %v3573
        %v3674 = vpack.c.bf16 %v3576, %v3574
        %v3675 = vpack.c.bf16 %v3579, %v3577
        %v3676 = vpack.c.bf16 %v3580, %v3578
        %v3677 = vpack.c.bf16 %v3583, %v3581
        %v3678 = vpack.c.bf16 %v3584, %v3582
        %v3679 = vpack.c.bf16 %v3587, %v3585
        %v3680 = vpack.c.bf16 %v3588, %v3586
        %v3681 = vpack.c.bf16 %v3591, %v3589
        %v3682 = vpack.c.bf16 %v3592, %v3590
        %v3683 = vpack.c.bf16 %v3595, %v3593
        %v3684 = vpack.c.bf16 %v3596, %v3594
        %v3685 = vpack.c.bf16 %v3599, %v3597
        %v3686 = vpack.c.bf16 %v3600, %v3598
        %v3687 = vpack.c.bf16 %v3603, %v3601
        %v3688 = vpack.c.bf16 %v3604, %v3602
        %v3689 = vpack.c.bf16 %v3607, %v3605
        %v3690 = vpack.c.bf16 %v3608, %v3606
        %v3691 = vpack.c.bf16 %v3611, %v3609
        %v3692 = vpack.c.bf16 %v3612, %v3610
        %v3693 = vpack.c.bf16 %v3615, %v3613
        %v3694 = vpack.c.bf16 %v3616, %v3614
        %v3695 = vpack.c.bf16 %v3619, %v3617
        %v3696 = vpack.c.bf16 %v3620, %v3618
        %v3697 = vpack.c.bf16 %v3623, %v3621
        %v3698 = vpack.c.bf16 %v3624, %v3622
        %v3699 = vpack.c.bf16 %v3627, %v3625
        %v3700 = vpack.c.bf16 %v3628, %v3626
        %v3701 = vpack.c.bf16 %v3631, %v3629
        %v3702 = vpack.c.bf16 %v3632, %v3630
        %v3703 = vpack.c.bf16 %v3635, %v3633
        %v3704 = vpack.c.bf16 %v3636, %v3634
        %v3705 = vpack.c.bf16 %v3639, %v3637
        %v3706 = vpack.c.bf16 %v3640, %v3638
        %v3707 = vpack.c.bf16 %v3643, %v3641
        %v3708 = vpack.c.bf16 %v3644, %v3642
        %v3709 = vld [vmem:[%s3 + $0x80] sm:$0xf]
        %v3710 = vld [vmem:[%s3 + $0x84] sm:$0xf]
        %v3711 = vld [vmem:[%s3 + $0x88] sm:$0xf]
        %v3712 = vld [vmem:[%s3 + $0x8c] sm:$0xf]
        %v3713 = vld [vmem:[%s3 + $0x90] sm:$0xf]
        %v3714 = vld [vmem:[%s3 + $0x94] sm:$0xf]
        %v3715 = vld [vmem:[%s3 + $0x98] sm:$0xf]
        %v3716 = vld [vmem:[%s3 + $0x9c] sm:$0xf]
        %v3717 = vld [vmem:[%s3 + $0xa0] sm:$0xf]
        %v3718 = vld [vmem:[%s3 + $0xa4] sm:$0xf]
        %v3719 = vld [vmem:[%s3 + $0xa8] sm:$0xf]
        %v3720 = vld [vmem:[%s3 + $0xac] sm:$0xf]
        %v3721 = vld [vmem:[%s3 + $0xb0] sm:$0xf]
        %v3722 = vld [vmem:[%s3 + $0xb4] sm:$0xf]
        %v3723 = vld [vmem:[%s3 + $0xb8] sm:$0xf]
        %v3724 = vld [vmem:[%s3 + $0xbc] sm:$0xf]
        %v3725 = vld [vmem:[%s3 + $0xc0] sm:$0xf]
        %v3726 = vld [vmem:[%s3 + $0xc4] sm:$0xf]
        %v3727 = vld [vmem:[%s3 + $0xc8] sm:$0xf]
        %v3728 = vld [vmem:[%s3 + $0xcc] sm:$0xf]
        %v3729 = vld [vmem:[%s3 + $0xd0] sm:$0xf]
        %v3730 = vld [vmem:[%s3 + $0xd4] sm:$0xf]
        %v3731 = vld [vmem:[%s3 + $0xd8] sm:$0xf]
        %v3732 = vld [vmem:[%s3 + $0xdc] sm:$0xf]
        %v3733 = vld [vmem:[%s3 + $0xe0] sm:$0xf]
        %v3734 = vld [vmem:[%s3 + $0xe4] sm:$0xf]
        %v3735 = vld [vmem:[%s3 + $0xe8] sm:$0xf]
        %v3736 = vld [vmem:[%s3 + $0xec] sm:$0xf]
        %v3737 = vld [vmem:[%s3 + $0xf0] sm:$0xf]
        %v3738 = vld [vmem:[%s3 + $0xf4] sm:$0xf]
        %v3739 = vld [vmem:[%s3 + $0xf8] sm:$0xf]
        %v3740 = vld [vmem:[%s3 + $0xfc] sm:$0xf]
        %v3773 = vunpack.c.l.b16 %v3709
        %v3774 = vunpack.c.l.b16 %v3710
        %v3775 = vunpack.c.l.b16 %v3711
        %v3776 = vunpack.c.l.b16 %v3712
        %v3777 = vunpack.c.l.b16 %v3713
        %v3778 = vunpack.c.l.b16 %v3714
        %v3779 = vunpack.c.l.b16 %v3715
        %v3780 = vunpack.c.l.b16 %v3716
        %v3781 = vunpack.c.l.b16 %v3717
        %v3782 = vunpack.c.l.b16 %v3718
        %v3783 = vunpack.c.l.b16 %v3719
        %v3784 = vunpack.c.l.b16 %v3720
        %v3785 = vunpack.c.l.b16 %v3721
        %v3786 = vunpack.c.l.b16 %v3722
        %v3787 = vunpack.c.l.b16 %v3723
        %v3788 = vunpack.c.l.b16 %v3724
        %v3789 = vunpack.c.l.b16 %v3725
        %v3790 = vunpack.c.l.b16 %v3726
        %v3791 = vunpack.c.l.b16 %v3727
        %v3792 = vunpack.c.l.b16 %v3728
        %v3793 = vunpack.c.l.b16 %v3729
        %v3794 = vunpack.c.l.b16 %v3730
        %v3795 = vunpack.c.l.b16 %v3731
        %v3796 = vunpack.c.l.b16 %v3732
        %v3797 = vunpack.c.l.b16 %v3733
        %v3798 = vunpack.c.l.b16 %v3734
        %v3799 = vunpack.c.l.b16 %v3735
        %v3800 = vunpack.c.l.b16 %v3736
        %v3801 = vunpack.c.l.b16 %v3737
        %v3802 = vunpack.c.l.b16 %v3738
        %v3803 = vunpack.c.l.b16 %v3739
        %v3804 = vunpack.c.l.b16 %v3740
        %v3805 = vpack.c.b16 %v3774, %v3773
        %v3806 = vpack.c.b16 %v3776, %v3775
        %v3807 = vpack.c.b16 %v3778, %v3777
        %v3808 = vpack.c.b16 %v3780, %v3779
        %v3809 = vpack.c.b16 %v3782, %v3781
        %v3810 = vpack.c.b16 %v3784, %v3783
        %v3811 = vpack.c.b16 %v3786, %v3785
        %v3812 = vpack.c.b16 %v3788, %v3787
        %v3813 = vpack.c.b16 %v3790, %v3789
        %v3814 = vpack.c.b16 %v3792, %v3791
        %v3815 = vpack.c.b16 %v3794, %v3793
        %v3816 = vpack.c.b16 %v3796, %v3795
        %v3817 = vpack.c.b16 %v3798, %v3797
        %v3818 = vpack.c.b16 %v3800, %v3799
        %v3819 = vpack.c.b16 %v3802, %v3801
        %v3820 = vpack.c.b16 %v3804, %v3803
        %3837 = vmatprep.subr.bf16.mxu0 0
        %3838 = vmatpush1.bf16.msra.mxu0 %v3812
        %3839 = vmatprep.subr.bf16.mxu0 0
        %3840 = vmatpush1.bf16.msra.mxu0 %v3811
        %3841 = vmatprep.subr.bf16.mxu0 0
        %3842 = vmatpush1.bf16.msra.mxu0 %v3810
        %3843 = vmatprep.subr.bf16.mxu0 0
        %3844 = vmatpush1.bf16.msra.mxu0 %v3809
        %3845 = vmatprep.subr.bf16.mxu0 0
        %3846 = vmatpush1.bf16.msra.mxu0 %v3808
        %3847 = vmatprep.subr.bf16.mxu0 0
        %3848 = vmatpush1.bf16.msra.mxu0 %v3807
        %3849 = vmatprep.subr.bf16.mxu0 0
        %3850 = vmatpush1.bf16.msra.mxu0 %v3806
        %3851 = vmatprep.subr.bf16.mxu0 0
        %3852 = vmatpush1.bf16.msra.mxu0 %v3805
        %3853 = vmatprep.subr.bf16.mxu0 0
        %3854 = vmatpush2.bf16.msra.mxu0 %v3820
        %3855 = vmatprep.subr.bf16.mxu0 0
        %3856 = vmatpush2.bf16.msra.mxu0 %v3819
        %3857 = vmatprep.subr.bf16.mxu0 0
        %3858 = vmatpush2.bf16.msra.mxu0 %v3818
        %3859 = vmatprep.subr.bf16.mxu0 0
        %3860 = vmatpush2.bf16.msra.mxu0 %v3817
        %3861 = vmatprep.subr.bf16.mxu0 0
        %3862 = vmatpush2.bf16.msra.mxu0 %v3816
        %3863 = vmatprep.subr.bf16.mxu0 0
        %3864 = vmatpush2.bf16.msra.mxu0 %v3815
        %3865 = vmatprep.subr.bf16.mxu0 0
        %3866 = vmatpush2.bf16.msra.mxu0 %v3814
        %3867 = vmatprep.subr.bf16.mxu0 0
        %3868 = vmatpush2.bf16.msra.mxu0 %v3813
        %3869 = vmatprep.mubr.bf16.mxu0 %v3646
        %3870 = vmatmul.mubr.bf16.gmra.mxu0 %v3645
        %v3871 = vpop.f32.mrf.mxu0
        %v3872 = vadd.f32 0.0, %v3871
        %v3873 = vpop.f32.mrf.mxu0
        %v3874 = vpop.f32.mrf.mxu0
        %v3875 = vadd.f32 0.0, %v3874
        %v3876 = vpop.f32.mrf.mxu0
        %3877 = vmatprep.mubr.bf16.mxu0 %v3648
        %3878 = vmatmul.mubr.bf16.gmra.mxu0 %v3647
        %v3879 = vpop.f32.mrf.mxu0
        %v3880 = vadd.f32 0.0, %v3879
        %v3881 = vpop.f32.mrf.mxu0
        %v3882 = vpop.f32.mrf.mxu0
        %v3883 = vadd.f32 0.0, %v3882
        %v3884 = vpop.f32.mrf.mxu0
        %3885 = vmatprep.mubr.bf16.mxu0 %v3650
        %3886 = vmatmul.mubr.bf16.gmra.mxu0 %v3649
        %v3887 = vpop.f32.mrf.mxu0
        %v3888 = vadd.f32 0.0, %v3887
        %v3889 = vpop.f32.mrf.mxu0
        %v3890 = vpop.f32.mrf.mxu0
        %v3891 = vadd.f32 0.0, %v3890
        %v3892 = vpop.f32.mrf.mxu0
        %3893 = vmatprep.mubr.bf16.mxu0 %v3652
        %3894 = vmatmul.mubr.bf16.gmra.mxu0 %v3651
        %v3895 = vpop.f32.mrf.mxu0
        %v3896 = vadd.f32 0.0, %v3895
        %v3897 = vpop.f32.mrf.mxu0
        %v3898 = vpop.f32.mrf.mxu0
        %v3899 = vadd.f32 0.0, %v3898
        %v3900 = vpop.f32.mrf.mxu0
        %3901 = vmatprep.mubr.bf16.mxu0 %v3654
        %3902 = vmatmul.mubr.bf16.gmra.mxu0 %v3653
        %v3903 = vpop.f32.mrf.mxu0
        %v3904 = vadd.f32 0.0, %v3903
        %v3905 = vpop.f32.mrf.mxu0
        %v3906 = vpop.f32.mrf.mxu0
        %v3907 = vadd.f32 0.0, %v3906
        %v3908 = vpop.f32.mrf.mxu0
        %3909 = vmatprep.mubr.bf16.mxu0 %v3656
        %3910 = vmatmul.mubr.bf16.gmra.mxu0 %v3655
        %v3911 = vpop.f32.mrf.mxu0
        %v3912 = vadd.f32 0.0, %v3911
        %v3913 = vpop.f32.mrf.mxu0
        %v3914 = vpop.f32.mrf.mxu0
        %v3915 = vadd.f32 0.0, %v3914
        %v3916 = vpop.f32.mrf.mxu0
        %3917 = vmatprep.mubr.bf16.mxu0 %v3658
        %3918 = vmatmul.mubr.bf16.gmra.mxu0 %v3657
        %v3919 = vpop.f32.mrf.mxu0
        %v3920 = vadd.f32 0.0, %v3919
        %v3921 = vpop.f32.mrf.mxu0
        %v3922 = vpop.f32.mrf.mxu0
        %v3923 = vadd.f32 0.0, %v3922
        %v3924 = vpop.f32.mrf.mxu0
        %3925 = vmatprep.mubr.bf16.mxu0 %v3660
        %3926 = vmatmul.mubr.bf16.gmra.mxu0 %v3659
        %v3927 = vpop.f32.mrf.mxu0
        %v3928 = vadd.f32 0.0, %v3927
        %v3929 = vpop.f32.mrf.mxu0
        %v3930 = vpop.f32.mrf.mxu0
        %v3931 = vadd.f32 0.0, %v3930
        %v3932 = vpop.f32.mrf.mxu0
        %3933 = vmatprep.mubr.bf16.mxu0 %v3662
        %3934 = vmatmul.mubr.bf16.gmra.mxu0 %v3661
        %v3935 = vpop.f32.mrf.mxu0
        %v3936 = vadd.f32 0.0, %v3935
        %v3937 = vpop.f32.mrf.mxu0
        %v3938 = vpop.f32.mrf.mxu0
        %v3939 = vadd.f32 0.0, %v3938
        %v3940 = vpop.f32.mrf.mxu0
        %3941 = vmatprep.mubr.bf16.mxu0 %v3664
        %3942 = vmatmul.mubr.bf16.gmra.mxu0 %v3663
        %v3943 = vpop.f32.mrf.mxu0
        %v3944 = vadd.f32 0.0, %v3943
        %v3945 = vpop.f32.mrf.mxu0
        %v3946 = vpop.f32.mrf.mxu0
        %v3947 = vadd.f32 0.0, %v3946
        %v3948 = vpop.f32.mrf.mxu0
        %3949 = vmatprep.mubr.bf16.mxu0 %v3666
        %3950 = vmatmul.mubr.bf16.gmra.mxu0 %v3665
        %v3951 = vpop.f32.mrf.mxu0
        %v3952 = vadd.f32 0.0, %v3951
        %v3953 = vpop.f32.mrf.mxu0
        %v3954 = vpop.f32.mrf.mxu0
        %v3955 = vadd.f32 0.0, %v3954
        %v3956 = vpop.f32.mrf.mxu0
        %3957 = vmatprep.mubr.bf16.mxu0 %v3668
        %3958 = vmatmul.mubr.bf16.gmra.mxu0 %v3667
        %v3959 = vpop.f32.mrf.mxu0
        %v3960 = vadd.f32 0.0, %v3959
        %v3961 = vpop.f32.mrf.mxu0
        %v3962 = vpop.f32.mrf.mxu0
        %v3963 = vadd.f32 0.0, %v3962
        %v3964 = vpop.f32.mrf.mxu0
        %3965 = vmatprep.mubr.bf16.mxu0 %v3670
        %3966 = vmatmul.mubr.bf16.gmra.mxu0 %v3669
        %v3967 = vpop.f32.mrf.mxu0
        %v3968 = vadd.f32 0.0, %v3967
        %v3969 = vpop.f32.mrf.mxu0
        %v3970 = vpop.f32.mrf.mxu0
        %v3971 = vadd.f32 0.0, %v3970
        %v3972 = vpop.f32.mrf.mxu0
        %3973 = vmatprep.mubr.bf16.mxu0 %v3672
        %3974 = vmatmul.mubr.bf16.gmra.mxu0 %v3671
        %v3975 = vpop.f32.mrf.mxu0
        %v3976 = vadd.f32 0.0, %v3975
        %v3977 = vpop.f32.mrf.mxu0
        %v3978 = vpop.f32.mrf.mxu0
        %v3979 = vadd.f32 0.0, %v3978
        %v3980 = vpop.f32.mrf.mxu0
        %3981 = vmatprep.mubr.bf16.mxu0 %v3674
        %3982 = vmatmul.mubr.bf16.gmra.mxu0 %v3673
        %v3983 = vpop.f32.mrf.mxu0
        %v3984 = vadd.f32 0.0, %v3983
        %v3985 = vpop.f32.mrf.mxu0
        %v3986 = vpop.f32.mrf.mxu0
        %v3987 = vadd.f32 0.0, %v3986
        %v3988 = vpop.f32.mrf.mxu0
        %3989 = vmatprep.mubr.bf16.mxu0 %v3676
        %3990 = vmatmul.mubr.bf16.gmra.mxu0 %v3675
        %v3991 = vpop.f32.mrf.mxu0
        %v3992 = vadd.f32 0.0, %v3991
        %v3993 = vpop.f32.mrf.mxu0
        %v3994 = vpop.f32.mrf.mxu0
        %v3995 = vadd.f32 0.0, %v3994
        %v3996 = vpop.f32.mrf.mxu0
        %3997 = vmatprep.mubr.bf16.mxu0 %v3678
        %3998 = vmatmul.mubr.bf16.gmra.mxu0 %v3677
        %v3999 = vpop.f32.mrf.mxu0
        %v4000 = vadd.f32 0.0, %v3999
        %v4001 = vpop.f32.mrf.mxu0
        %v4002 = vpop.f32.mrf.mxu0
        %v4003 = vadd.f32 0.0, %v4002
        %v4004 = vpop.f32.mrf.mxu0
        %4005 = vmatprep.mubr.bf16.mxu0 %v3680
        %4006 = vmatmul.mubr.bf16.gmra.mxu0 %v3679
        %v4007 = vpop.f32.mrf.mxu0
        %v4008 = vadd.f32 0.0, %v4007
        %v4009 = vpop.f32.mrf.mxu0
        %v4010 = vpop.f32.mrf.mxu0
        %v4011 = vadd.f32 0.0, %v4010
        %v4012 = vpop.f32.mrf.mxu0
        %4013 = vmatprep.mubr.bf16.mxu0 %v3682
        %4014 = vmatmul.mubr.bf16.gmra.mxu0 %v3681
        %v4015 = vpop.f32.mrf.mxu0
        %v4016 = vadd.f32 0.0, %v4015
        %v4017 = vpop.f32.mrf.mxu0
        %v4018 = vpop.f32.mrf.mxu0
        %v4019 = vadd.f32 0.0, %v4018
        %v4020 = vpop.f32.mrf.mxu0
        %4021 = vmatprep.mubr.bf16.mxu0 %v3684
        %4022 = vmatmul.mubr.bf16.gmra.mxu0 %v3683
        %v4023 = vpop.f32.mrf.mxu0
        %v4024 = vadd.f32 0.0, %v4023
        %v4025 = vpop.f32.mrf.mxu0
        %v4026 = vpop.f32.mrf.mxu0
        %v4027 = vadd.f32 0.0, %v4026
        %v4028 = vpop.f32.mrf.mxu0
        %4029 = vmatprep.mubr.bf16.mxu0 %v3686
        %4030 = vmatmul.mubr.bf16.gmra.mxu0 %v3685
        %v4031 = vpop.f32.mrf.mxu0
        %v4032 = vadd.f32 0.0, %v4031
        %v4033 = vpop.f32.mrf.mxu0
        %v4034 = vpop.f32.mrf.mxu0
        %v4035 = vadd.f32 0.0, %v4034
        %v4036 = vpop.f32.mrf.mxu0
        %4037 = vmatprep.mubr.bf16.mxu0 %v3688
        %4038 = vmatmul.mubr.bf16.gmra.mxu0 %v3687
        %v4039 = vpop.f32.mrf.mxu0
        %v4040 = vadd.f32 0.0, %v4039
        %v4041 = vpop.f32.mrf.mxu0
        %v4042 = vpop.f32.mrf.mxu0
        %v4043 = vadd.f32 0.0, %v4042
        %v4044 = vpop.f32.mrf.mxu0
        %4045 = vmatprep.mubr.bf16.mxu0 %v3690
        %4046 = vmatmul.mubr.bf16.gmra.mxu0 %v3689
        %v4047 = vpop.f32.mrf.mxu0
        %v4048 = vadd.f32 0.0, %v4047
        %v4049 = vpop.f32.mrf.mxu0
        %v4050 = vpop.f32.mrf.mxu0
        %v4051 = vadd.f32 0.0, %v4050
        %v4052 = vpop.f32.mrf.mxu0
        %4053 = vmatprep.mubr.bf16.mxu0 %v3692
        %4054 = vmatmul.mubr.bf16.gmra.mxu0 %v3691
        %v4055 = vpop.f32.mrf.mxu0
        %v4056 = vadd.f32 0.0, %v4055
        %v4057 = vpop.f32.mrf.mxu0
        %v4058 = vpop.f32.mrf.mxu0
        %v4059 = vadd.f32 0.0, %v4058
        %v4060 = vpop.f32.mrf.mxu0
        %4061 = vmatprep.mubr.bf16.mxu0 %v3694
        %4062 = vmatmul.mubr.bf16.gmra.mxu0 %v3693
        %v4063 = vpop.f32.mrf.mxu0
        %v4064 = vadd.f32 0.0, %v4063
        %v4065 = vpop.f32.mrf.mxu0
        %v4066 = vpop.f32.mrf.mxu0
        %v4067 = vadd.f32 0.0, %v4066
        %v4068 = vpop.f32.mrf.mxu0
        %4069 = vmatprep.mubr.bf16.mxu0 %v3696
        %4070 = vmatmul.mubr.bf16.gmra.mxu0 %v3695
        %v4071 = vpop.f32.mrf.mxu0
        %v4072 = vadd.f32 0.0, %v4071
        %v4073 = vpop.f32.mrf.mxu0
        %v4074 = vpop.f32.mrf.mxu0
        %v4075 = vadd.f32 0.0, %v4074
        %v4076 = vpop.f32.mrf.mxu0
        %4077 = vmatprep.mubr.bf16.mxu0 %v3698
        %4078 = vmatmul.mubr.bf16.gmra.mxu0 %v3697
        %v4079 = vpop.f32.mrf.mxu0
        %v4080 = vadd.f32 0.0, %v4079
        %v4081 = vpop.f32.mrf.mxu0
        %v4082 = vpop.f32.mrf.mxu0
        %v4083 = vadd.f32 0.0, %v4082
        %v4084 = vpop.f32.mrf.mxu0
        %4085 = vmatprep.mubr.bf16.mxu0 %v3700
        %4086 = vmatmul.mubr.bf16.gmra.mxu0 %v3699
        %v4087 = vpop.f32.mrf.mxu0
        %v4088 = vadd.f32 0.0, %v4087
        %v4089 = vpop.f32.mrf.mxu0
        %v4090 = vpop.f32.mrf.mxu0
        %v4091 = vadd.f32 0.0, %v4090
        %v4092 = vpop.f32.mrf.mxu0
        %4093 = vmatprep.mubr.bf16.mxu0 %v3702
        %4094 = vmatmul.mubr.bf16.gmra.mxu0 %v3701
        %v4095 = vpop.f32.mrf.mxu0
        %v4096 = vadd.f32 0.0, %v4095
        %v4097 = vpop.f32.mrf.mxu0
        %v4098 = vpop.f32.mrf.mxu0
        %v4099 = vadd.f32 0.0, %v4098
        %v4100 = vpop.f32.mrf.mxu0
        %4101 = vmatprep.mubr.bf16.mxu0 %v3704
        %4102 = vmatmul.mubr.bf16.gmra.mxu0 %v3703
        %v4103 = vpop.f32.mrf.mxu0
        %v4104 = vadd.f32 0.0, %v4103
        %v4105 = vpop.f32.mrf.mxu0
        %v4106 = vpop.f32.mrf.mxu0
        %v4107 = vadd.f32 0.0, %v4106
        %v4108 = vpop.f32.mrf.mxu0
        %4109 = vmatprep.mubr.bf16.mxu0 %v3706
        %4110 = vmatmul.mubr.bf16.gmra.mxu0 %v3705
        %v4111 = vpop.f32.mrf.mxu0
        %v4112 = vadd.f32 0.0, %v4111
        %v4113 = vpop.f32.mrf.mxu0
        %v4114 = vpop.f32.mrf.mxu0
        %v4115 = vadd.f32 0.0, %v4114
        %v4116 = vpop.f32.mrf.mxu0
        %4117 = vmatprep.mubr.bf16.mxu0 %v3708
        %4118 = vmatmul.mubr.bf16.gmra.mxu0 %v3707
        %v4119 = vpop.f32.mrf.mxu0
        %v4120 = vadd.f32 0.0, %v4119
        %v4121 = vpop.f32.mrf.mxu0
        %v4122 = vpop.f32.mrf.mxu0
        %v4123 = vadd.f32 0.0, %v4122
        %v4124 = vpop.f32.mrf.mxu0
        %4125 = vdwg.mxu0
        %v4158 = vunpack.c.l.b16 %v2000
        %v4159 = vunpack.c.l.b16 %v2001
        %v4160 = vunpack.c.l.b16 %v2002
        %v4161 = vunpack.c.l.b16 %v2003
        %v4162 = vunpack.c.l.b16 %v2004
        %v4163 = vunpack.c.l.b16 %v2005
        %v4164 = vunpack.c.l.b16 %v2006
        %v4165 = vunpack.c.l.b16 %v2007
        %v4166 = vunpack.c.l.b16 %v2008
        %v4167 = vunpack.c.l.b16 %v2009
        %v4168 = vunpack.c.l.b16 %v2010
        %v4169 = vunpack.c.l.b16 %v2011
        %v4170 = vunpack.c.l.b16 %v2012
        %v4171 = vunpack.c.l.b16 %v2013
        %v4172 = vunpack.c.l.b16 %v2014
        %v4173 = vunpack.c.l.b16 %v2015
        %v4174 = vunpack.c.l.b16 %v2016
        %v4175 = vunpack.c.l.b16 %v2017
        %v4176 = vunpack.c.l.b16 %v2018
        %v4177 = vunpack.c.l.b16 %v2019
        %v4178 = vunpack.c.l.b16 %v2020
        %v4179 = vunpack.c.l.b16 %v2021
        %v4180 = vunpack.c.l.b16 %v2022
        %v4181 = vunpack.c.l.b16 %v2023
        %v4182 = vunpack.c.l.b16 %v2024
        %v4183 = vunpack.c.l.b16 %v2025
        %v4184 = vunpack.c.l.b16 %v2026
        %v4185 = vunpack.c.l.b16 %v2027
        %v4186 = vunpack.c.l.b16 %v2028
        %v4187 = vunpack.c.l.b16 %v2029
        %v4188 = vunpack.c.l.b16 %v2030
        %v4189 = vunpack.c.l.b16 %v2031
        %v4190 = vpack.c.b16 %v4159, %v4158
        %v4191 = vpack.c.b16 %v4161, %v4160
        %v4192 = vpack.c.b16 %v4163, %v4162
        %v4193 = vpack.c.b16 %v4165, %v4164
        %v4194 = vpack.c.b16 %v4167, %v4166
        %v4195 = vpack.c.b16 %v4169, %v4168
        %v4196 = vpack.c.b16 %v4171, %v4170
        %v4197 = vpack.c.b16 %v4173, %v4172
        %v4198 = vpack.c.b16 %v4175, %v4174
        %v4199 = vpack.c.b16 %v4177, %v4176
        %v4200 = vpack.c.b16 %v4179, %v4178
        %v4201 = vpack.c.b16 %v4181, %v4180
        %v4202 = vpack.c.b16 %v4183, %v4182
        %v4203 = vpack.c.b16 %v4185, %v4184
        %v4204 = vpack.c.b16 %v4187, %v4186
        %v4205 = vpack.c.b16 %v4189, %v4188
        %4222 = vmatprep.subr.bf16.mxu0 0
        %4223 = vmatpush1.bf16.msra.mxu0 %v4197
        %4224 = vmatprep.subr.bf16.mxu0 0
        %4225 = vmatpush1.bf16.msra.mxu0 %v4196
        %4226 = vmatprep.subr.bf16.mxu0 0
        %4227 = vmatpush1.bf16.msra.mxu0 %v4195
        %4228 = vmatprep.subr.bf16.mxu0 0
        %4229 = vmatpush1.bf16.msra.mxu0 %v4194
        %4230 = vmatprep.subr.bf16.mxu0 0
        %4231 = vmatpush1.bf16.msra.mxu0 %v4193
        %4232 = vmatprep.subr.bf16.mxu0 0
        %4233 = vmatpush1.bf16.msra.mxu0 %v4192
        %4234 = vmatprep.subr.bf16.mxu0 0
        %4235 = vmatpush1.bf16.msra.mxu0 %v4191
        %4236 = vmatprep.subr.bf16.mxu0 0
        %4237 = vmatpush1.bf16.msra.mxu0 %v4190
        %4238 = vmatprep.subr.bf16.mxu0 0
        %4239 = vmatpush2.bf16.msra.mxu0 %v4205
        %4240 = vmatprep.subr.bf16.mxu0 0
        %4241 = vmatpush2.bf16.msra.mxu0 %v4204
        %4242 = vmatprep.subr.bf16.mxu0 0
        %4243 = vmatpush2.bf16.msra.mxu0 %v4203
        %4244 = vmatprep.subr.bf16.mxu0 0
        %4245 = vmatpush2.bf16.msra.mxu0 %v4202
        %4246 = vmatprep.subr.bf16.mxu0 0
        %4247 = vmatpush2.bf16.msra.mxu0 %v4201
        %4248 = vmatprep.subr.bf16.mxu0 0
        %4249 = vmatpush2.bf16.msra.mxu0 %v4200
        %4250 = vmatprep.subr.bf16.mxu0 0
        %4251 = vmatpush2.bf16.msra.mxu0 %v4199
        %4252 = vmatprep.subr.bf16.mxu0 0
        %4253 = vmatpush2.bf16.msra.mxu0 %v4198
        %4254 = vmatprep.mubr.bf16.mxu0 %v1937
        %4255 = vmatmul.mubr.bf16.gmra.mxu0 %v1936
        %v4256 = vpop.f32.mrf.mxu0
        %v4257 = vadd.f32 %v3872, %v4256
        %v4258 = vpop.f32.mrf.mxu0
        %v4259 = vpop.f32.mrf.mxu0
        %v4260 = vadd.f32 %v3875, %v4259
        %v4261 = vpop.f32.mrf.mxu0
        %4262 = vmatprep.mubr.bf16.mxu0 %v1939
        %4263 = vmatmul.mubr.bf16.gmra.mxu0 %v1938
        %v4264 = vpop.f32.mrf.mxu0
        %v4265 = vadd.f32 %v3880, %v4264
        %v4266 = vpop.f32.mrf.mxu0
        %v4267 = vpop.f32.mrf.mxu0
        %v4268 = vadd.f32 %v3883, %v4267
        %v4269 = vpop.f32.mrf.mxu0
        %4270 = vmatprep.mubr.bf16.mxu0 %v1941
        %4271 = vmatmul.mubr.bf16.gmra.mxu0 %v1940
        %v4272 = vpop.f32.mrf.mxu0
        %v4273 = vadd.f32 %v3888, %v4272
        %v4274 = vpop.f32.mrf.mxu0
        %v4275 = vpop.f32.mrf.mxu0
        %v4276 = vadd.f32 %v3891, %v4275
        %v4277 = vpop.f32.mrf.mxu0
        %4278 = vmatprep.mubr.bf16.mxu0 %v1943
        %4279 = vmatmul.mubr.bf16.gmra.mxu0 %v1942
        %v4280 = vpop.f32.mrf.mxu0
        %v4281 = vadd.f32 %v3896, %v4280
        %v4282 = vpop.f32.mrf.mxu0
        %v4283 = vpop.f32.mrf.mxu0
        %v4284 = vadd.f32 %v3899, %v4283
        %v4285 = vpop.f32.mrf.mxu0
        %4286 = vmatprep.mubr.bf16.mxu0 %v1945
        %4287 = vmatmul.mubr.bf16.gmra.mxu0 %v1944
        %v4288 = vpop.f32.mrf.mxu0
        %v4289 = vadd.f32 %v3904, %v4288
        %v4290 = vpop.f32.mrf.mxu0
        %v4291 = vpop.f32.mrf.mxu0
        %v4292 = vadd.f32 %v3907, %v4291
        %v4293 = vpop.f32.mrf.mxu0
        %4294 = vmatprep.mubr.bf16.mxu0 %v1947
        %4295 = vmatmul.mubr.bf16.gmra.mxu0 %v1946
        %v4296 = vpop.f32.mrf.mxu0
        %v4297 = vadd.f32 %v3912, %v4296
        %v4298 = vpop.f32.mrf.mxu0
        %v4299 = vpop.f32.mrf.mxu0
        %v4300 = vadd.f32 %v3915, %v4299
        %v4301 = vpop.f32.mrf.mxu0
        %4302 = vmatprep.mubr.bf16.mxu0 %v1949
        %4303 = vmatmul.mubr.bf16.gmra.mxu0 %v1948
        %v4304 = vpop.f32.mrf.mxu0
        %v4305 = vadd.f32 %v3920, %v4304
        %v4306 = vpop.f32.mrf.mxu0
        %v4307 = vpop.f32.mrf.mxu0
        %v4308 = vadd.f32 %v3923, %v4307
        %v4309 = vpop.f32.mrf.mxu0
        %4310 = vmatprep.mubr.bf16.mxu0 %v1951
        %4311 = vmatmul.mubr.bf16.gmra.mxu0 %v1950
        %v4312 = vpop.f32.mrf.mxu0
        %v4313 = vadd.f32 %v3928, %v4312
        %v4314 = vpop.f32.mrf.mxu0
        %v4315 = vpop.f32.mrf.mxu0
        %v4316 = vadd.f32 %v3931, %v4315
        %v4317 = vpop.f32.mrf.mxu0
        %4318 = vmatprep.mubr.bf16.mxu0 %v1953
        %4319 = vmatmul.mubr.bf16.gmra.mxu0 %v1952
        %v4320 = vpop.f32.mrf.mxu0
        %v4321 = vadd.f32 %v3936, %v4320
        %v4322 = vpop.f32.mrf.mxu0
        %v4323 = vpop.f32.mrf.mxu0
        %v4324 = vadd.f32 %v3939, %v4323
        %v4325 = vpop.f32.mrf.mxu0
        %4326 = vmatprep.mubr.bf16.mxu0 %v1955
        %4327 = vmatmul.mubr.bf16.gmra.mxu0 %v1954
        %v4328 = vpop.f32.mrf.mxu0
        %v4329 = vadd.f32 %v3944, %v4328
        %v4330 = vpop.f32.mrf.mxu0
        %v4331 = vpop.f32.mrf.mxu0
        %v4332 = vadd.f32 %v3947, %v4331
        %v4333 = vpop.f32.mrf.mxu0
        %4334 = vmatprep.mubr.bf16.mxu0 %v1957
        %4335 = vmatmul.mubr.bf16.gmra.mxu0 %v1956
        %v4336 = vpop.f32.mrf.mxu0
        %v4337 = vadd.f32 %v3952, %v4336
        %v4338 = vpop.f32.mrf.mxu0
        %v4339 = vpop.f32.mrf.mxu0
        %v4340 = vadd.f32 %v3955, %v4339
        %v4341 = vpop.f32.mrf.mxu0
        %4342 = vmatprep.mubr.bf16.mxu0 %v1959
        %4343 = vmatmul.mubr.bf16.gmra.mxu0 %v1958
        %v4344 = vpop.f32.mrf.mxu0
        %v4345 = vadd.f32 %v3960, %v4344
        %v4346 = vpop.f32.mrf.mxu0
        %v4347 = vpop.f32.mrf.mxu0
        %v4348 = vadd.f32 %v3963, %v4347
        %v4349 = vpop.f32.mrf.mxu0
        %4350 = vmatprep.mubr.bf16.mxu0 %v1961
        %4351 = vmatmul.mubr.bf16.gmra.mxu0 %v1960
        %v4352 = vpop.f32.mrf.mxu0
        %v4353 = vadd.f32 %v3968, %v4352
        %v4354 = vpop.f32.mrf.mxu0
        %v4355 = vpop.f32.mrf.mxu0
        %v4356 = vadd.f32 %v3971, %v4355
        %v4357 = vpop.f32.mrf.mxu0
        %4358 = vmatprep.mubr.bf16.mxu0 %v1963
        %4359 = vmatmul.mubr.bf16.gmra.mxu0 %v1962
        %v4360 = vpop.f32.mrf.mxu0
        %v4361 = vadd.f32 %v3976, %v4360
        %v4362 = vpop.f32.mrf.mxu0
        %v4363 = vpop.f32.mrf.mxu0
        %v4364 = vadd.f32 %v3979, %v4363
        %v4365 = vpop.f32.mrf.mxu0
        %4366 = vmatprep.mubr.bf16.mxu0 %v1965
        %4367 = vmatmul.mubr.bf16.gmra.mxu0 %v1964
        %v4368 = vpop.f32.mrf.mxu0
        %v4369 = vadd.f32 %v3984, %v4368
        %v4370 = vpop.f32.mrf.mxu0
        %v4371 = vpop.f32.mrf.mxu0
        %v4372 = vadd.f32 %v3987, %v4371
        %v4373 = vpop.f32.mrf.mxu0
        %4374 = vmatprep.mubr.bf16.mxu0 %v1967
        %4375 = vmatmul.mubr.bf16.gmra.mxu0 %v1966
        %v4376 = vpop.f32.mrf.mxu0
        %v4377 = vadd.f32 %v3992, %v4376
        %v4378 = vpop.f32.mrf.mxu0
        %v4379 = vpop.f32.mrf.mxu0
        %v4380 = vadd.f32 %v3995, %v4379
        %v4381 = vpop.f32.mrf.mxu0
        %4382 = vmatprep.mubr.bf16.mxu0 %v1969
        %4383 = vmatmul.mubr.bf16.gmra.mxu0 %v1968
        %v4384 = vpop.f32.mrf.mxu0
        %v4385 = vadd.f32 %v4000, %v4384
        %v4386 = vpop.f32.mrf.mxu0
        %v4387 = vpop.f32.mrf.mxu0
        %v4388 = vadd.f32 %v4003, %v4387
        %v4389 = vpop.f32.mrf.mxu0
        %4390 = vmatprep.mubr.bf16.mxu0 %v1971
        %4391 = vmatmul.mubr.bf16.gmra.mxu0 %v1970
        %v4392 = vpop.f32.mrf.mxu0
        %v4393 = vadd.f32 %v4008, %v4392
        %v4394 = vpop.f32.mrf.mxu0
        %v4395 = vpop.f32.mrf.mxu0
        %v4396 = vadd.f32 %v4011, %v4395
        %v4397 = vpop.f32.mrf.mxu0
        %4398 = vmatprep.mubr.bf16.mxu0 %v1973
        %4399 = vmatmul.mubr.bf16.gmra.mxu0 %v1972
        %v4400 = vpop.f32.mrf.mxu0
        %v4401 = vadd.f32 %v4016, %v4400
        %v4402 = vpop.f32.mrf.mxu0
        %v4403 = vpop.f32.mrf.mxu0
        %v4404 = vadd.f32 %v4019, %v4403
        %v4405 = vpop.f32.mrf.mxu0
        %4406 = vmatprep.mubr.bf16.mxu0 %v1975
        %4407 = vmatmul.mubr.bf16.gmra.mxu0 %v1974
        %v4408 = vpop.f32.mrf.mxu0
        %v4409 = vadd.f32 %v4024, %v4408
        %v4410 = vpop.f32.mrf.mxu0
        %v4411 = vpop.f32.mrf.mxu0
        %v4412 = vadd.f32 %v4027, %v4411
        %v4413 = vpop.f32.mrf.mxu0
        %4414 = vmatprep.mubr.bf16.mxu0 %v1977
        %4415 = vmatmul.mubr.bf16.gmra.mxu0 %v1976
        %v4416 = vpop.f32.mrf.mxu0
        %v4417 = vadd.f32 %v4032, %v4416
        %v4418 = vpop.f32.mrf.mxu0
        %v4419 = vpop.f32.mrf.mxu0
        %v4420 = vadd.f32 %v4035, %v4419
        %v4421 = vpop.f32.mrf.mxu0
        %4422 = vmatprep.mubr.bf16.mxu0 %v1979
        %4423 = vmatmul.mubr.bf16.gmra.mxu0 %v1978
        %v4424 = vpop.f32.mrf.mxu0
        %v4425 = vadd.f32 %v4040, %v4424
        %v4426 = vpop.f32.mrf.mxu0
        %v4427 = vpop.f32.mrf.mxu0
        %v4428 = vadd.f32 %v4043, %v4427
        %v4429 = vpop.f32.mrf.mxu0
        %4430 = vmatprep.mubr.bf16.mxu0 %v1981
        %4431 = vmatmul.mubr.bf16.gmra.mxu0 %v1980
        %v4432 = vpop.f32.mrf.mxu0
        %v4433 = vadd.f32 %v4048, %v4432
        %v4434 = vpop.f32.mrf.mxu0
        %v4435 = vpop.f32.mrf.mxu0
        %v4436 = vadd.f32 %v4051, %v4435
        %v4437 = vpop.f32.mrf.mxu0
        %4438 = vmatprep.mubr.bf16.mxu0 %v1983
        %4439 = vmatmul.mubr.bf16.gmra.mxu0 %v1982
        %v4440 = vpop.f32.mrf.mxu0
        %v4441 = vadd.f32 %v4056, %v4440
        %v4442 = vpop.f32.mrf.mxu0
        %v4443 = vpop.f32.mrf.mxu0
        %v4444 = vadd.f32 %v4059, %v4443
        %v4445 = vpop.f32.mrf.mxu0
        %4446 = vmatprep.mubr.bf16.mxu0 %v1985
        %4447 = vmatmul.mubr.bf16.gmra.mxu0 %v1984
        %v4448 = vpop.f32.mrf.mxu0
        %v4449 = vadd.f32 %v4064, %v4448
        %v4450 = vpop.f32.mrf.mxu0
        %v4451 = vpop.f32.mrf.mxu0
        %v4452 = vadd.f32 %v4067, %v4451
        %v4453 = vpop.f32.mrf.mxu0
        %4454 = vmatprep.mubr.bf16.mxu0 %v1987
        %4455 = vmatmul.mubr.bf16.gmra.mxu0 %v1986
        %v4456 = vpop.f32.mrf.mxu0
        %v4457 = vadd.f32 %v4072, %v4456
        %v4458 = vpop.f32.mrf.mxu0
        %v4459 = vpop.f32.mrf.mxu0
        %v4460 = vadd.f32 %v4075, %v4459
        %v4461 = vpop.f32.mrf.mxu0
        %4462 = vmatprep.mubr.bf16.mxu0 %v1989
        %4463 = vmatmul.mubr.bf16.gmra.mxu0 %v1988
        %v4464 = vpop.f32.mrf.mxu0
        %v4465 = vadd.f32 %v4080, %v4464
        %v4466 = vpop.f32.mrf.mxu0
        %v4467 = vpop.f32.mrf.mxu0
        %v4468 = vadd.f32 %v4083, %v4467
        %v4469 = vpop.f32.mrf.mxu0
        %4470 = vmatprep.mubr.bf16.mxu0 %v1991
        %4471 = vmatmul.mubr.bf16.gmra.mxu0 %v1990
        %v4472 = vpop.f32.mrf.mxu0
        %v4473 = vadd.f32 %v4088, %v4472
        %v4474 = vpop.f32.mrf.mxu0
        %v4475 = vpop.f32.mrf.mxu0
        %v4476 = vadd.f32 %v4091, %v4475
        %v4477 = vpop.f32.mrf.mxu0
        %4478 = vmatprep.mubr.bf16.mxu0 %v1993
        %4479 = vmatmul.mubr.bf16.gmra.mxu0 %v1992
        %v4480 = vpop.f32.mrf.mxu0
        %v4481 = vadd.f32 %v4096, %v4480
        %v4482 = vpop.f32.mrf.mxu0
        %v4483 = vpop.f32.mrf.mxu0
        %v4484 = vadd.f32 %v4099, %v4483
        %v4485 = vpop.f32.mrf.mxu0
        %4486 = vmatprep.mubr.bf16.mxu0 %v1995
        %4487 = vmatmul.mubr.bf16.gmra.mxu0 %v1994
        %v4488 = vpop.f32.mrf.mxu0
        %v4489 = vadd.f32 %v4104, %v4488
        %v4490 = vpop.f32.mrf.mxu0
        %v4491 = vpop.f32.mrf.mxu0
        %v4492 = vadd.f32 %v4107, %v4491
        %v4493 = vpop.f32.mrf.mxu0
        %4494 = vmatprep.mubr.bf16.mxu0 %v1997
        %4495 = vmatmul.mubr.bf16.gmra.mxu0 %v1996
        %v4496 = vpop.f32.mrf.mxu0
        %v4497 = vadd.f32 %v4112, %v4496
        %v4498 = vpop.f32.mrf.mxu0
        %v4499 = vpop.f32.mrf.mxu0
        %v4500 = vadd.f32 %v4115, %v4499
        %v4501 = vpop.f32.mrf.mxu0
        %4502 = vmatprep.mubr.bf16.mxu0 %v1999
        %4503 = vmatmul.mubr.bf16.gmra.mxu0 %v1998
        %v4504 = vpop.f32.mrf.mxu0
        %v4505 = vadd.f32 %v4120, %v4504
        %v4506 = vpop.f32.mrf.mxu0
        %v4507 = vpop.f32.mrf.mxu0
        %v4508 = vadd.f32 %v4123, %v4507
        %v4509 = vpop.f32.mrf.mxu0
        %4510 = vdwg.mxu0
        %v4511 = vld [vmem:[%s4] sm:$0x1]
        %v4513 = vlaneseq
        %v4514 = vshrl.u32 %v4513, 7
        %v4515 = vsub.s32 0, %v4514
        %v4516 = vrot.slane %v4511, %v4515
        %v4518 = vadd.f32 %v4257, %v4516
        %v4519 = vadd.f32 %v4260, %v4516
        %v4520 = vadd.f32 %v4265, %v4516
        %v4521 = vadd.f32 %v4268, %v4516
        %v4522 = vadd.f32 %v4273, %v4516
        %v4523 = vadd.f32 %v4276, %v4516
        %v4524 = vadd.f32 %v4281, %v4516
        %v4525 = vadd.f32 %v4284, %v4516
        %v4526 = vadd.f32 %v4289, %v4516
        %v4527 = vadd.f32 %v4292, %v4516
        %v4528 = vadd.f32 %v4297, %v4516
        %v4529 = vadd.f32 %v4300, %v4516
        %v4530 = vadd.f32 %v4305, %v4516
        %v4531 = vadd.f32 %v4308, %v4516
        %v4532 = vadd.f32 %v4313, %v4516
        %v4533 = vadd.f32 %v4316, %v4516
        %v4534 = vadd.f32 %v4321, %v4516
        %v4535 = vadd.f32 %v4324, %v4516
        %v4536 = vadd.f32 %v4329, %v4516
        %v4537 = vadd.f32 %v4332, %v4516
        %v4538 = vadd.f32 %v4337, %v4516
        %v4539 = vadd.f32 %v4340, %v4516
        %v4540 = vadd.f32 %v4345, %v4516
        %v4541 = vadd.f32 %v4348, %v4516
        %v4542 = vadd.f32 %v4353, %v4516
        %v4543 = vadd.f32 %v4356, %v4516
        %v4544 = vadd.f32 %v4361, %v4516
        %v4545 = vadd.f32 %v4364, %v4516
        %v4546 = vadd.f32 %v4369, %v4516
        %v4547 = vadd.f32 %v4372, %v4516
        %v4548 = vadd.f32 %v4377, %v4516
        %v4549 = vadd.f32 %v4380, %v4516
        %v4550 = vadd.f32 %v4385, %v4516
        %v4551 = vadd.f32 %v4388, %v4516
        %v4552 = vadd.f32 %v4393, %v4516
        %v4553 = vadd.f32 %v4396, %v4516
        %v4554 = vadd.f32 %v4401, %v4516
        %v4555 = vadd.f32 %v4404, %v4516
        %v4556 = vadd.f32 %v4409, %v4516
        %v4557 = vadd.f32 %v4412, %v4516
        %v4558 = vadd.f32 %v4417, %v4516
        %v4559 = vadd.f32 %v4420, %v4516
        %v4560 = vadd.f32 %v4425, %v4516
        %v4561 = vadd.f32 %v4428, %v4516
        %v4562 = vadd.f32 %v4433, %v4516
        %v4563 = vadd.f32 %v4436, %v4516
        %v4564 = vadd.f32 %v4441, %v4516
        %v4565 = vadd.f32 %v4444, %v4516
        %v4566 = vadd.f32 %v4449, %v4516
        %v4567 = vadd.f32 %v4452, %v4516
        %v4568 = vadd.f32 %v4457, %v4516
        %v4569 = vadd.f32 %v4460, %v4516
        %v4570 = vadd.f32 %v4465, %v4516
        %v4571 = vadd.f32 %v4468, %v4516
        %v4572 = vadd.f32 %v4473, %v4516
        %v4573 = vadd.f32 %v4476, %v4516
        %v4574 = vadd.f32 %v4481, %v4516
        %v4575 = vadd.f32 %v4484, %v4516
        %v4576 = vadd.f32 %v4489, %v4516
        %v4577 = vadd.f32 %v4492, %v4516
        %v4578 = vadd.f32 %v4497, %v4516
        %v4579 = vadd.f32 %v4500, %v4516
        %v4580 = vadd.f32 %v4505, %v4516
        %v4581 = vadd.f32 %v4508, %v4516
        %4582 = vst [vmem:[%s218] sm:$0xff] %v4518
        %4583 = vst [vmem:[%s218 + $0x8] sm:$0xff] %v4519
        %4584 = vst [vmem:[%s218 + $0x10] sm:$0xff] %v4520
        %4585 = vst [vmem:[%s218 + $0x18] sm:$0xff] %v4521
        %4586 = vst [vmem:[%s218 + $0x20] sm:$0xff] %v4522
        %4587 = vst [vmem:[%s218 + $0x28] sm:$0xff] %v4523
        %4588 = vst [vmem:[%s218 + $0x30] sm:$0xff] %v4524
        %4589 = vst [vmem:[%s218 + $0x38] sm:$0xff] %v4525
        %4590 = vst [vmem:[%s218 + $0x40] sm:$0xff] %v4526
        %4591 = vst [vmem:[%s218 + $0x48] sm:$0xff] %v4527
        %4592 = vst [vmem:[%s218 + $0x50] sm:$0xff] %v4528
        %4593 = vst [vmem:[%s218 + $0x58] sm:$0xff] %v4529
        %4594 = vst [vmem:[%s218 + $0x60] sm:$0xff] %v4530
        %4595 = vst [vmem:[%s218 + $0x68] sm:$0xff] %v4531
        %4596 = vst [vmem:[%s218 + $0x70] sm:$0xff] %v4532
        %4597 = vst [vmem:[%s218 + $0x78] sm:$0xff] %v4533
        %4598 = vst [vmem:[%s218 + $0x80] sm:$0xff] %v4534
        %4599 = vst [vmem:[%s218 + $0x88] sm:$0xff] %v4535
        %4600 = vst [vmem:[%s218 + $0x90] sm:$0xff] %v4536
        %4601 = vst [vmem:[%s218 + $0x98] sm:$0xff] %v4537
        %4602 = vst [vmem:[%s218 + $0xa0] sm:$0xff] %v4538
        %4603 = vst [vmem:[%s218 + $0xa8] sm:$0xff] %v4539
        %4604 = vst [vmem:[%s218 + $0xb0] sm:$0xff] %v4540
        %4605 = vst [vmem:[%s218 + $0xb8] sm:$0xff] %v4541
        %4606 = vst [vmem:[%s218 + $0xc0] sm:$0xff] %v4542
        %4607 = vst [vmem:[%s218 + $0xc8] sm:$0xff] %v4543
        %4608 = vst [vmem:[%s218 + $0xd0] sm:$0xff] %v4544
        %4609 = vst [vmem:[%s218 + $0xd8] sm:$0xff] %v4545
        %4610 = vst [vmem:[%s218 + $0xe0] sm:$0xff] %v4546
        %4611 = vst [vmem:[%s218 + $0xe8] sm:$0xff] %v4547
        %4612 = vst [vmem:[%s218 + $0xf0] sm:$0xff] %v4548
        %4613 = vst [vmem:[%s218 + $0xf8] sm:$0xff] %v4549
        %4614 = vst [vmem:[%s218 + $0x100] sm:$0xff] %v4550
        %4615 = vst [vmem:[%s218 + $0x108] sm:$0xff] %v4551
        %4616 = vst [vmem:[%s218 + $0x110] sm:$0xff] %v4552
        %4617 = vst [vmem:[%s218 + $0x118] sm:$0xff] %v4553
        %4618 = vst [vmem:[%s218 + $0x120] sm:$0xff] %v4554
        %4619 = vst [vmem:[%s218 + $0x128] sm:$0xff] %v4555
        %4620 = vst [vmem:[%s218 + $0x130] sm:$0xff] %v4556
        %4621 = vst [vmem:[%s218 + $0x138] sm:$0xff] %v4557
        %4622 = vst [vmem:[%s218 + $0x140] sm:$0xff] %v4558
        %4623 = vst [vmem:[%s218 + $0x148] sm:$0xff] %v4559
        %4624 = vst [vmem:[%s218 + $0x150] sm:$0xff] %v4560
        %4625 = vst [vmem:[%s218 + $0x158] sm:$0xff] %v4561
        %4626 = vst [vmem:[%s218 + $0x160] sm:$0xff] %v4562
        %4627 = vst [vmem:[%s218 + $0x168] sm:$0xff] %v4563
        %4628 = vst [vmem:[%s218 + $0x170] sm:$0xff] %v4564
        %4629 = vst [vmem:[%s218 + $0x178] sm:$0xff] %v4565
        %4630 = vst [vmem:[%s218 + $0x180] sm:$0xff] %v4566
        %4631 = vst [vmem:[%s218 + $0x188] sm:$0xff] %v4567
        %4632 = vst [vmem:[%s218 + $0x190] sm:$0xff] %v4568
        %4633 = vst [vmem:[%s218 + $0x198] sm:$0xff] %v4569
        %4634 = vst [vmem:[%s218 + $0x1a0] sm:$0xff] %v4570
        %4635 = vst [vmem:[%s218 + $0x1a8] sm:$0xff] %v4571
        %4636 = vst [vmem:[%s218 + $0x1b0] sm:$0xff] %v4572
        %4637 = vst [vmem:[%s218 + $0x1b8] sm:$0xff] %v4573
        %4638 = vst [vmem:[%s218 + $0x1c0] sm:$0xff] %v4574
        %4639 = vst [vmem:[%s218 + $0x1c8] sm:$0xff] %v4575
        %4640 = vst [vmem:[%s218 + $0x1d0] sm:$0xff] %v4576
        %4641 = vst [vmem:[%s218 + $0x1d8] sm:$0xff] %v4577
        %4642 = vst [vmem:[%s218 + $0x1e0] sm:$0xff] %v4578
        %4643 = vst [vmem:[%s218 + $0x1e8] sm:$0xff] %v4579
        %4644 = vst [vmem:[%s218 + $0x1f0] sm:$0xff] %v4580
        %4645 = vst [vmem:[%s218 + $0x1f8] sm:$0xff] %v4581
        %s4646 = sand.u32 %s137, 1
        %s4647 = scalar_lea.sflag [#allocation3], %s4646
        %s4648 = sand.u32 %s137, 1
        %s4649 = smul.addr %s4648, 512
        %s4650 = scalar_lea.vmem [#allocation2], %s4649
        // Predicated region
        $region41: #{feed_forward.1} parent=39 // pred_check
          %p4651 = pneg %p147
        $region42: #{feed_forward.1} parent=39 // pred_check_branch
          %4653 = sbr.rel (%p4651) target = $region44
        $region43: #{feed_forward.1} parent=39 // pred_region
          %s4654 = smul.u32 64, %s19
          %s4656 = ssub.s32 8192, 8192
          %4657 = vsyncadd %s4647, %s4656
          %s4658 = smul.addr %s4654, 128
          %s4659 = scalar_lea.hbm %s5, %s4658
          %s4660 = sshll.u32 %s4650, 4
          %s4661 = int_to_ptr.vmem [resolvable:$true] %s4660
          %4666 = dma.vmem_to_hbm [thread:$0]  %s4661, 8192, %s4659, %s4647, 128, 128, 8
        $region44: #{feed_forward.1} parent=39 // pred_fallthru
          _
      $region40: #{feed_forward.1} parent=5 // pred_fallthru
        _
      %p4667 = scmp.le.s32.totalorder 2, %s14
      // Predicated region
      $region45: #{feed_forward.1} parent=5 // pred_check
        %p4668 = pneg %p4667
      $region46: #{feed_forward.1} parent=5 // pred_check_branch
        %4670 = sbr.rel (%p4668) target = $region48
      $region47: #{feed_forward.1} parent=5 // pred_region
        %s4671 = ssub.s32 %s14, 2
        // Predicated region
        $region49: #{feed_forward.1} parent=47 // pred_check
          %p4672 = pneg %p153
        $region50: #{feed_forward.1} parent=47 // pred_check_branch
          %4674 = sbr.rel (%p4672) target = $region52
        $region51: #{feed_forward.1} parent=47 // pred_region
          %s4675 = sand.u32 %s138, 1
          %s4676 = scalar_lea.sflag [#allocation3], %s4675
          %s4677 = sand.u32 %s138, 1
          %s4678 = smul.addr %s4677, 512
          %s4679 = scalar_lea.vmem [#allocation2], %s4678
          %4680 = dma.done %s4676, 8192
        $region52: #{feed_forward.1} parent=47 // pred_fallthru
          _
      $region48: #{feed_forward.1} parent=5 // pred_fallthru
        _
    $region6: #{feed_forward.1} parent=1 // loop_footer
      %s18 = sadd.s32 1, %s14
    $region7: #{feed_forward.1} parent=1 // loop_footer_branch
      %13 = sbr.rel target = $region3
    $region8: #{feed_forward.1} parent=1 // loop_exit
      _
    %4681 = vsyncpa [#allocation3], 1
    %s4682 = scalar_lea.sflag [#allocation3], 1
    %4683 = vsyncpa %s4682, 1

</llo_original>
